<compile_context>
chip_gen: v5e
topology: v5e:2x2
jax: 0.10.0
libtpu: 0.0.40
codegen_flags: <defaults>
</compile_context>

<pallas_src>
import functools

import jax
import jax.numpy as jnp
from jax import lax
from jax.experimental import pallas as pl
from jax.experimental.pallas import tpu as pltpu


# (kernel, stride, pad, cin, cout) for conv1..conv4 of CNNNetwork4.
_LAYER_SPECS = (
    (7, 2, 3, 1, 16),
    (5, 2, 2, 16, 32),
    (3, 1, 1, 32, 64),
    (3, 1, 1, 64, 128),
)


def _conv_out(size, k, s, p):
    return (size + 2 * p - k) // s + 1


# ----------------------------------------------------------------------------
# In-kernel building blocks (operate on VMEM refs, fully inside one pallas_call)
# ----------------------------------------------------------------------------
def _conv_bn_relu_layer(in_buf, w_ref, scale_ref, shift_ref, out_buf, *,
                        k, stride, ci, co, ho, wo, out_pad):
    """Conv2d + folded BatchNorm(eval) + ReLU on a zero-padded NHWC VMEM buffer.

    in_buf : (hi + 2*pad, wi + 2*pad, ci) f32 scratch (frame already zero).
    out_buf: (ho + 2*out_pad, wo + 2*out_pad, co) f32 scratch.
    w_ref  : (k*k*ci, co) tap-major weights (bf16, or f32 when ci == 1).
    """
    scale = scale_ref[...]          # (1, co) f32
    shift = shift_ref[...]          # (1, co) f32

    def row_body(r, carry):
        acc = jnp.zeros((wo, co), jnp.float32)
        for dy in range(k):
            iy = r * stride + dy                       # dynamic row in padded input
            for dx in range(k):
                if stride == 1:
                    win = in_buf[iy, pl.ds(dx, wo), :]             # (wo, ci)
                else:
                    win = in_buf[iy, pl.ds(dx, wo, stride), :]     # strided sublane read
                w_tap = w_ref[pl.ds((dy * k + dx) * ci, ci), :]    # (ci, co)
                if ci == 1:
                    # Cin == 1: outer product == broadcast multiply on the VPU.
                    acc = acc + win * w_tap
                else:
                    acc = acc + jnp.dot(win.astype(jnp.bfloat16), w_tap,
                                        preferred_element_type=jnp.float32)
        y = jnp.maximum(acc * scale + shift, 0.0)                  # BN + ReLU, f32
        out_buf[out_pad + r, pl.ds(out_pad, wo), :] = y.astype(out_buf.dtype)
        return carry

    lax.fori_loop(0, ho, row_body, 0)


def _cnn4_kernel(x_ref,
                 w1_ref, s1_ref, t1_ref,
                 w2_ref, s2_ref, t2_ref,
                 w3_ref, s3_ref, t3_ref,
                 w4_ref, s4_ref, t4_ref,
                 lw_ref, lb_ref,
                 out_ref,
                 buf0, buf1, buf2, buf3, buf4,
                 *, layers, pool):
    h_in, w_in = x_ref.shape[1], x_ref.shape[2]
    pad1 = layers[0][2]

    # Zero the padded activation buffers (cheap: a few KiB of VMEM stores).
    # Done every grid step so the kernel stays correct when the parallel batch
    # axis is split across TensorCores.
    for buf in (buf0, buf1, buf2, buf3):
        buf[...] = jnp.zeros(buf.shape, buf.dtype)

    # Stage this image (NHWC, C == 1) into the zero-padded conv1 input buffer.
    buf0[pl.ds(pad1, h_in), pl.ds(pad1, w_in), :] = x_ref[0, :, :, :]

    bufs = (buf0, buf1, buf2, buf3, buf4)
    w_refs = (w1_ref, w2_ref, w3_ref, w4_ref)
    s_refs = (s1_ref, s2_ref, s3_ref, s4_ref)
    t_refs = (t1_ref, t2_ref, t3_ref, t4_ref)

    for li, (k, stride, _pad, ci, co, ho, wo, out_pad) in enumerate(layers):
        _conv_bn_relu_layer(bufs[li], w_refs[li], s_refs[li], t_refs[li],
                            bufs[li + 1], k=k, stride=stride, ci=ci, co=co,
                            ho=ho, wo=wo, out_pad=out_pad)

    # ---- AvgPool2d(2,2) + Flatten + Linear, fused --------------------------
    hp, wp = pool
    c_last = buf4.shape[2]
    ncls = out_ref.shape[2]

    def pool_row(hi, acc):
        r0 = 2 * hi
        top_e = buf4[r0, pl.ds(0, wp, 2), :]
        top_o = buf4[r0, pl.ds(1, wp, 2), :]
        bot_e = buf4[r0 + 1, pl.ds(0, wp, 2), :]
        bot_o = buf4[r0 + 1, pl.ds(1, wp, 2), :]
        prow = (top_e + top_o + bot_e + bot_o) * 0.25          # (wp, c_last) f32
        for wi in range(wp):
            pvec = prow[wi:wi + 1, :].astype(jnp.bfloat16)     # (1, c_last)
            row0 = pl.multiple_of((hi * wp + wi) * c_last, c_last)
            blk = lw_ref[pl.ds(row0, c_last), :]               # (c_last, ncls) bf16
            acc = acc + jnp.dot(pvec, blk, preferred_element_type=jnp.float32)
        return acc

    logits = lax.fori_loop(0, hp, pool_row, jnp.zeros((1, ncls), jnp.float32))
    logits = logits + lb_ref[...]
    out_ref[0, :, :] = logits.astype(out_ref.dtype)


# ----------------------------------------------------------------------------
# Parameter construction (mirrors CNNNetwork4.__init__ shapes; PyTorch layouts
# are converted ONCE here so the kernel never transposes at runtime).
# ----------------------------------------------------------------------------
def init_network(key, spectrogram_height, spectrogram_width, output_class_number):
    keys = jax.random.split(key, len(_LAYER_SPECS) + 2)
    convs = []
    for li, (k, s, p, ci, co) in enumerate(_LAYER_SPECS):
        kw_, kb_, kg_, kbt_, km_, kv_ = jax.random.split(keys[li], 6)
        w_pt = 0.1 * jax.random.normal(kw_, (co, ci, k, k), jnp.float32)
        bias = 0.01 * jax.random.normal(kb_, (co,), jnp.float32)
        gamma = 1.0 + 0.1 * jax.random.normal(kg_, (co,), jnp.float32)
        beta = 0.1 * jax.random.normal(kbt_, (co,), jnp.float32)
        running_mean = 0.05 * jax.random.normal(km_, (co,), jnp.float32)
        running_var = 1.0 + 0.25 * jax.random.uniform(kv_, (co,), jnp.float32)
        eps = 1e-5
        # General BatchNorm2d(eval) folding with running statistics.
        scale = gamma / jnp.sqrt(running_var + eps)
        shift = beta + scale * (bias - running_mean)
        # PyTorch (Cout, Cin, kh, kw) -> tap-major matmul layout (kh*kw*Cin, Cout).
        wm = jnp.transpose(w_pt, (2, 3, 1, 0)).reshape(k * k * ci, co)
        w_dtype = jnp.float32 if ci == 1 else jnp.bfloat16   # Cin==1 layer skips MXU
        convs.append((wm.astype(w_dtype),
                      scale.reshape(1, co).astype(jnp.float32),
                      shift.reshape(1, co).astype(jnp.float32)))

    # Geometry after the convs + AvgPool2d(2, 2).
    h, w = spectrogram_height, spectrogram_width
    for (k, s, p, ci, co) in _LAYER_SPECS:
        h, w = _conv_out(h, k, s, p), _conv_out(w, k, s, p)
    hp, wp = h // 2, w // 2
    c_last = _LAYER_SPECS[-1][4]
    feat = c_last * hp * wp

    lw_pt = 0.05 * jax.random.normal(keys[-2], (output_class_number, feat), jnp.float32)
    lb = 0.01 * jax.random.normal(keys[-1], (output_class_number,), jnp.float32)
    # One-time row permutation: PyTorch flattens NCHW (c, h, w); the kernel
    # consumes NHWC (h, w, c).  Zero runtime cost.
    lw_nhwc = (lw_pt.reshape(output_class_number, c_last, hp, wp)
               .transpose(2, 3, 1, 0)
               .reshape(feat, output_class_number))
    return dict(convs=convs,
                linear_w=lw_nhwc.astype(jnp.bfloat16),
                linear_b=lb.reshape(1, output_class_number).astype(jnp.float32))


# ----------------------------------------------------------------------------
# Forward pass: a single pallas_call over the batch.
# ----------------------------------------------------------------------------
def cnn_network4_forward(params, x_nchw):
    n, cin, h, w = x_nchw.shape
    assert cin == 1
    # NCHW with C==1 -> NHWC is a pure (free) reshape.
    x = x_nchw.reshape(n, h, w, 1).astype(jnp.float32)

    # Static per-layer geometry: (k, stride, pad, ci, co, ho, wo, out_pad)
    layer_cfg = []
    hi, wi = h, w
    for li, (k, s, p, ci, co) in enumerate(_LAYER_SPECS):
        ho, wo = _conv_out(hi, k, s, p), _conv_out(wi, k, s, p)
        out_pad = _LAYER_SPECS[li + 1][2] if li + 1 < len(_LAYER_SPECS) else 0
        layer_cfg.append((k, s, p, ci, co, ho, wo, out_pad))
        hi, wi = ho, wo
    h4, w4 = hi, wi
    hp, wp = h4 // 2, w4 // 2
    assert hp >= 1 and wp >= 1, "spectrogram too small for this network"
    ncls = params["linear_b"].shape[-1]

    # VMEM scratch: zero-padded NHWC activation buffers, one per layer boundary.
    pad1 = _LAYER_SPECS[0][2]
    scratch = [pltpu.VMEM((h + 2 * pad1, w + 2 * pad1, 1), jnp.float32)]
    for (k, s, p, ci, co, ho, wo, op) in layer_cfg:
        scratch.append(pltpu.VMEM((ho + 2 * op, wo + 2 * op, co), jnp.float32))

    kernel = functools.partial(_cnn4_kernel,
                               layers=tuple(layer_cfg), pool=(hp, wp))

    def full_block(a):
        return pl.BlockSpec(a.shape, lambda i, _nd=a.ndim: (0,) * _nd)

    args = [x]
    in_specs = [pl.BlockSpec((1, h, w, 1), lambda i: (i, 0, 0, 0))]
    for (cw, cs, ct) in params["convs"]:
        args += [cw, cs, ct]
        in_specs += [full_block(cw), full_block(cs), full_block(ct)]
    args += [params["linear_w"], params["linear_b"]]
    in_specs += [full_block(params["linear_w"]), full_block(params["linear_b"])]

    out = pl.pallas_call(
        kernel,
        grid=(n,),
        in_specs=in_specs,
        out_specs=pl.BlockSpec((1, 1, ncls), lambda i: (i, 0, 0)),
        out_shape=jax.ShapeDtypeStruct((n, 1, ncls), jnp.float32),
        scratch_shapes=scratch,
        compiler_params=pltpu.CompilerParams(
            dimension_semantics=("parallel",),
            vmem_limit_bytes=32 * 1024 * 1024),
    )(*args)
    return out.reshape(n, ncls)


if __name__ == "__main__":
    key = jax.random.PRNGKey(0)
    k_param, k_input = jax.random.split(key)

    batch, height, width, num_classes = 2, 16, 16, 10
    params = init_network(k_param, height, width, num_classes)
    x = jax.random.normal(k_input, (batch, 1, height, width), jnp.float32)

    forward = jax.jit(cnn_network4_forward)
    logits = forward(params, x)
    jax.block_until_ready(logits)

    assert logits.shape == (batch, num_classes), logits.shape
    assert bool(jnp.all(jnp.isfinite(logits)))
    print("KERNEL_OK")
</pallas_src>

<mosaic_0001>
module attributes {stable_mosaic.version = 11 : i64} {
  func.func @_cnn4_kernel(%arg0: i32, %arg1: memref<1x16x16x1xf32, #tpu.memory_space<vmem>>, %arg2: memref<49x16xf32, #tpu.memory_space<vmem>>, %arg3: memref<1x16xf32, #tpu.memory_space<vmem>>, %arg4: memref<1x16xf32, #tpu.memory_space<vmem>>, %arg5: memref<400x32xbf16, #tpu.memory_space<vmem>>, %arg6: memref<1x32xf32, #tpu.memory_space<vmem>>, %arg7: memref<1x32xf32, #tpu.memory_space<vmem>>, %arg8: memref<288x64xbf16, #tpu.memory_space<vmem>>, %arg9: memref<1x64xf32, #tpu.memory_space<vmem>>, %arg10: memref<1x64xf32, #tpu.memory_space<vmem>>, %arg11: memref<576x128xbf16, #tpu.memory_space<vmem>>, %arg12: memref<1x128xf32, #tpu.memory_space<vmem>>, %arg13: memref<1x128xf32, #tpu.memory_space<vmem>>, %arg14: memref<512x10xbf16, #tpu.memory_space<vmem>>, %arg15: memref<1x10xf32, #tpu.memory_space<vmem>>, %arg16: memref<1x1x10xf32, #tpu.memory_space<vmem>>, %arg17: memref<22x22x1xf32, #tpu.memory_space<vmem>>, %arg18: memref<12x12x16xf32, #tpu.memory_space<vmem>>, %arg19: memref<6x6x32xf32, #tpu.memory_space<vmem>>, %arg20: memref<6x6x64xf32, #tpu.memory_space<vmem>>, %arg21: memref<4x4x128xf32, #tpu.memory_space<vmem>>) attributes {dimension_semantics = [#tpu.dimension_semantics<parallel>], iteration_bounds = array<i64: 2>, scalar_prefetch = 0 : i64, scratch_operands = 5 : i64, tpu.core_type = #tpu.core_type<tc>, window_params = [{transform_indices = @transform_0, window_bounds = array<i64: 1, 16, 16, 1>}, {pipeline_mode = #tpu.pipeline_mode<synchronous>, transform_indices = @transform_1, window_bounds = array<i64: 49, 16>}, {pipeline_mode = #tpu.pipeline_mode<synchronous>, transform_indices = @transform_2, window_bounds = array<i64: 1, 16>}, {pipeline_mode = #tpu.pipeline_mode<synchronous>, transform_indices = @transform_3, window_bounds = array<i64: 1, 16>}, {pipeline_mode = #tpu.pipeline_mode<synchronous>, transform_indices = @transform_4, window_bounds = array<i64: 400, 32>}, {pipeline_mode = #tpu.pipeline_mode<synchronous>, transform_indices = @transform_5, window_bounds = array<i64: 1, 32>}, {pipeline_mode = #tpu.pipeline_mode<synchronous>, transform_indices = @transform_6, window_bounds = array<i64: 1, 32>}, {pipeline_mode = #tpu.pipeline_mode<synchronous>, transform_indices = @transform_7, window_bounds = array<i64: 288, 64>}, {pipeline_mode = #tpu.pipeline_mode<synchronous>, transform_indices = @transform_8, window_bounds = array<i64: 1, 64>}, {pipeline_mode = #tpu.pipeline_mode<synchronous>, transform_indices = @transform_9, window_bounds = array<i64: 1, 64>}, {pipeline_mode = #tpu.pipeline_mode<synchronous>, transform_indices = @transform_10, window_bounds = array<i64: 576, 128>}, {pipeline_mode = #tpu.pipeline_mode<synchronous>, transform_indices = @transform_11, window_bounds = array<i64: 1, 128>}, {pipeline_mode = #tpu.pipeline_mode<synchronous>, transform_indices = @transform_12, window_bounds = array<i64: 1, 128>}, {pipeline_mode = #tpu.pipeline_mode<synchronous>, transform_indices = @transform_13, window_bounds = array<i64: 512, 10>}, {pipeline_mode = #tpu.pipeline_mode<synchronous>, transform_indices = @transform_14, window_bounds = array<i64: 1, 10>}, {transform_indices = @transform_15, window_bounds = array<i64: 1, 1, 10>}]} {
    %cst = arith.constant 0.000000e+00 : f32
    %0 = vector.broadcast %cst : f32 to vector<22x22x1xf32>
    %c0 = arith.constant 0 : index
    %c0_0 = arith.constant 0 : index
    %c0_1 = arith.constant 0 : index
    %1 = vector.load %arg17[%c0, %c0_0, %c0_1] : memref<22x22x1xf32, #tpu.memory_space<vmem>>, vector<22x22x1xf32>
    tpu.vector_store %arg17[%c0, %c0_0, %c0_1], %0 {strides = array<i32>} : memref<22x22x1xf32, #tpu.memory_space<vmem>>, vector<22x22x1xf32>,
    %cst_2 = arith.constant 0.000000e+00 : f32
    %2 = vector.broadcast %cst_2 : f32 to vector<12x12x16xf32>
    %c0_3 = arith.constant 0 : index
    %c0_4 = arith.constant 0 : index
    %c0_5 = arith.constant 0 : index
    %3 = vector.load %arg18[%c0_3, %c0_4, %c0_5] : memref<12x12x16xf32, #tpu.memory_space<vmem>>, vector<12x12x16xf32>
    tpu.vector_store %arg18[%c0_3, %c0_4, %c0_5], %2 {strides = array<i32>} : memref<12x12x16xf32, #tpu.memory_space<vmem>>, vector<12x12x16xf32>,
    %cst_6 = arith.constant 0.000000e+00 : f32
    %4 = vector.broadcast %cst_6 : f32 to vector<6x6x32xf32>
    %c0_7 = arith.constant 0 : index
    %c0_8 = arith.constant 0 : index
    %c0_9 = arith.constant 0 : index
    %5 = vector.load %arg19[%c0_7, %c0_8, %c0_9] : memref<6x6x32xf32, #tpu.memory_space<vmem>>, vector<6x6x32xf32>
    tpu.vector_store %arg19[%c0_7, %c0_8, %c0_9], %4 {strides = array<i32>} : memref<6x6x32xf32, #tpu.memory_space<vmem>>, vector<6x6x32xf32>,
    %cst_10 = arith.constant 0.000000e+00 : f32
    %6 = vector.broadcast %cst_10 : f32 to vector<6x6x64xf32>
    %c0_11 = arith.constant 0 : index
    %c0_12 = arith.constant 0 : index
    %c0_13 = arith.constant 0 : index
    %7 = vector.load %arg20[%c0_11, %c0_12, %c0_13] : memref<6x6x64xf32, #tpu.memory_space<vmem>>, vector<6x6x64xf32>
    tpu.vector_store %arg20[%c0_11, %c0_12, %c0_13], %6 {strides = array<i32>} : memref<6x6x64xf32, #tpu.memory_space<vmem>>, vector<6x6x64xf32>,
    %c0_14 = arith.constant 0 : index
    %c0_15 = arith.constant 0 : index
    %c0_16 = arith.constant 0 : index
    %c0_17 = arith.constant 0 : index
    %8 = vector.load %arg1[%c0_14, %c0_15, %c0_16, %c0_17] : memref<1x16x16x1xf32, #tpu.memory_space<vmem>>, vector<1x16x16x1xf32>
    %9 = vector.shape_cast %8 : vector<1x16x16x1xf32> to vector<16x16x1xf32>
    %c3 = arith.constant 3 : index
    %c3_18 = arith.constant 3 : index
    %c0_19 = arith.constant 0 : index
    %10 = vector.load %arg17[%c3, %c3_18, %c0_19] : memref<22x22x1xf32, #tpu.memory_space<vmem>>, vector<16x16x1xf32>
    tpu.vector_store %arg17[%c3, %c3_18, %c0_19], %9 {strides = array<i32>} : memref<22x22x1xf32, #tpu.memory_space<vmem>>, vector<16x16x1xf32>,
    %c0_20 = arith.constant 0 : index
    %c0_21 = arith.constant 0 : index
    %11 = vector.load %arg3[%c0_20, %c0_21] : memref<1x16xf32, #tpu.memory_space<vmem>>, vector<1x16xf32>
    %c0_22 = arith.constant 0 : index
    %c0_23 = arith.constant 0 : index
    %12 = vector.load %arg4[%c0_22, %c0_23] : memref<1x16xf32, #tpu.memory_space<vmem>>, vector<1x16xf32>
    %c0_i32 = arith.constant 0 : i32
    %c8_i32 = arith.constant 8 : i32
    %13 = arith.addi %c0_i32, %c8_i32 : i32
    %c1_i32 = arith.constant 1 : i32
    scf.for %arg22 = %c0_i32 to %13 step %c1_i32  : i32 {
      %cst_57 = arith.constant 0.000000e+00 : f32
      %31 = vector.broadcast %cst_57 : f32 to vector<8x16xf32>
      %c2_i32_58 = arith.constant 2 : i32
      %32 = arith.muli %arg22, %c2_i32_58 : i32
      %c0_i32_59 = arith.constant 0 : i32
      %33 = arith.addi %32, %c0_i32_59 : i32
      %34 = arith.index_cast %33 : i32 to index
      %c0_60 = arith.constant 0 : index
      %c0_61 = arith.constant 0 : index
      %35 = tpu.strided_load %arg17[%34, %c0_60, %c0_61] {strides = array<i32: 1, 2, 1>} : memref<22x22x1xf32, #tpu.memory_space<vmem>>, vector<1x8x1xf32>
      %36 = vector.shape_cast %35 : vector<1x8x1xf32> to vector<8x1xf32>
      %c0_62 = arith.constant 0 : index
      %c0_63 = arith.constant 0 : index
      %37 = vector.load %arg2[%c0_62, %c0_63] : memref<49x16xf32, #tpu.memory_space<vmem>>, vector<1x16xf32>
      %38 = vector.broadcast %36 : vector<8x1xf32> to vector<8x16xf32>
      %39 = vector.broadcast %37 : vector<1x16xf32> to vector<8x16xf32>
      %40 = arith.mulf %38, %39 : vector<8x16xf32>
      %41 = arith.addf %31, %40 : vector<8x16xf32>
      %42 = arith.index_cast %33 : i32 to index
      %c1 = arith.constant 1 : index
      %c0_64 = arith.constant 0 : index
      %43 = tpu.strided_load %arg17[%42, %c1, %c0_64] {strides = array<i32: 1, 2, 1>} : memref<22x22x1xf32, #tpu.memory_space<vmem>>, vector<1x8x1xf32>
      %44 = vector.shape_cast %43 : vector<1x8x1xf32> to vector<8x1xf32>
      %c1_65 = arith.constant 1 : index
      %c0_66 = arith.constant 0 : index
      %45 = vector.load %arg2[%c1_65, %c0_66] : memref<49x16xf32, #tpu.memory_space<vmem>>, vector<1x16xf32>
      %46 = vector.broadcast %44 : vector<8x1xf32> to vector<8x16xf32>
      %47 = vector.broadcast %45 : vector<1x16xf32> to vector<8x16xf32>
      %48 = arith.mulf %46, %47 : vector<8x16xf32>
      %49 = arith.addf %41, %48 : vector<8x16xf32>
      %50 = arith.index_cast %33 : i32 to index
      %c2 = arith.constant 2 : index
      %c0_67 = arith.constant 0 : index
      %51 = tpu.strided_load %arg17[%50, %c2, %c0_67] {strides = array<i32: 1, 2, 1>} : memref<22x22x1xf32, #tpu.memory_space<vmem>>, vector<1x8x1xf32>
      %52 = vector.shape_cast %51 : vector<1x8x1xf32> to vector<8x1xf32>
      %c2_68 = arith.constant 2 : index
      %c0_69 = arith.constant 0 : index
      %53 = vector.load %arg2[%c2_68, %c0_69] : memref<49x16xf32, #tpu.memory_space<vmem>>, vector<1x16xf32>
      %54 = vector.broadcast %52 : vector<8x1xf32> to vector<8x16xf32>
      %55 = vector.broadcast %53 : vector<1x16xf32> to vector<8x16xf32>
      %56 = arith.mulf %54, %55 : vector<8x16xf32>
      %57 = arith.addf %49, %56 : vector<8x16xf32>
      %58 = arith.index_cast %33 : i32 to index
      %c3_70 = arith.constant 3 : index
      %c0_71 = arith.constant 0 : index
      %59 = tpu.strided_load %arg17[%58, %c3_70, %c0_71] {strides = array<i32: 1, 2, 1>} : memref<22x22x1xf32, #tpu.memory_space<vmem>>, vector<1x8x1xf32>
      %60 = vector.shape_cast %59 : vector<1x8x1xf32> to vector<8x1xf32>
      %c3_72 = arith.constant 3 : index
      %c0_73 = arith.constant 0 : index
      %61 = vector.load %arg2[%c3_72, %c0_73] : memref<49x16xf32, #tpu.memory_space<vmem>>, vector<1x16xf32>
      %62 = vector.broadcast %60 : vector<8x1xf32> to vector<8x16xf32>
      %63 = vector.broadcast %61 : vector<1x16xf32> to vector<8x16xf32>
      %64 = arith.mulf %62, %63 : vector<8x16xf32>
      %65 = arith.addf %57, %64 : vector<8x16xf32>
      %66 = arith.index_cast %33 : i32 to index
      %c4 = arith.constant 4 : index
      %c0_74 = arith.constant 0 : index
      %67 = tpu.strided_load %arg17[%66, %c4, %c0_74] {strides = array<i32: 1, 2, 1>} : memref<22x22x1xf32, #tpu.memory_space<vmem>>, vector<1x8x1xf32>
      %68 = vector.shape_cast %67 : vector<1x8x1xf32> to vector<8x1xf32>
      %c4_75 = arith.constant 4 : index
      %c0_76 = arith.constant 0 : index
      %69 = vector.load %arg2[%c4_75, %c0_76] : memref<49x16xf32, #tpu.memory_space<vmem>>, vector<1x16xf32>
      %70 = vector.broadcast %68 : vector<8x1xf32> to vector<8x16xf32>
      %71 = vector.broadcast %69 : vector<1x16xf32> to vector<8x16xf32>
      %72 = arith.mulf %70, %71 : vector<8x16xf32>
      %73 = arith.addf %65, %72 : vector<8x16xf32>
      %74 = arith.index_cast %33 : i32 to index
      %c5 = arith.constant 5 : index
      %c0_77 = arith.constant 0 : index
      %75 = tpu.strided_load %arg17[%74, %c5, %c0_77] {strides = array<i32: 1, 2, 1>} : memref<22x22x1xf32, #tpu.memory_space<vmem>>, vector<1x8x1xf32>
      %76 = vector.shape_cast %75 : vector<1x8x1xf32> to vector<8x1xf32>
      %c5_78 = arith.constant 5 : index
      %c0_79 = arith.constant 0 : index
      %77 = vector.load %arg2[%c5_78, %c0_79] : memref<49x16xf32, #tpu.memory_space<vmem>>, vector<1x16xf32>
      %78 = vector.broadcast %76 : vector<8x1xf32> to vector<8x16xf32>
      %79 = vector.broadcast %77 : vector<1x16xf32> to vector<8x16xf32>
      %80 = arith.mulf %78, %79 : vector<8x16xf32>
      %81 = arith.addf %73, %80 : vector<8x16xf32>
      %82 = arith.index_cast %33 : i32 to index
      %c6 = arith.constant 6 : index
      %c0_80 = arith.constant 0 : index
      %83 = tpu.strided_load %arg17[%82, %c6, %c0_80] {strides = array<i32: 1, 2, 1>} : memref<22x22x1xf32, #tpu.memory_space<vmem>>, vector<1x8x1xf32>
      %84 = vector.shape_cast %83 : vector<1x8x1xf32> to vector<8x1xf32>
      %c6_81 = arith.constant 6 : index
      %c0_82 = arith.constant 0 : index
      %85 = vector.load %arg2[%c6_81, %c0_82] : memref<49x16xf32, #tpu.memory_space<vmem>>, vector<1x16xf32>
      %86 = vector.broadcast %84 : vector<8x1xf32> to vector<8x16xf32>
      %87 = vector.broadcast %85 : vector<1x16xf32> to vector<8x16xf32>
      %88 = arith.mulf %86, %87 : vector<8x16xf32>
      %89 = arith.addf %81, %88 : vector<8x16xf32>
      %c2_i32_83 = arith.constant 2 : i32
      %90 = arith.muli %arg22, %c2_i32_83 : i32
      %c1_i32_84 = arith.constant 1 : i32
      %91 = arith.addi %90, %c1_i32_84 : i32
      %92 = arith.index_cast %91 : i32 to index
      %c0_85 = arith.constant 0 : index
      %c0_86 = arith.constant 0 : index
      %93 = tpu.strided_load %arg17[%92, %c0_85, %c0_86] {strides = array<i32: 1, 2, 1>} : memref<22x22x1xf32, #tpu.memory_space<vmem>>, vector<1x8x1xf32>
      %94 = vector.shape_cast %93 : vector<1x8x1xf32> to vector<8x1xf32>
      %c7 = arith.constant 7 : index
      %c0_87 = arith.constant 0 : index
      %95 = vector.load %arg2[%c7, %c0_87] : memref<49x16xf32, #tpu.memory_space<vmem>>, vector<1x16xf32>
      %96 = vector.broadcast %94 : vector<8x1xf32> to vector<8x16xf32>
      %97 = vector.broadcast %95 : vector<1x16xf32> to vector<8x16xf32>
      %98 = arith.mulf %96, %97 : vector<8x16xf32>
      %99 = arith.addf %89, %98 : vector<8x16xf32>
      %100 = arith.index_cast %91 : i32 to index
      %c1_88 = arith.constant 1 : index
      %c0_89 = arith.constant 0 : index
      %101 = tpu.strided_load %arg17[%100, %c1_88, %c0_89] {strides = array<i32: 1, 2, 1>} : memref<22x22x1xf32, #tpu.memory_space<vmem>>, vector<1x8x1xf32>
      %102 = vector.shape_cast %101 : vector<1x8x1xf32> to vector<8x1xf32>
      %c8 = arith.constant 8 : index
      %c0_90 = arith.constant 0 : index
      %103 = vector.load %arg2[%c8, %c0_90] : memref<49x16xf32, #tpu.memory_space<vmem>>, vector<1x16xf32>
      %104 = vector.broadcast %102 : vector<8x1xf32> to vector<8x16xf32>
      %105 = vector.broadcast %103 : vector<1x16xf32> to vector<8x16xf32>
      %106 = arith.mulf %104, %105 : vector<8x16xf32>
      %107 = arith.addf %99, %106 : vector<8x16xf32>
      %108 = arith.index_cast %91 : i32 to index
      %c2_91 = arith.constant 2 : index
      %c0_92 = arith.constant 0 : index
      %109 = tpu.strided_load %arg17[%108, %c2_91, %c0_92] {strides = array<i32: 1, 2, 1>} : memref<22x22x1xf32, #tpu.memory_space<vmem>>, vector<1x8x1xf32>
      %110 = vector.shape_cast %109 : vector<1x8x1xf32> to vector<8x1xf32>
      %c9 = arith.constant 9 : index
      %c0_93 = arith.constant 0 : index
      %111 = vector.load %arg2[%c9, %c0_93] : memref<49x16xf32, #tpu.memory_space<vmem>>, vector<1x16xf32>
      %112 = vector.broadcast %110 : vector<8x1xf32> to vector<8x16xf32>
      %113 = vector.broadcast %111 : vector<1x16xf32> to vector<8x16xf32>
      %114 = arith.mulf %112, %113 : vector<8x16xf32>
      %115 = arith.addf %107, %114 : vector<8x16xf32>
      %116 = arith.index_cast %91 : i32 to index
      %c3_94 = arith.constant 3 : index
      %c0_95 = arith.constant 0 : index
      %117 = tpu.strided_load %arg17[%116, %c3_94, %c0_95] {strides = array<i32: 1, 2, 1>} : memref<22x22x1xf32, #tpu.memory_space<vmem>>, vector<1x8x1xf32>
      %118 = vector.shape_cast %117 : vector<1x8x1xf32> to vector<8x1xf32>
      %c10 = arith.constant 10 : index
      %c0_96 = arith.constant 0 : index
      %119 = vector.load %arg2[%c10, %c0_96] : memref<49x16xf32, #tpu.memory_space<vmem>>, vector<1x16xf32>
      %120 = vector.broadcast %118 : vector<8x1xf32> to vector<8x16xf32>
      %121 = vector.broadcast %119 : vector<1x16xf32> to vector<8x16xf32>
      %122 = arith.mulf %120, %121 : vector<8x16xf32>
      %123 = arith.addf %115, %122 : vector<8x16xf32>
      %124 = arith.index_cast %91 : i32 to index
      %c4_97 = arith.constant 4 : index
      %c0_98 = arith.constant 0 : index
      %125 = tpu.strided_load %arg17[%124, %c4_97, %c0_98] {strides = array<i32: 1, 2, 1>} : memref<22x22x1xf32, #tpu.memory_space<vmem>>, vector<1x8x1xf32>
      %126 = vector.shape_cast %125 : vector<1x8x1xf32> to vector<8x1xf32>
      %c11 = arith.constant 11 : index
      %c0_99 = arith.constant 0 : index
      %127 = vector.load %arg2[%c11, %c0_99] : memref<49x16xf32, #tpu.memory_space<vmem>>, vector<1x16xf32>
      %128 = vector.broadcast %126 : vector<8x1xf32> to vector<8x16xf32>
      %129 = vector.broadcast %127 : vector<1x16xf32> to vector<8x16xf32>
      %130 = arith.mulf %128, %129 : vector<8x16xf32>
      %131 = arith.addf %123, %130 : vector<8x16xf32>
      %132 = arith.index_cast %91 : i32 to index
      %c5_100 = arith.constant 5 : index
      %c0_101 = arith.constant 0 : index
      %133 = tpu.strided_load %arg17[%132, %c5_100, %c0_101] {strides = array<i32: 1, 2, 1>} : memref<22x22x1xf32, #tpu.memory_space<vmem>>, vector<1x8x1xf32>
      %134 = vector.shape_cast %133 : vector<1x8x1xf32> to vector<8x1xf32>
      %c12 = arith.constant 12 : index
      %c0_102 = arith.constant 0 : index
      %135 = vector.load %arg2[%c12, %c0_102] : memref<49x16xf32, #tpu.memory_space<vmem>>, vector<1x16xf32>
      %136 = vector.broadcast %134 : vector<8x1xf32> to vector<8x16xf32>
      %137 = vector.broadcast %135 : vector<1x16xf32> to vector<8x16xf32>
      %138 = arith.mulf %136, %137 : vector<8x16xf32>
      %139 = arith.addf %131, %138 : vector<8x16xf32>
      %140 = arith.index_cast %91 : i32 to index
      %c6_103 = arith.constant 6 : index
      %c0_104 = arith.constant 0 : index
      %141 = tpu.strided_load %arg17[%140, %c6_103, %c0_104] {strides = array<i32: 1, 2, 1>} : memref<22x22x1xf32, #tpu.memory_space<vmem>>, vector<1x8x1xf32>
      %142 = vector.shape_cast %141 : vector<1x8x1xf32> to vector<8x1xf32>
      %c13 = arith.constant 13 : index
      %c0_105 = arith.constant 0 : index
      %143 = vector.load %arg2[%c13, %c0_105] : memref<49x16xf32, #tpu.memory_space<vmem>>, vector<1x16xf32>
      %144 = vector.broadcast %142 : vector<8x1xf32> to vector<8x16xf32>
      %145 = vector.broadcast %143 : vector<1x16xf32> to vector<8x16xf32>
      %146 = arith.mulf %144, %145 : vector<8x16xf32>
      %147 = arith.addf %139, %146 : vector<8x16xf32>
      %c2_i32_106 = arith.constant 2 : i32
      %148 = arith.muli %arg22, %c2_i32_106 : i32
      %c2_i32_107 = arith.constant 2 : i32
      %149 = arith.addi %148, %c2_i32_107 : i32
      %150 = arith.index_cast %149 : i32 to index
      %c0_108 = arith.constant 0 : index
      %c0_109 = arith.constant 0 : index
      %151 = tpu.strided_load %arg17[%150, %c0_108, %c0_109] {strides = array<i32: 1, 2, 1>} : memref<22x22x1xf32, #tpu.memory_space<vmem>>, vector<1x8x1xf32>
      %152 = vector.shape_cast %151 : vector<1x8x1xf32> to vector<8x1xf32>
      %c14 = arith.constant 14 : index
      %c0_110 = arith.constant 0 : index
      %153 = vector.load %arg2[%c14, %c0_110] : memref<49x16xf32, #tpu.memory_space<vmem>>, vector<1x16xf32>
      %154 = vector.broadcast %152 : vector<8x1xf32> to vector<8x16xf32>
      %155 = vector.broadcast %153 : vector<1x16xf32> to vector<8x16xf32>
      %156 = arith.mulf %154, %155 : vector<8x16xf32>
      %157 = arith.addf %147, %156 : vector<8x16xf32>
      %158 = arith.index_cast %149 : i32 to index
      %c1_111 = arith.constant 1 : index
      %c0_112 = arith.constant 0 : index
      %159 = tpu.strided_load %arg17[%158, %c1_111, %c0_112] {strides = array<i32: 1, 2, 1>} : memref<22x22x1xf32, #tpu.memory_space<vmem>>, vector<1x8x1xf32>
      %160 = vector.shape_cast %159 : vector<1x8x1xf32> to vector<8x1xf32>
      %c15 = arith.constant 15 : index
      %c0_113 = arith.constant 0 : index
      %161 = vector.load %arg2[%c15, %c0_113] : memref<49x16xf32, #tpu.memory_space<vmem>>, vector<1x16xf32>
      %162 = vector.broadcast %160 : vector<8x1xf32> to vector<8x16xf32>
      %163 = vector.broadcast %161 : vector<1x16xf32> to vector<8x16xf32>
      %164 = arith.mulf %162, %163 : vector<8x16xf32>
      %165 = arith.addf %157, %164 : vector<8x16xf32>
      %166 = arith.index_cast %149 : i32 to index
      %c2_114 = arith.constant 2 : index
      %c0_115 = arith.constant 0 : index
      %167 = tpu.strided_load %arg17[%166, %c2_114, %c0_115] {strides = array<i32: 1, 2, 1>} : memref<22x22x1xf32, #tpu.memory_space<vmem>>, vector<1x8x1xf32>
      %168 = vector.shape_cast %167 : vector<1x8x1xf32> to vector<8x1xf32>
      %c16 = arith.constant 16 : index
      %c0_116 = arith.constant 0 : index
      %169 = vector.load %arg2[%c16, %c0_116] : memref<49x16xf32, #tpu.memory_space<vmem>>, vector<1x16xf32>
      %170 = vector.broadcast %168 : vector<8x1xf32> to vector<8x16xf32>
      %171 = vector.broadcast %169 : vector<1x16xf32> to vector<8x16xf32>
      %172 = arith.mulf %170, %171 : vector<8x16xf32>
      %173 = arith.addf %165, %172 : vector<8x16xf32>
      %174 = arith.index_cast %149 : i32 to index
      %c3_117 = arith.constant 3 : index
      %c0_118 = arith.constant 0 : index
      %175 = tpu.strided_load %arg17[%174, %c3_117, %c0_118] {strides = array<i32: 1, 2, 1>} : memref<22x22x1xf32, #tpu.memory_space<vmem>>, vector<1x8x1xf32>
      %176 = vector.shape_cast %175 : vector<1x8x1xf32> to vector<8x1xf32>
      %c17 = arith.constant 17 : index
      %c0_119 = arith.constant 0 : index
      %177 = vector.load %arg2[%c17, %c0_119] : memref<49x16xf32, #tpu.memory_space<vmem>>, vector<1x16xf32>
      %178 = vector.broadcast %176 : vector<8x1xf32> to vector<8x16xf32>
      %179 = vector.broadcast %177 : vector<1x16xf32> to vector<8x16xf32>
      %180 = arith.mulf %178, %179 : vector<8x16xf32>
      %181 = arith.addf %173, %180 : vector<8x16xf32>
      %182 = arith.index_cast %149 : i32 to index
      %c4_120 = arith.constant 4 : index
      %c0_121 = arith.constant 0 : index
      %183 = tpu.strided_load %arg17[%182, %c4_120, %c0_121] {strides = array<i32: 1, 2, 1>} : memref<22x22x1xf32, #tpu.memory_space<vmem>>, vector<1x8x1xf32>
      %184 = vector.shape_cast %183 : vector<1x8x1xf32> to vector<8x1xf32>
      %c18 = arith.constant 18 : index
      %c0_122 = arith.constant 0 : index
      %185 = vector.load %arg2[%c18, %c0_122] : memref<49x16xf32, #tpu.memory_space<vmem>>, vector<1x16xf32>
      %186 = vector.broadcast %184 : vector<8x1xf32> to vector<8x16xf32>
      %187 = vector.broadcast %185 : vector<1x16xf32> to vector<8x16xf32>
      %188 = arith.mulf %186, %187 : vector<8x16xf32>
      %189 = arith.addf %181, %188 : vector<8x16xf32>
      %190 = arith.index_cast %149 : i32 to index
      %c5_123 = arith.constant 5 : index
      %c0_124 = arith.constant 0 : index
      %191 = tpu.strided_load %arg17[%190, %c5_123, %c0_124] {strides = array<i32: 1, 2, 1>} : memref<22x22x1xf32, #tpu.memory_space<vmem>>, vector<1x8x1xf32>
      %192 = vector.shape_cast %191 : vector<1x8x1xf32> to vector<8x1xf32>
      %c19 = arith.constant 19 : index
      %c0_125 = arith.constant 0 : index
      %193 = vector.load %arg2[%c19, %c0_125] : memref<49x16xf32, #tpu.memory_space<vmem>>, vector<1x16xf32>
      %194 = vector.broadcast %192 : vector<8x1xf32> to vector<8x16xf32>
      %195 = vector.broadcast %193 : vector<1x16xf32> to vector<8x16xf32>
      %196 = arith.mulf %194, %195 : vector<8x16xf32>
      %197 = arith.addf %189, %196 : vector<8x16xf32>
      %198 = arith.index_cast %149 : i32 to index
      %c6_126 = arith.constant 6 : index
      %c0_127 = arith.constant 0 : index
      %199 = tpu.strided_load %arg17[%198, %c6_126, %c0_127] {strides = array<i32: 1, 2, 1>} : memref<22x22x1xf32, #tpu.memory_space<vmem>>, vector<1x8x1xf32>
      %200 = vector.shape_cast %199 : vector<1x8x1xf32> to vector<8x1xf32>
      %c20 = arith.constant 20 : index
      %c0_128 = arith.constant 0 : index
      %201 = vector.load %arg2[%c20, %c0_128] : memref<49x16xf32, #tpu.memory_space<vmem>>, vector<1x16xf32>
      %202 = vector.broadcast %200 : vector<8x1xf32> to vector<8x16xf32>
      %203 = vector.broadcast %201 : vector<1x16xf32> to vector<8x16xf32>
      %204 = arith.mulf %202, %203 : vector<8x16xf32>
      %205 = arith.addf %197, %204 : vector<8x16xf32>
      %c2_i32_129 = arith.constant 2 : i32
      %206 = arith.muli %arg22, %c2_i32_129 : i32
      %c3_i32 = arith.constant 3 : i32
      %207 = arith.addi %206, %c3_i32 : i32
      %208 = arith.index_cast %207 : i32 to index
      %c0_130 = arith.constant 0 : index
      %c0_131 = arith.constant 0 : index
      %209 = tpu.strided_load %arg17[%208, %c0_130, %c0_131] {strides = array<i32: 1, 2, 1>} : memref<22x22x1xf32, #tpu.memory_space<vmem>>, vector<1x8x1xf32>
      %210 = vector.shape_cast %209 : vector<1x8x1xf32> to vector<8x1xf32>
      %c21 = arith.constant 21 : index
      %c0_132 = arith.constant 0 : index
      %211 = vector.load %arg2[%c21, %c0_132] : memref<49x16xf32, #tpu.memory_space<vmem>>, vector<1x16xf32>
      %212 = vector.broadcast %210 : vector<8x1xf32> to vector<8x16xf32>
      %213 = vector.broadcast %211 : vector<1x16xf32> to vector<8x16xf32>
      %214 = arith.mulf %212, %213 : vector<8x16xf32>
      %215 = arith.addf %205, %214 : vector<8x16xf32>
      %216 = arith.index_cast %207 : i32 to index
      %c1_133 = arith.constant 1 : index
      %c0_134 = arith.constant 0 : index
      %217 = tpu.strided_load %arg17[%216, %c1_133, %c0_134] {strides = array<i32: 1, 2, 1>} : memref<22x22x1xf32, #tpu.memory_space<vmem>>, vector<1x8x1xf32>
      %218 = vector.shape_cast %217 : vector<1x8x1xf32> to vector<8x1xf32>
      %c22 = arith.constant 22 : index
      %c0_135 = arith.constant 0 : index
      %219 = vector.load %arg2[%c22, %c0_135] : memref<49x16xf32, #tpu.memory_space<vmem>>, vector<1x16xf32>
      %220 = vector.broadcast %218 : vector<8x1xf32> to vector<8x16xf32>
      %221 = vector.broadcast %219 : vector<1x16xf32> to vector<8x16xf32>
      %222 = arith.mulf %220, %221 : vector<8x16xf32>
      %223 = arith.addf %215, %222 : vector<8x16xf32>
      %224 = arith.index_cast %207 : i32 to index
      %c2_136 = arith.constant 2 : index
      %c0_137 = arith.constant 0 : index
      %225 = tpu.strided_load %arg17[%224, %c2_136, %c0_137] {strides = array<i32: 1, 2, 1>} : memref<22x22x1xf32, #tpu.memory_space<vmem>>, vector<1x8x1xf32>
      %226 = vector.shape_cast %225 : vector<1x8x1xf32> to vector<8x1xf32>
      %c23 = arith.constant 23 : index
      %c0_138 = arith.constant 0 : index
      %227 = vector.load %arg2[%c23, %c0_138] : memref<49x16xf32, #tpu.memory_space<vmem>>, vector<1x16xf32>
      %228 = vector.broadcast %226 : vector<8x1xf32> to vector<8x16xf32>
      %229 = vector.broadcast %227 : vector<1x16xf32> to vector<8x16xf32>
      %230 = arith.mulf %228, %229 : vector<8x16xf32>
      %231 = arith.addf %223, %230 : vector<8x16xf32>
      %232 = arith.index_cast %207 : i32 to index
      %c3_139 = arith.constant 3 : index
      %c0_140 = arith.constant 0 : index
      %233 = tpu.strided_load %arg17[%232, %c3_139, %c0_140] {strides = array<i32: 1, 2, 1>} : memref<22x22x1xf32, #tpu.memory_space<vmem>>, vector<1x8x1xf32>
      %234 = vector.shape_cast %233 : vector<1x8x1xf32> to vector<8x1xf32>
      %c24 = arith.constant 24 : index
      %c0_141 = arith.constant 0 : index
      %235 = vector.load %arg2[%c24, %c0_141] : memref<49x16xf32, #tpu.memory_space<vmem>>, vector<1x16xf32>
      %236 = vector.broadcast %234 : vector<8x1xf32> to vector<8x16xf32>
      %237 = vector.broadcast %235 : vector<1x16xf32> to vector<8x16xf32>
      %238 = arith.mulf %236, %237 : vector<8x16xf32>
      %239 = arith.addf %231, %238 : vector<8x16xf32>
      %240 = arith.index_cast %207 : i32 to index
      %c4_142 = arith.constant 4 : index
      %c0_143 = arith.constant 0 : index
      %241 = tpu.strided_load %arg17[%240, %c4_142, %c0_143] {strides = array<i32: 1, 2, 1>} : memref<22x22x1xf32, #tpu.memory_space<vmem>>, vector<1x8x1xf32>
      %242 = vector.shape_cast %241 : vector<1x8x1xf32> to vector<8x1xf32>
      %c25 = arith.constant 25 : index
      %c0_144 = arith.constant 0 : index
      %243 = vector.load %arg2[%c25, %c0_144] : memref<49x16xf32, #tpu.memory_space<vmem>>, vector<1x16xf32>
      %244 = vector.broadcast %242 : vector<8x1xf32> to vector<8x16xf32>
      %245 = vector.broadcast %243 : vector<1x16xf32> to vector<8x16xf32>
      %246 = arith.mulf %244, %245 : vector<8x16xf32>
      %247 = arith.addf %239, %246 : vector<8x16xf32>
      %248 = arith.index_cast %207 : i32 to index
      %c5_145 = arith.constant 5 : index
      %c0_146 = arith.constant 0 : index
      %249 = tpu.strided_load %arg17[%248, %c5_145, %c0_146] {strides = array<i32: 1, 2, 1>} : memref<22x22x1xf32, #tpu.memory_space<vmem>>, vector<1x8x1xf32>
      %250 = vector.shape_cast %249 : vector<1x8x1xf32> to vector<8x1xf32>
      %c26 = arith.constant 26 : index
      %c0_147 = arith.constant 0 : index
      %251 = vector.load %arg2[%c26, %c0_147] : memref<49x16xf32, #tpu.memory_space<vmem>>, vector<1x16xf32>
      %252 = vector.broadcast %250 : vector<8x1xf32> to vector<8x16xf32>
      %253 = vector.broadcast %251 : vector<1x16xf32> to vector<8x16xf32>
      %254 = arith.mulf %252, %253 : vector<8x16xf32>
      %255 = arith.addf %247, %254 : vector<8x16xf32>
      %256 = arith.index_cast %207 : i32 to index
      %c6_148 = arith.constant 6 : index
      %c0_149 = arith.constant 0 : index
      %257 = tpu.strided_load %arg17[%256, %c6_148, %c0_149] {strides = array<i32: 1, 2, 1>} : memref<22x22x1xf32, #tpu.memory_space<vmem>>, vector<1x8x1xf32>
      %258 = vector.shape_cast %257 : vector<1x8x1xf32> to vector<8x1xf32>
      %c27 = arith.constant 27 : index
      %c0_150 = arith.constant 0 : index
      %259 = vector.load %arg2[%c27, %c0_150] : memref<49x16xf32, #tpu.memory_space<vmem>>, vector<1x16xf32>
      %260 = vector.broadcast %258 : vector<8x1xf32> to vector<8x16xf32>
      %261 = vector.broadcast %259 : vector<1x16xf32> to vector<8x16xf32>
      %262 = arith.mulf %260, %261 : vector<8x16xf32>
      %263 = arith.addf %255, %262 : vector<8x16xf32>
      %c2_i32_151 = arith.constant 2 : i32
      %264 = arith.muli %arg22, %c2_i32_151 : i32
      %c4_i32_152 = arith.constant 4 : i32
      %265 = arith.addi %264, %c4_i32_152 : i32
      %266 = arith.index_cast %265 : i32 to index
      %c0_153 = arith.constant 0 : index
      %c0_154 = arith.constant 0 : index
      %267 = tpu.strided_load %arg17[%266, %c0_153, %c0_154] {strides = array<i32: 1, 2, 1>} : memref<22x22x1xf32, #tpu.memory_space<vmem>>, vector<1x8x1xf32>
      %268 = vector.shape_cast %267 : vector<1x8x1xf32> to vector<8x1xf32>
      %c28 = arith.constant 28 : index
      %c0_155 = arith.constant 0 : index
      %269 = vector.load %arg2[%c28, %c0_155] : memref<49x16xf32, #tpu.memory_space<vmem>>, vector<1x16xf32>
      %270 = vector.broadcast %268 : vector<8x1xf32> to vector<8x16xf32>
      %271 = vector.broadcast %269 : vector<1x16xf32> to vector<8x16xf32>
      %272 = arith.mulf %270, %271 : vector<8x16xf32>
      %273 = arith.addf %263, %272 : vector<8x16xf32>
      %274 = arith.index_cast %265 : i32 to index
      %c1_156 = arith.constant 1 : index
      %c0_157 = arith.constant 0 : index
      %275 = tpu.strided_load %arg17[%274, %c1_156, %c0_157] {strides = array<i32: 1, 2, 1>} : memref<22x22x1xf32, #tpu.memory_space<vmem>>, vector<1x8x1xf32>
      %276 = vector.shape_cast %275 : vector<1x8x1xf32> to vector<8x1xf32>
      %c29 = arith.constant 29 : index
      %c0_158 = arith.constant 0 : index
      %277 = vector.load %arg2[%c29, %c0_158] : memref<49x16xf32, #tpu.memory_space<vmem>>, vector<1x16xf32>
      %278 = vector.broadcast %276 : vector<8x1xf32> to vector<8x16xf32>
      %279 = vector.broadcast %277 : vector<1x16xf32> to vector<8x16xf32>
      %280 = arith.mulf %278, %279 : vector<8x16xf32>
      %281 = arith.addf %273, %280 : vector<8x16xf32>
      %282 = arith.index_cast %265 : i32 to index
      %c2_159 = arith.constant 2 : index
      %c0_160 = arith.constant 0 : index
      %283 = tpu.strided_load %arg17[%282, %c2_159, %c0_160] {strides = array<i32: 1, 2, 1>} : memref<22x22x1xf32, #tpu.memory_space<vmem>>, vector<1x8x1xf32>
      %284 = vector.shape_cast %283 : vector<1x8x1xf32> to vector<8x1xf32>
      %c30 = arith.constant 30 : index
      %c0_161 = arith.constant 0 : index
      %285 = vector.load %arg2[%c30, %c0_161] : memref<49x16xf32, #tpu.memory_space<vmem>>, vector<1x16xf32>
      %286 = vector.broadcast %284 : vector<8x1xf32> to vector<8x16xf32>
      %287 = vector.broadcast %285 : vector<1x16xf32> to vector<8x16xf32>
      %288 = arith.mulf %286, %287 : vector<8x16xf32>
      %289 = arith.addf %281, %288 : vector<8x16xf32>
      %290 = arith.index_cast %265 : i32 to index
      %c3_162 = arith.constant 3 : index
      %c0_163 = arith.constant 0 : index
      %291 = tpu.strided_load %arg17[%290, %c3_162, %c0_163] {strides = array<i32: 1, 2, 1>} : memref<22x22x1xf32, #tpu.memory_space<vmem>>, vector<1x8x1xf32>
      %292 = vector.shape_cast %291 : vector<1x8x1xf32> to vector<8x1xf32>
      %c31 = arith.constant 31 : index
      %c0_164 = arith.constant 0 : index
      %293 = vector.load %arg2[%c31, %c0_164] : memref<49x16xf32, #tpu.memory_space<vmem>>, vector<1x16xf32>
      %294 = vector.broadcast %292 : vector<8x1xf32> to vector<8x16xf32>
      %295 = vector.broadcast %293 : vector<1x16xf32> to vector<8x16xf32>
      %296 = arith.mulf %294, %295 : vector<8x16xf32>
      %297 = arith.addf %289, %296 : vector<8x16xf32>
      %298 = arith.index_cast %265 : i32 to index
      %c4_165 = arith.constant 4 : index
      %c0_166 = arith.constant 0 : index
      %299 = tpu.strided_load %arg17[%298, %c4_165, %c0_166] {strides = array<i32: 1, 2, 1>} : memref<22x22x1xf32, #tpu.memory_space<vmem>>, vector<1x8x1xf32>
      %300 = vector.shape_cast %299 : vector<1x8x1xf32> to vector<8x1xf32>
      %c32 = arith.constant 32 : index
      %c0_167 = arith.constant 0 : index
      %301 = vector.load %arg2[%c32, %c0_167] : memref<49x16xf32, #tpu.memory_space<vmem>>, vector<1x16xf32>
      %302 = vector.broadcast %300 : vector<8x1xf32> to vector<8x16xf32>
      %303 = vector.broadcast %301 : vector<1x16xf32> to vector<8x16xf32>
      %304 = arith.mulf %302, %303 : vector<8x16xf32>
      %305 = arith.addf %297, %304 : vector<8x16xf32>
      %306 = arith.index_cast %265 : i32 to index
      %c5_168 = arith.constant 5 : index
      %c0_169 = arith.constant 0 : index
      %307 = tpu.strided_load %arg17[%306, %c5_168, %c0_169] {strides = array<i32: 1, 2, 1>} : memref<22x22x1xf32, #tpu.memory_space<vmem>>, vector<1x8x1xf32>
      %308 = vector.shape_cast %307 : vector<1x8x1xf32> to vector<8x1xf32>
      %c33 = arith.constant 33 : index
      %c0_170 = arith.constant 0 : index
      %309 = vector.load %arg2[%c33, %c0_170] : memref<49x16xf32, #tpu.memory_space<vmem>>, vector<1x16xf32>
      %310 = vector.broadcast %308 : vector<8x1xf32> to vector<8x16xf32>
      %311 = vector.broadcast %309 : vector<1x16xf32> to vector<8x16xf32>
      %312 = arith.mulf %310, %311 : vector<8x16xf32>
      %313 = arith.addf %305, %312 : vector<8x16xf32>
      %314 = arith.index_cast %265 : i32 to index
      %c6_171 = arith.constant 6 : index
      %c0_172 = arith.constant 0 : index
      %315 = tpu.strided_load %arg17[%314, %c6_171, %c0_172] {strides = array<i32: 1, 2, 1>} : memref<22x22x1xf32, #tpu.memory_space<vmem>>, vector<1x8x1xf32>
      %316 = vector.shape_cast %315 : vector<1x8x1xf32> to vector<8x1xf32>
      %c34 = arith.constant 34 : index
      %c0_173 = arith.constant 0 : index
      %317 = vector.load %arg2[%c34, %c0_173] : memref<49x16xf32, #tpu.memory_space<vmem>>, vector<1x16xf32>
      %318 = vector.broadcast %316 : vector<8x1xf32> to vector<8x16xf32>
      %319 = vector.broadcast %317 : vector<1x16xf32> to vector<8x16xf32>
      %320 = arith.mulf %318, %319 : vector<8x16xf32>
      %321 = arith.addf %313, %320 : vector<8x16xf32>
      %c2_i32_174 = arith.constant 2 : i32
      %322 = arith.muli %arg22, %c2_i32_174 : i32
      %c5_i32 = arith.constant 5 : i32
      %323 = arith.addi %322, %c5_i32 : i32
      %324 = arith.index_cast %323 : i32 to index
      %c0_175 = arith.constant 0 : index
      %c0_176 = arith.constant 0 : index
      %325 = tpu.strided_load %arg17[%324, %c0_175, %c0_176] {strides = array<i32: 1, 2, 1>} : memref<22x22x1xf32, #tpu.memory_space<vmem>>, vector<1x8x1xf32>
      %326 = vector.shape_cast %325 : vector<1x8x1xf32> to vector<8x1xf32>
      %c35 = arith.constant 35 : index
      %c0_177 = arith.constant 0 : index
      %327 = vector.load %arg2[%c35, %c0_177] : memref<49x16xf32, #tpu.memory_space<vmem>>, vector<1x16xf32>
      %328 = vector.broadcast %326 : vector<8x1xf32> to vector<8x16xf32>
      %329 = vector.broadcast %327 : vector<1x16xf32> to vector<8x16xf32>
      %330 = arith.mulf %328, %329 : vector<8x16xf32>
      %331 = arith.addf %321, %330 : vector<8x16xf32>
      %332 = arith.index_cast %323 : i32 to index
      %c1_178 = arith.constant 1 : index
      %c0_179 = arith.constant 0 : index
      %333 = tpu.strided_load %arg17[%332, %c1_178, %c0_179] {strides = array<i32: 1, 2, 1>} : memref<22x22x1xf32, #tpu.memory_space<vmem>>, vector<1x8x1xf32>
      %334 = vector.shape_cast %333 : vector<1x8x1xf32> to vector<8x1xf32>
      %c36 = arith.constant 36 : index
      %c0_180 = arith.constant 0 : index
      %335 = vector.load %arg2[%c36, %c0_180] : memref<49x16xf32, #tpu.memory_space<vmem>>, vector<1x16xf32>
      %336 = vector.broadcast %334 : vector<8x1xf32> to vector<8x16xf32>
      %337 = vector.broadcast %335 : vector<1x16xf32> to vector<8x16xf32>
      %338 = arith.mulf %336, %337 : vector<8x16xf32>
      %339 = arith.addf %331, %338 : vector<8x16xf32>
      %340 = arith.index_cast %323 : i32 to index
      %c2_181 = arith.constant 2 : index
      %c0_182 = arith.constant 0 : index
      %341 = tpu.strided_load %arg17[%340, %c2_181, %c0_182] {strides = array<i32: 1, 2, 1>} : memref<22x22x1xf32, #tpu.memory_space<vmem>>, vector<1x8x1xf32>
      %342 = vector.shape_cast %341 : vector<1x8x1xf32> to vector<8x1xf32>
      %c37 = arith.constant 37 : index
      %c0_183 = arith.constant 0 : index
      %343 = vector.load %arg2[%c37, %c0_183] : memref<49x16xf32, #tpu.memory_space<vmem>>, vector<1x16xf32>
      %344 = vector.broadcast %342 : vector<8x1xf32> to vector<8x16xf32>
      %345 = vector.broadcast %343 : vector<1x16xf32> to vector<8x16xf32>
      %346 = arith.mulf %344, %345 : vector<8x16xf32>
      %347 = arith.addf %339, %346 : vector<8x16xf32>
      %348 = arith.index_cast %323 : i32 to index
      %c3_184 = arith.constant 3 : index
      %c0_185 = arith.constant 0 : index
      %349 = tpu.strided_load %arg17[%348, %c3_184, %c0_185] {strides = array<i32: 1, 2, 1>} : memref<22x22x1xf32, #tpu.memory_space<vmem>>, vector<1x8x1xf32>
      %350 = vector.shape_cast %349 : vector<1x8x1xf32> to vector<8x1xf32>
      %c38 = arith.constant 38 : index
      %c0_186 = arith.constant 0 : index
      %351 = vector.load %arg2[%c38, %c0_186] : memref<49x16xf32, #tpu.memory_space<vmem>>, vector<1x16xf32>
      %352 = vector.broadcast %350 : vector<8x1xf32> to vector<8x16xf32>
      %353 = vector.broadcast %351 : vector<1x16xf32> to vector<8x16xf32>
      %354 = arith.mulf %352, %353 : vector<8x16xf32>
      %355 = arith.addf %347, %354 : vector<8x16xf32>
      %356 = arith.index_cast %323 : i32 to index
      %c4_187 = arith.constant 4 : index
      %c0_188 = arith.constant 0 : index
      %357 = tpu.strided_load %arg17[%356, %c4_187, %c0_188] {strides = array<i32: 1, 2, 1>} : memref<22x22x1xf32, #tpu.memory_space<vmem>>, vector<1x8x1xf32>
      %358 = vector.shape_cast %357 : vector<1x8x1xf32> to vector<8x1xf32>
      %c39 = arith.constant 39 : index
      %c0_189 = arith.constant 0 : index
      %359 = vector.load %arg2[%c39, %c0_189] : memref<49x16xf32, #tpu.memory_space<vmem>>, vector<1x16xf32>
      %360 = vector.broadcast %358 : vector<8x1xf32> to vector<8x16xf32>
      %361 = vector.broadcast %359 : vector<1x16xf32> to vector<8x16xf32>
      %362 = arith.mulf %360, %361 : vector<8x16xf32>
      %363 = arith.addf %355, %362 : vector<8x16xf32>
      %364 = arith.index_cast %323 : i32 to index
      %c5_190 = arith.constant 5 : index
      %c0_191 = arith.constant 0 : index
      %365 = tpu.strided_load %arg17[%364, %c5_190, %c0_191] {strides = array<i32: 1, 2, 1>} : memref<22x22x1xf32, #tpu.memory_space<vmem>>, vector<1x8x1xf32>
      %366 = vector.shape_cast %365 : vector<1x8x1xf32> to vector<8x1xf32>
      %c40 = arith.constant 40 : index
      %c0_192 = arith.constant 0 : index
      %367 = vector.load %arg2[%c40, %c0_192] : memref<49x16xf32, #tpu.memory_space<vmem>>, vector<1x16xf32>
      %368 = vector.broadcast %366 : vector<8x1xf32> to vector<8x16xf32>
      %369 = vector.broadcast %367 : vector<1x16xf32> to vector<8x16xf32>
      %370 = arith.mulf %368, %369 : vector<8x16xf32>
      %371 = arith.addf %363, %370 : vector<8x16xf32>
      %372 = arith.index_cast %323 : i32 to index
      %c6_193 = arith.constant 6 : index
      %c0_194 = arith.constant 0 : index
      %373 = tpu.strided_load %arg17[%372, %c6_193, %c0_194] {strides = array<i32: 1, 2, 1>} : memref<22x22x1xf32, #tpu.memory_space<vmem>>, vector<1x8x1xf32>
      %374 = vector.shape_cast %373 : vector<1x8x1xf32> to vector<8x1xf32>
      %c41 = arith.constant 41 : index
      %c0_195 = arith.constant 0 : index
      %375 = vector.load %arg2[%c41, %c0_195] : memref<49x16xf32, #tpu.memory_space<vmem>>, vector<1x16xf32>
      %376 = vector.broadcast %374 : vector<8x1xf32> to vector<8x16xf32>
      %377 = vector.broadcast %375 : vector<1x16xf32> to vector<8x16xf32>
      %378 = arith.mulf %376, %377 : vector<8x16xf32>
      %379 = arith.addf %371, %378 : vector<8x16xf32>
      %c2_i32_196 = arith.constant 2 : i32
      %380 = arith.muli %arg22, %c2_i32_196 : i32
      %c6_i32 = arith.constant 6 : i32
      %381 = arith.addi %380, %c6_i32 : i32
      %382 = arith.index_cast %381 : i32 to index
      %c0_197 = arith.constant 0 : index
      %c0_198 = arith.constant 0 : index
      %383 = tpu.strided_load %arg17[%382, %c0_197, %c0_198] {strides = array<i32: 1, 2, 1>} : memref<22x22x1xf32, #tpu.memory_space<vmem>>, vector<1x8x1xf32>
      %384 = vector.shape_cast %383 : vector<1x8x1xf32> to vector<8x1xf32>
      %c42 = arith.constant 42 : index
      %c0_199 = arith.constant 0 : index
      %385 = vector.load %arg2[%c42, %c0_199] : memref<49x16xf32, #tpu.memory_space<vmem>>, vector<1x16xf32>
      %386 = vector.broadcast %384 : vector<8x1xf32> to vector<8x16xf32>
      %387 = vector.broadcast %385 : vector<1x16xf32> to vector<8x16xf32>
      %388 = arith.mulf %386, %387 : vector<8x16xf32>
      %389 = arith.addf %379, %388 : vector<8x16xf32>
      %390 = arith.index_cast %381 : i32 to index
      %c1_200 = arith.constant 1 : index
      %c0_201 = arith.constant 0 : index
      %391 = tpu.strided_load %arg17[%390, %c1_200, %c0_201] {strides = array<i32: 1, 2, 1>} : memref<22x22x1xf32, #tpu.memory_space<vmem>>, vector<1x8x1xf32>
      %392 = vector.shape_cast %391 : vector<1x8x1xf32> to vector<8x1xf32>
      %c43 = arith.constant 43 : index
      %c0_202 = arith.constant 0 : index
      %393 = vector.load %arg2[%c43, %c0_202] : memref<49x16xf32, #tpu.memory_space<vmem>>, vector<1x16xf32>
      %394 = vector.broadcast %392 : vector<8x1xf32> to vector<8x16xf32>
      %395 = vector.broadcast %393 : vector<1x16xf32> to vector<8x16xf32>
      %396 = arith.mulf %394, %395 : vector<8x16xf32>
      %397 = arith.addf %389, %396 : vector<8x16xf32>
      %398 = arith.index_cast %381 : i32 to index
      %c2_203 = arith.constant 2 : index
      %c0_204 = arith.constant 0 : index
      %399 = tpu.strided_load %arg17[%398, %c2_203, %c0_204] {strides = array<i32: 1, 2, 1>} : memref<22x22x1xf32, #tpu.memory_space<vmem>>, vector<1x8x1xf32>
      %400 = vector.shape_cast %399 : vector<1x8x1xf32> to vector<8x1xf32>
      %c44 = arith.constant 44 : index
      %c0_205 = arith.constant 0 : index
      %401 = vector.load %arg2[%c44, %c0_205] : memref<49x16xf32, #tpu.memory_space<vmem>>, vector<1x16xf32>
      %402 = vector.broadcast %400 : vector<8x1xf32> to vector<8x16xf32>
      %403 = vector.broadcast %401 : vector<1x16xf32> to vector<8x16xf32>
      %404 = arith.mulf %402, %403 : vector<8x16xf32>
      %405 = arith.addf %397, %404 : vector<8x16xf32>
      %406 = arith.index_cast %381 : i32 to index
      %c3_206 = arith.constant 3 : index
      %c0_207 = arith.constant 0 : index
      %407 = tpu.strided_load %arg17[%406, %c3_206, %c0_207] {strides = array<i32: 1, 2, 1>} : memref<22x22x1xf32, #tpu.memory_space<vmem>>, vector<1x8x1xf32>
      %408 = vector.shape_cast %407 : vector<1x8x1xf32> to vector<8x1xf32>
      %c45 = arith.constant 45 : index
      %c0_208 = arith.constant 0 : index
      %409 = vector.load %arg2[%c45, %c0_208] : memref<49x16xf32, #tpu.memory_space<vmem>>, vector<1x16xf32>
      %410 = vector.broadcast %408 : vector<8x1xf32> to vector<8x16xf32>
      %411 = vector.broadcast %409 : vector<1x16xf32> to vector<8x16xf32>
      %412 = arith.mulf %410, %411 : vector<8x16xf32>
      %413 = arith.addf %405, %412 : vector<8x16xf32>
      %414 = arith.index_cast %381 : i32 to index
      %c4_209 = arith.constant 4 : index
      %c0_210 = arith.constant 0 : index
      %415 = tpu.strided_load %arg17[%414, %c4_209, %c0_210] {strides = array<i32: 1, 2, 1>} : memref<22x22x1xf32, #tpu.memory_space<vmem>>, vector<1x8x1xf32>
      %416 = vector.shape_cast %415 : vector<1x8x1xf32> to vector<8x1xf32>
      %c46 = arith.constant 46 : index
      %c0_211 = arith.constant 0 : index
      %417 = vector.load %arg2[%c46, %c0_211] : memref<49x16xf32, #tpu.memory_space<vmem>>, vector<1x16xf32>
      %418 = vector.broadcast %416 : vector<8x1xf32> to vector<8x16xf32>
      %419 = vector.broadcast %417 : vector<1x16xf32> to vector<8x16xf32>
      %420 = arith.mulf %418, %419 : vector<8x16xf32>
      %421 = arith.addf %413, %420 : vector<8x16xf32>
      %422 = arith.index_cast %381 : i32 to index
      %c5_212 = arith.constant 5 : index
      %c0_213 = arith.constant 0 : index
      %423 = tpu.strided_load %arg17[%422, %c5_212, %c0_213] {strides = array<i32: 1, 2, 1>} : memref<22x22x1xf32, #tpu.memory_space<vmem>>, vector<1x8x1xf32>
      %424 = vector.shape_cast %423 : vector<1x8x1xf32> to vector<8x1xf32>
      %c47 = arith.constant 47 : index
      %c0_214 = arith.constant 0 : index
      %425 = vector.load %arg2[%c47, %c0_214] : memref<49x16xf32, #tpu.memory_space<vmem>>, vector<1x16xf32>
      %426 = vector.broadcast %424 : vector<8x1xf32> to vector<8x16xf32>
      %427 = vector.broadcast %425 : vector<1x16xf32> to vector<8x16xf32>
      %428 = arith.mulf %426, %427 : vector<8x16xf32>
      %429 = arith.addf %421, %428 : vector<8x16xf32>
      %430 = arith.index_cast %381 : i32 to index
      %c6_215 = arith.constant 6 : index
      %c0_216 = arith.constant 0 : index
      %431 = tpu.strided_load %arg17[%430, %c6_215, %c0_216] {strides = array<i32: 1, 2, 1>} : memref<22x22x1xf32, #tpu.memory_space<vmem>>, vector<1x8x1xf32>
      %432 = vector.shape_cast %431 : vector<1x8x1xf32> to vector<8x1xf32>
      %c48 = arith.constant 48 : index
      %c0_217 = arith.constant 0 : index
      %433 = vector.load %arg2[%c48, %c0_217] : memref<49x16xf32, #tpu.memory_space<vmem>>, vector<1x16xf32>
      %434 = vector.broadcast %432 : vector<8x1xf32> to vector<8x16xf32>
      %435 = vector.broadcast %433 : vector<1x16xf32> to vector<8x16xf32>
      %436 = arith.mulf %434, %435 : vector<8x16xf32>
      %437 = arith.addf %429, %436 : vector<8x16xf32>
      %438 = vector.broadcast %11 : vector<1x16xf32> to vector<8x16xf32>
      %439 = arith.mulf %437, %438 : vector<8x16xf32>
      %440 = vector.broadcast %12 : vector<1x16xf32> to vector<8x16xf32>
      %441 = arith.addf %439, %440 : vector<8x16xf32>
      %cst_218 = arith.constant 0.000000e+00 : f32
      %442 = vector.broadcast %cst_218 : f32 to vector<8x16xf32>
      %443 = arith.maximumf %441, %442 : vector<8x16xf32>
      %c2_i32_219 = arith.constant 2 : i32
      %444 = arith.addi %c2_i32_219, %arg22 : i32
      %445 = arith.index_cast %444 : i32 to index
      %c2_220 = arith.constant 2 : index
      %c0_221 = arith.constant 0 : index
      %446 = vector.load %arg18[%445, %c2_220, %c0_221] : memref<12x12x16xf32, #tpu.memory_space<vmem>>, vector<1x8x16xf32>
      %447 = vector.shape_cast %446 : vector<1x8x16xf32> to vector<8x16xf32>
      %448 = vector.shape_cast %443 : vector<8x16xf32> to vector<1x8x16xf32>
      tpu.vector_store %arg18[%445, %c2_220, %c0_221], %448 {strides = array<i32>} : memref<12x12x16xf32, #tpu.memory_space<vmem>>, vector<1x8x16xf32>,
    }
    %c8_i32_24 = arith.constant 8 : i32
    %c0_25 = arith.constant 0 : index
    %c0_26 = arith.constant 0 : index
    %14 = vector.load %arg6[%c0_25, %c0_26] : memref<1x32xf32, #tpu.memory_space<vmem>>, vector<1x32xf32>
    %c0_27 = arith.constant 0 : index
    %c0_28 = arith.constant 0 : index
    %15 = vector.load %arg7[%c0_27, %c0_28] : memref<1x32xf32, #tpu.memory_space<vmem>>, vector<1x32xf32>
    %c0_i32_29 = arith.constant 0 : i32
    %c4_i32 = arith.constant 4 : i32
    %16 = arith.addi %c0_i32_29, %c4_i32 : i32
    %c1_i32_30 = arith.constant 1 : i32
    scf.for %arg22 = %c0_i32_29 to %16 step %c1_i32_30  : i32 {
      %cst_57 = arith.constant 0.000000e+00 : f32
      %31 = vector.broadcast %cst_57 : f32 to vector<4x32xf32>
      %c2_i32_58 = arith.constant 2 : i32
      %32 = arith.muli %arg22, %c2_i32_58 : i32
      %c0_i32_59 = arith.constant 0 : i32
      %33 = arith.addi %32, %c0_i32_59 : i32
      %34 = arith.index_cast %33 : i32 to index
      %c0_60 = arith.constant 0 : index
      %c0_61 = arith.constant 0 : index
      %35 = tpu.strided_load %arg18[%34, %c0_60, %c0_61] {strides = array<i32: 1, 2, 1>} : memref<12x12x16xf32, #tpu.memory_space<vmem>>, vector<1x4x16xf32>
      %36 = vector.shape_cast %35 : vector<1x4x16xf32> to vector<4x16xf32>
      %c0_62 = arith.constant 0 : index
      %c0_63 = arith.constant 0 : index
      %37 = vector.load %arg5[%c0_62, %c0_63] : memref<400x32xbf16, #tpu.memory_space<vmem>>, vector<16x32xbf16>
      %38 = arith.truncf %36 : vector<4x16xf32> to vector<4x16xbf16>
      %cst_64 = arith.constant dense<0.000000e+00> : vector<4x32xf32>
      %39 = tpu.matmul %38, %37, %cst_64 {dimension_numbers = #tpu.dot_dimension_numbers<[1], [0], [0], [1], [0, 0, 1, 1], [], []>} : vector<4x16xbf16>, vector<16x32xbf16>, vector<4x32xf32> -> vector<4x32xf32>
      %40 = arith.addf %31, %39 : vector<4x32xf32>
      %41 = arith.index_cast %33 : i32 to index
      %c1 = arith.constant 1 : index
      %c0_65 = arith.constant 0 : index
      %42 = tpu.strided_load %arg18[%41, %c1, %c0_65] {strides = array<i32: 1, 2, 1>} : memref<12x12x16xf32, #tpu.memory_space<vmem>>, vector<1x4x16xf32>
      %43 = vector.shape_cast %42 : vector<1x4x16xf32> to vector<4x16xf32>
      %c16 = arith.constant 16 : index
      %c0_66 = arith.constant 0 : index
      %44 = vector.load %arg5[%c16, %c0_66] : memref<400x32xbf16, #tpu.memory_space<vmem>>, vector<16x32xbf16>
      %45 = arith.truncf %43 : vector<4x16xf32> to vector<4x16xbf16>
      %cst_67 = arith.constant dense<0.000000e+00> : vector<4x32xf32>
      %46 = tpu.matmul %45, %44, %cst_67 {dimension_numbers = #tpu.dot_dimension_numbers<[1], [0], [0], [1], [0, 0, 1, 1], [], []>} : vector<4x16xbf16>, vector<16x32xbf16>, vector<4x32xf32> -> vector<4x32xf32>
      %47 = arith.addf %40, %46 : vector<4x32xf32>
      %48 = arith.index_cast %33 : i32 to index
      %c2 = arith.constant 2 : index
      %c0_68 = arith.constant 0 : index
      %49 = tpu.strided_load %arg18[%48, %c2, %c0_68] {strides = array<i32: 1, 2, 1>} : memref<12x12x16xf32, #tpu.memory_space<vmem>>, vector<1x4x16xf32>
      %50 = vector.shape_cast %49 : vector<1x4x16xf32> to vector<4x16xf32>
      %c32 = arith.constant 32 : index
      %c0_69 = arith.constant 0 : index
      %51 = vector.load %arg5[%c32, %c0_69] : memref<400x32xbf16, #tpu.memory_space<vmem>>, vector<16x32xbf16>
      %52 = arith.truncf %50 : vector<4x16xf32> to vector<4x16xbf16>
      %cst_70 = arith.constant dense<0.000000e+00> : vector<4x32xf32>
      %53 = tpu.matmul %52, %51, %cst_70 {dimension_numbers = #tpu.dot_dimension_numbers<[1], [0], [0], [1], [0, 0, 1, 1], [], []>} : vector<4x16xbf16>, vector<16x32xbf16>, vector<4x32xf32> -> vector<4x32xf32>
      %54 = arith.addf %47, %53 : vector<4x32xf32>
      %55 = arith.index_cast %33 : i32 to index
      %c3_71 = arith.constant 3 : index
      %c0_72 = arith.constant 0 : index
      %56 = tpu.strided_load %arg18[%55, %c3_71, %c0_72] {strides = array<i32: 1, 2, 1>} : memref<12x12x16xf32, #tpu.memory_space<vmem>>, vector<1x4x16xf32>
      %57 = vector.shape_cast %56 : vector<1x4x16xf32> to vector<4x16xf32>
      %c48 = arith.constant 48 : index
      %c0_73 = arith.constant 0 : index
      %58 = vector.load %arg5[%c48, %c0_73] : memref<400x32xbf16, #tpu.memory_space<vmem>>, vector<16x32xbf16>
      %59 = arith.truncf %57 : vector<4x16xf32> to vector<4x16xbf16>
      %cst_74 = arith.constant dense<0.000000e+00> : vector<4x32xf32>
      %60 = tpu.matmul %59, %58, %cst_74 {dimension_numbers = #tpu.dot_dimension_numbers<[1], [0], [0], [1], [0, 0, 1, 1], [], []>} : vector<4x16xbf16>, vector<16x32xbf16>, vector<4x32xf32> -> vector<4x32xf32>
      %61 = arith.addf %54, %60 : vector<4x32xf32>
      %62 = arith.index_cast %33 : i32 to index
      %c4 = arith.constant 4 : index
      %c0_75 = arith.constant 0 : index
      %63 = tpu.strided_load %arg18[%62, %c4, %c0_75] {strides = array<i32: 1, 2, 1>} : memref<12x12x16xf32, #tpu.memory_space<vmem>>, vector<1x4x16xf32>
      %64 = vector.shape_cast %63 : vector<1x4x16xf32> to vector<4x16xf32>
      %c64 = arith.constant 64 : index
      %c0_76 = arith.constant 0 : index
      %65 = vector.load %arg5[%c64, %c0_76] : memref<400x32xbf16, #tpu.memory_space<vmem>>, vector<16x32xbf16>
      %66 = arith.truncf %64 : vector<4x16xf32> to vector<4x16xbf16>
      %cst_77 = arith.constant dense<0.000000e+00> : vector<4x32xf32>
      %67 = tpu.matmul %66, %65, %cst_77 {dimension_numbers = #tpu.dot_dimension_numbers<[1], [0], [0], [1], [0, 0, 1, 1], [], []>} : vector<4x16xbf16>, vector<16x32xbf16>, vector<4x32xf32> -> vector<4x32xf32>
      %68 = arith.addf %61, %67 : vector<4x32xf32>
      %c2_i32_78 = arith.constant 2 : i32
      %69 = arith.muli %arg22, %c2_i32_78 : i32
      %c1_i32_79 = arith.constant 1 : i32
      %70 = arith.addi %69, %c1_i32_79 : i32
      %71 = arith.index_cast %70 : i32 to index
      %c0_80 = arith.constant 0 : index
      %c0_81 = arith.constant 0 : index
      %72 = tpu.strided_load %arg18[%71, %c0_80, %c0_81] {strides = array<i32: 1, 2, 1>} : memref<12x12x16xf32, #tpu.memory_space<vmem>>, vector<1x4x16xf32>
      %73 = vector.shape_cast %72 : vector<1x4x16xf32> to vector<4x16xf32>
      %c80 = arith.constant 80 : index
      %c0_82 = arith.constant 0 : index
      %74 = vector.load %arg5[%c80, %c0_82] : memref<400x32xbf16, #tpu.memory_space<vmem>>, vector<16x32xbf16>
      %75 = arith.truncf %73 : vector<4x16xf32> to vector<4x16xbf16>
      %cst_83 = arith.constant dense<0.000000e+00> : vector<4x32xf32>
      %76 = tpu.matmul %75, %74, %cst_83 {dimension_numbers = #tpu.dot_dimension_numbers<[1], [0], [0], [1], [0, 0, 1, 1], [], []>} : vector<4x16xbf16>, vector<16x32xbf16>, vector<4x32xf32> -> vector<4x32xf32>
      %77 = arith.addf %68, %76 : vector<4x32xf32>
      %78 = arith.index_cast %70 : i32 to index
      %c1_84 = arith.constant 1 : index
      %c0_85 = arith.constant 0 : index
      %79 = tpu.strided_load %arg18[%78, %c1_84, %c0_85] {strides = array<i32: 1, 2, 1>} : memref<12x12x16xf32, #tpu.memory_space<vmem>>, vector<1x4x16xf32>
      %80 = vector.shape_cast %79 : vector<1x4x16xf32> to vector<4x16xf32>
      %c96 = arith.constant 96 : index
      %c0_86 = arith.constant 0 : index
      %81 = vector.load %arg5[%c96, %c0_86] : memref<400x32xbf16, #tpu.memory_space<vmem>>, vector<16x32xbf16>
      %82 = arith.truncf %80 : vector<4x16xf32> to vector<4x16xbf16>
      %cst_87 = arith.constant dense<0.000000e+00> : vector<4x32xf32>
      %83 = tpu.matmul %82, %81, %cst_87 {dimension_numbers = #tpu.dot_dimension_numbers<[1], [0], [0], [1], [0, 0, 1, 1], [], []>} : vector<4x16xbf16>, vector<16x32xbf16>, vector<4x32xf32> -> vector<4x32xf32>
      %84 = arith.addf %77, %83 : vector<4x32xf32>
      %85 = arith.index_cast %70 : i32 to index
      %c2_88 = arith.constant 2 : index
      %c0_89 = arith.constant 0 : index
      %86 = tpu.strided_load %arg18[%85, %c2_88, %c0_89] {strides = array<i32: 1, 2, 1>} : memref<12x12x16xf32, #tpu.memory_space<vmem>>, vector<1x4x16xf32>
      %87 = vector.shape_cast %86 : vector<1x4x16xf32> to vector<4x16xf32>
      %c112 = arith.constant 112 : index
      %c0_90 = arith.constant 0 : index
      %88 = vector.load %arg5[%c112, %c0_90] : memref<400x32xbf16, #tpu.memory_space<vmem>>, vector<16x32xbf16>
      %89 = arith.truncf %87 : vector<4x16xf32> to vector<4x16xbf16>
      %cst_91 = arith.constant dense<0.000000e+00> : vector<4x32xf32>
      %90 = tpu.matmul %89, %88, %cst_91 {dimension_numbers = #tpu.dot_dimension_numbers<[1], [0], [0], [1], [0, 0, 1, 1], [], []>} : vector<4x16xbf16>, vector<16x32xbf16>, vector<4x32xf32> -> vector<4x32xf32>
      %91 = arith.addf %84, %90 : vector<4x32xf32>
      %92 = arith.index_cast %70 : i32 to index
      %c3_92 = arith.constant 3 : index
      %c0_93 = arith.constant 0 : index
      %93 = tpu.strided_load %arg18[%92, %c3_92, %c0_93] {strides = array<i32: 1, 2, 1>} : memref<12x12x16xf32, #tpu.memory_space<vmem>>, vector<1x4x16xf32>
      %94 = vector.shape_cast %93 : vector<1x4x16xf32> to vector<4x16xf32>
      %c128 = arith.constant 128 : index
      %c0_94 = arith.constant 0 : index
      %95 = vector.load %arg5[%c128, %c0_94] : memref<400x32xbf16, #tpu.memory_space<vmem>>, vector<16x32xbf16>
      %96 = arith.truncf %94 : vector<4x16xf32> to vector<4x16xbf16>
      %cst_95 = arith.constant dense<0.000000e+00> : vector<4x32xf32>
      %97 = tpu.matmul %96, %95, %cst_95 {dimension_numbers = #tpu.dot_dimension_numbers<[1], [0], [0], [1], [0, 0, 1, 1], [], []>} : vector<4x16xbf16>, vector<16x32xbf16>, vector<4x32xf32> -> vector<4x32xf32>
      %98 = arith.addf %91, %97 : vector<4x32xf32>
      %99 = arith.index_cast %70 : i32 to index
      %c4_96 = arith.constant 4 : index
      %c0_97 = arith.constant 0 : index
      %100 = tpu.strided_load %arg18[%99, %c4_96, %c0_97] {strides = array<i32: 1, 2, 1>} : memref<12x12x16xf32, #tpu.memory_space<vmem>>, vector<1x4x16xf32>
      %101 = vector.shape_cast %100 : vector<1x4x16xf32> to vector<4x16xf32>
      %c144 = arith.constant 144 : index
      %c0_98 = arith.constant 0 : index
      %102 = vector.load %arg5[%c144, %c0_98] : memref<400x32xbf16, #tpu.memory_space<vmem>>, vector<16x32xbf16>
      %103 = arith.truncf %101 : vector<4x16xf32> to vector<4x16xbf16>
      %cst_99 = arith.constant dense<0.000000e+00> : vector<4x32xf32>
      %104 = tpu.matmul %103, %102, %cst_99 {dimension_numbers = #tpu.dot_dimension_numbers<[1], [0], [0], [1], [0, 0, 1, 1], [], []>} : vector<4x16xbf16>, vector<16x32xbf16>, vector<4x32xf32> -> vector<4x32xf32>
      %105 = arith.addf %98, %104 : vector<4x32xf32>
      %c2_i32_100 = arith.constant 2 : i32
      %106 = arith.muli %arg22, %c2_i32_100 : i32
      %c2_i32_101 = arith.constant 2 : i32
      %107 = arith.addi %106, %c2_i32_101 : i32
      %108 = arith.index_cast %107 : i32 to index
      %c0_102 = arith.constant 0 : index
      %c0_103 = arith.constant 0 : index
      %109 = tpu.strided_load %arg18[%108, %c0_102, %c0_103] {strides = array<i32: 1, 2, 1>} : memref<12x12x16xf32, #tpu.memory_space<vmem>>, vector<1x4x16xf32>
      %110 = vector.shape_cast %109 : vector<1x4x16xf32> to vector<4x16xf32>
      %c160 = arith.constant 160 : index
      %c0_104 = arith.constant 0 : index
      %111 = vector.load %arg5[%c160, %c0_104] : memref<400x32xbf16, #tpu.memory_space<vmem>>, vector<16x32xbf16>
      %112 = arith.truncf %110 : vector<4x16xf32> to vector<4x16xbf16>
      %cst_105 = arith.constant dense<0.000000e+00> : vector<4x32xf32>
      %113 = tpu.matmul %112, %111, %cst_105 {dimension_numbers = #tpu.dot_dimension_numbers<[1], [0], [0], [1], [0, 0, 1, 1], [], []>} : vector<4x16xbf16>, vector<16x32xbf16>, vector<4x32xf32> -> vector<4x32xf32>
      %114 = arith.addf %105, %113 : vector<4x32xf32>
      %115 = arith.index_cast %107 : i32 to index
      %c1_106 = arith.constant 1 : index
      %c0_107 = arith.constant 0 : index
      %116 = tpu.strided_load %arg18[%115, %c1_106, %c0_107] {strides = array<i32: 1, 2, 1>} : memref<12x12x16xf32, #tpu.memory_space<vmem>>, vector<1x4x16xf32>
      %117 = vector.shape_cast %116 : vector<1x4x16xf32> to vector<4x16xf32>
      %c176 = arith.constant 176 : index
      %c0_108 = arith.constant 0 : index
      %118 = vector.load %arg5[%c176, %c0_108] : memref<400x32xbf16, #tpu.memory_space<vmem>>, vector<16x32xbf16>
      %119 = arith.truncf %117 : vector<4x16xf32> to vector<4x16xbf16>
      %cst_109 = arith.constant dense<0.000000e+00> : vector<4x32xf32>
      %120 = tpu.matmul %119, %118, %cst_109 {dimension_numbers = #tpu.dot_dimension_numbers<[1], [0], [0], [1], [0, 0, 1, 1], [], []>} : vector<4x16xbf16>, vector<16x32xbf16>, vector<4x32xf32> -> vector<4x32xf32>
      %121 = arith.addf %114, %120 : vector<4x32xf32>
      %122 = arith.index_cast %107 : i32 to index
      %c2_110 = arith.constant 2 : index
      %c0_111 = arith.constant 0 : index
      %123 = tpu.strided_load %arg18[%122, %c2_110, %c0_111] {strides = array<i32: 1, 2, 1>} : memref<12x12x16xf32, #tpu.memory_space<vmem>>, vector<1x4x16xf32>
      %124 = vector.shape_cast %123 : vector<1x4x16xf32> to vector<4x16xf32>
      %c192 = arith.constant 192 : index
      %c0_112 = arith.constant 0 : index
      %125 = vector.load %arg5[%c192, %c0_112] : memref<400x32xbf16, #tpu.memory_space<vmem>>, vector<16x32xbf16>
      %126 = arith.truncf %124 : vector<4x16xf32> to vector<4x16xbf16>
      %cst_113 = arith.constant dense<0.000000e+00> : vector<4x32xf32>
      %127 = tpu.matmul %126, %125, %cst_113 {dimension_numbers = #tpu.dot_dimension_numbers<[1], [0], [0], [1], [0, 0, 1, 1], [], []>} : vector<4x16xbf16>, vector<16x32xbf16>, vector<4x32xf32> -> vector<4x32xf32>
      %128 = arith.addf %121, %127 : vector<4x32xf32>
      %129 = arith.index_cast %107 : i32 to index
      %c3_114 = arith.constant 3 : index
      %c0_115 = arith.constant 0 : index
      %130 = tpu.strided_load %arg18[%129, %c3_114, %c0_115] {strides = array<i32: 1, 2, 1>} : memref<12x12x16xf32, #tpu.memory_space<vmem>>, vector<1x4x16xf32>
      %131 = vector.shape_cast %130 : vector<1x4x16xf32> to vector<4x16xf32>
      %c208 = arith.constant 208 : index
      %c0_116 = arith.constant 0 : index
      %132 = vector.load %arg5[%c208, %c0_116] : memref<400x32xbf16, #tpu.memory_space<vmem>>, vector<16x32xbf16>
      %133 = arith.truncf %131 : vector<4x16xf32> to vector<4x16xbf16>
      %cst_117 = arith.constant dense<0.000000e+00> : vector<4x32xf32>
      %134 = tpu.matmul %133, %132, %cst_117 {dimension_numbers = #tpu.dot_dimension_numbers<[1], [0], [0], [1], [0, 0, 1, 1], [], []>} : vector<4x16xbf16>, vector<16x32xbf16>, vector<4x32xf32> -> vector<4x32xf32>
      %135 = arith.addf %128, %134 : vector<4x32xf32>
      %136 = arith.index_cast %107 : i32 to index
      %c4_118 = arith.constant 4 : index
      %c0_119 = arith.constant 0 : index
      %137 = tpu.strided_load %arg18[%136, %c4_118, %c0_119] {strides = array<i32: 1, 2, 1>} : memref<12x12x16xf32, #tpu.memory_space<vmem>>, vector<1x4x16xf32>
      %138 = vector.shape_cast %137 : vector<1x4x16xf32> to vector<4x16xf32>
      %c224 = arith.constant 224 : index
      %c0_120 = arith.constant 0 : index
      %139 = vector.load %arg5[%c224, %c0_120] : memref<400x32xbf16, #tpu.memory_space<vmem>>, vector<16x32xbf16>
      %140 = arith.truncf %138 : vector<4x16xf32> to vector<4x16xbf16>
      %cst_121 = arith.constant dense<0.000000e+00> : vector<4x32xf32>
      %141 = tpu.matmul %140, %139, %cst_121 {dimension_numbers = #tpu.dot_dimension_numbers<[1], [0], [0], [1], [0, 0, 1, 1], [], []>} : vector<4x16xbf16>, vector<16x32xbf16>, vector<4x32xf32> -> vector<4x32xf32>
      %142 = arith.addf %135, %141 : vector<4x32xf32>
      %c2_i32_122 = arith.constant 2 : i32
      %143 = arith.muli %arg22, %c2_i32_122 : i32
      %c3_i32 = arith.constant 3 : i32
      %144 = arith.addi %143, %c3_i32 : i32
      %145 = arith.index_cast %144 : i32 to index
      %c0_123 = arith.constant 0 : index
      %c0_124 = arith.constant 0 : index
      %146 = tpu.strided_load %arg18[%145, %c0_123, %c0_124] {strides = array<i32: 1, 2, 1>} : memref<12x12x16xf32, #tpu.memory_space<vmem>>, vector<1x4x16xf32>
      %147 = vector.shape_cast %146 : vector<1x4x16xf32> to vector<4x16xf32>
      %c240 = arith.constant 240 : index
      %c0_125 = arith.constant 0 : index
      %148 = vector.load %arg5[%c240, %c0_125] : memref<400x32xbf16, #tpu.memory_space<vmem>>, vector<16x32xbf16>
      %149 = arith.truncf %147 : vector<4x16xf32> to vector<4x16xbf16>
      %cst_126 = arith.constant dense<0.000000e+00> : vector<4x32xf32>
      %150 = tpu.matmul %149, %148, %cst_126 {dimension_numbers = #tpu.dot_dimension_numbers<[1], [0], [0], [1], [0, 0, 1, 1], [], []>} : vector<4x16xbf16>, vector<16x32xbf16>, vector<4x32xf32> -> vector<4x32xf32>
      %151 = arith.addf %142, %150 : vector<4x32xf32>
      %152 = arith.index_cast %144 : i32 to index
      %c1_127 = arith.constant 1 : index
      %c0_128 = arith.constant 0 : index
      %153 = tpu.strided_load %arg18[%152, %c1_127, %c0_128] {strides = array<i32: 1, 2, 1>} : memref<12x12x16xf32, #tpu.memory_space<vmem>>, vector<1x4x16xf32>
      %154 = vector.shape_cast %153 : vector<1x4x16xf32> to vector<4x16xf32>
      %c256 = arith.constant 256 : index
      %c0_129 = arith.constant 0 : index
      %155 = vector.load %arg5[%c256, %c0_129] : memref<400x32xbf16, #tpu.memory_space<vmem>>, vector<16x32xbf16>
      %156 = arith.truncf %154 : vector<4x16xf32> to vector<4x16xbf16>
      %cst_130 = arith.constant dense<0.000000e+00> : vector<4x32xf32>
      %157 = tpu.matmul %156, %155, %cst_130 {dimension_numbers = #tpu.dot_dimension_numbers<[1], [0], [0], [1], [0, 0, 1, 1], [], []>} : vector<4x16xbf16>, vector<16x32xbf16>, vector<4x32xf32> -> vector<4x32xf32>
      %158 = arith.addf %151, %157 : vector<4x32xf32>
      %159 = arith.index_cast %144 : i32 to index
      %c2_131 = arith.constant 2 : index
      %c0_132 = arith.constant 0 : index
      %160 = tpu.strided_load %arg18[%159, %c2_131, %c0_132] {strides = array<i32: 1, 2, 1>} : memref<12x12x16xf32, #tpu.memory_space<vmem>>, vector<1x4x16xf32>
      %161 = vector.shape_cast %160 : vector<1x4x16xf32> to vector<4x16xf32>
      %c272 = arith.constant 272 : index
      %c0_133 = arith.constant 0 : index
      %162 = vector.load %arg5[%c272, %c0_133] : memref<400x32xbf16, #tpu.memory_space<vmem>>, vector<16x32xbf16>
      %163 = arith.truncf %161 : vector<4x16xf32> to vector<4x16xbf16>
      %cst_134 = arith.constant dense<0.000000e+00> : vector<4x32xf32>
      %164 = tpu.matmul %163, %162, %cst_134 {dimension_numbers = #tpu.dot_dimension_numbers<[1], [0], [0], [1], [0, 0, 1, 1], [], []>} : vector<4x16xbf16>, vector<16x32xbf16>, vector<4x32xf32> -> vector<4x32xf32>
      %165 = arith.addf %158, %164 : vector<4x32xf32>
      %166 = arith.index_cast %144 : i32 to index
      %c3_135 = arith.constant 3 : index
      %c0_136 = arith.constant 0 : index
      %167 = tpu.strided_load %arg18[%166, %c3_135, %c0_136] {strides = array<i32: 1, 2, 1>} : memref<12x12x16xf32, #tpu.memory_space<vmem>>, vector<1x4x16xf32>
      %168 = vector.shape_cast %167 : vector<1x4x16xf32> to vector<4x16xf32>
      %c288 = arith.constant 288 : index
      %c0_137 = arith.constant 0 : index
      %169 = vector.load %arg5[%c288, %c0_137] : memref<400x32xbf16, #tpu.memory_space<vmem>>, vector<16x32xbf16>
      %170 = arith.truncf %168 : vector<4x16xf32> to vector<4x16xbf16>
      %cst_138 = arith.constant dense<0.000000e+00> : vector<4x32xf32>
      %171 = tpu.matmul %170, %169, %cst_138 {dimension_numbers = #tpu.dot_dimension_numbers<[1], [0], [0], [1], [0, 0, 1, 1], [], []>} : vector<4x16xbf16>, vector<16x32xbf16>, vector<4x32xf32> -> vector<4x32xf32>
      %172 = arith.addf %165, %171 : vector<4x32xf32>
      %173 = arith.index_cast %144 : i32 to index
      %c4_139 = arith.constant 4 : index
      %c0_140 = arith.constant 0 : index
      %174 = tpu.strided_load %arg18[%173, %c4_139, %c0_140] {strides = array<i32: 1, 2, 1>} : memref<12x12x16xf32, #tpu.memory_space<vmem>>, vector<1x4x16xf32>
      %175 = vector.shape_cast %174 : vector<1x4x16xf32> to vector<4x16xf32>
      %c304 = arith.constant 304 : index
      %c0_141 = arith.constant 0 : index
      %176 = vector.load %arg5[%c304, %c0_141] : memref<400x32xbf16, #tpu.memory_space<vmem>>, vector<16x32xbf16>
      %177 = arith.truncf %175 : vector<4x16xf32> to vector<4x16xbf16>
      %cst_142 = arith.constant dense<0.000000e+00> : vector<4x32xf32>
      %178 = tpu.matmul %177, %176, %cst_142 {dimension_numbers = #tpu.dot_dimension_numbers<[1], [0], [0], [1], [0, 0, 1, 1], [], []>} : vector<4x16xbf16>, vector<16x32xbf16>, vector<4x32xf32> -> vector<4x32xf32>
      %179 = arith.addf %172, %178 : vector<4x32xf32>
      %c2_i32_143 = arith.constant 2 : i32
      %180 = arith.muli %arg22, %c2_i32_143 : i32
      %c4_i32_144 = arith.constant 4 : i32
      %181 = arith.addi %180, %c4_i32_144 : i32
      %182 = arith.index_cast %181 : i32 to index
      %c0_145 = arith.constant 0 : index
      %c0_146 = arith.constant 0 : index
      %183 = tpu.strided_load %arg18[%182, %c0_145, %c0_146] {strides = array<i32: 1, 2, 1>} : memref<12x12x16xf32, #tpu.memory_space<vmem>>, vector<1x4x16xf32>
      %184 = vector.shape_cast %183 : vector<1x4x16xf32> to vector<4x16xf32>
      %c320 = arith.constant 320 : index
      %c0_147 = arith.constant 0 : index
      %185 = vector.load %arg5[%c320, %c0_147] : memref<400x32xbf16, #tpu.memory_space<vmem>>, vector<16x32xbf16>
      %186 = arith.truncf %184 : vector<4x16xf32> to vector<4x16xbf16>
      %cst_148 = arith.constant dense<0.000000e+00> : vector<4x32xf32>
      %187 = tpu.matmul %186, %185, %cst_148 {dimension_numbers = #tpu.dot_dimension_numbers<[1], [0], [0], [1], [0, 0, 1, 1], [], []>} : vector<4x16xbf16>, vector<16x32xbf16>, vector<4x32xf32> -> vector<4x32xf32>
      %188 = arith.addf %179, %187 : vector<4x32xf32>
      %189 = arith.index_cast %181 : i32 to index
      %c1_149 = arith.constant 1 : index
      %c0_150 = arith.constant 0 : index
      %190 = tpu.strided_load %arg18[%189, %c1_149, %c0_150] {strides = array<i32: 1, 2, 1>} : memref<12x12x16xf32, #tpu.memory_space<vmem>>, vector<1x4x16xf32>
      %191 = vector.shape_cast %190 : vector<1x4x16xf32> to vector<4x16xf32>
      %c336 = arith.constant 336 : index
      %c0_151 = arith.constant 0 : index
      %192 = vector.load %arg5[%c336, %c0_151] : memref<400x32xbf16, #tpu.memory_space<vmem>>, vector<16x32xbf16>
      %193 = arith.truncf %191 : vector<4x16xf32> to vector<4x16xbf16>
      %cst_152 = arith.constant dense<0.000000e+00> : vector<4x32xf32>
      %194 = tpu.matmul %193, %192, %cst_152 {dimension_numbers = #tpu.dot_dimension_numbers<[1], [0], [0], [1], [0, 0, 1, 1], [], []>} : vector<4x16xbf16>, vector<16x32xbf16>, vector<4x32xf32> -> vector<4x32xf32>
      %195 = arith.addf %188, %194 : vector<4x32xf32>
      %196 = arith.index_cast %181 : i32 to index
      %c2_153 = arith.constant 2 : index
      %c0_154 = arith.constant 0 : index
      %197 = tpu.strided_load %arg18[%196, %c2_153, %c0_154] {strides = array<i32: 1, 2, 1>} : memref<12x12x16xf32, #tpu.memory_space<vmem>>, vector<1x4x16xf32>
      %198 = vector.shape_cast %197 : vector<1x4x16xf32> to vector<4x16xf32>
      %c352 = arith.constant 352 : index
      %c0_155 = arith.constant 0 : index
      %199 = vector.load %arg5[%c352, %c0_155] : memref<400x32xbf16, #tpu.memory_space<vmem>>, vector<16x32xbf16>
      %200 = arith.truncf %198 : vector<4x16xf32> to vector<4x16xbf16>
      %cst_156 = arith.constant dense<0.000000e+00> : vector<4x32xf32>
      %201 = tpu.matmul %200, %199, %cst_156 {dimension_numbers = #tpu.dot_dimension_numbers<[1], [0], [0], [1], [0, 0, 1, 1], [], []>} : vector<4x16xbf16>, vector<16x32xbf16>, vector<4x32xf32> -> vector<4x32xf32>
      %202 = arith.addf %195, %201 : vector<4x32xf32>
      %203 = arith.index_cast %181 : i32 to index
      %c3_157 = arith.constant 3 : index
      %c0_158 = arith.constant 0 : index
      %204 = tpu.strided_load %arg18[%203, %c3_157, %c0_158] {strides = array<i32: 1, 2, 1>} : memref<12x12x16xf32, #tpu.memory_space<vmem>>, vector<1x4x16xf32>
      %205 = vector.shape_cast %204 : vector<1x4x16xf32> to vector<4x16xf32>
      %c368 = arith.constant 368 : index
      %c0_159 = arith.constant 0 : index
      %206 = vector.load %arg5[%c368, %c0_159] : memref<400x32xbf16, #tpu.memory_space<vmem>>, vector<16x32xbf16>
      %207 = arith.truncf %205 : vector<4x16xf32> to vector<4x16xbf16>
      %cst_160 = arith.constant dense<0.000000e+00> : vector<4x32xf32>
      %208 = tpu.matmul %207, %206, %cst_160 {dimension_numbers = #tpu.dot_dimension_numbers<[1], [0], [0], [1], [0, 0, 1, 1], [], []>} : vector<4x16xbf16>, vector<16x32xbf16>, vector<4x32xf32> -> vector<4x32xf32>
      %209 = arith.addf %202, %208 : vector<4x32xf32>
      %210 = arith.index_cast %181 : i32 to index
      %c4_161 = arith.constant 4 : index
      %c0_162 = arith.constant 0 : index
      %211 = tpu.strided_load %arg18[%210, %c4_161, %c0_162] {strides = array<i32: 1, 2, 1>} : memref<12x12x16xf32, #tpu.memory_space<vmem>>, vector<1x4x16xf32>
      %212 = vector.shape_cast %211 : vector<1x4x16xf32> to vector<4x16xf32>
      %c384 = arith.constant 384 : index
      %c0_163 = arith.constant 0 : index
      %213 = vector.load %arg5[%c384, %c0_163] : memref<400x32xbf16, #tpu.memory_space<vmem>>, vector<16x32xbf16>
      %214 = arith.truncf %212 : vector<4x16xf32> to vector<4x16xbf16>
      %cst_164 = arith.constant dense<0.000000e+00> : vector<4x32xf32>
      %215 = tpu.matmul %214, %213, %cst_164 {dimension_numbers = #tpu.dot_dimension_numbers<[1], [0], [0], [1], [0, 0, 1, 1], [], []>} : vector<4x16xbf16>, vector<16x32xbf16>, vector<4x32xf32> -> vector<4x32xf32>
      %216 = arith.addf %209, %215 : vector<4x32xf32>
      %217 = vector.broadcast %14 : vector<1x32xf32> to vector<4x32xf32>
      %218 = arith.mulf %216, %217 : vector<4x32xf32>
      %219 = vector.broadcast %15 : vector<1x32xf32> to vector<4x32xf32>
      %220 = arith.addf %218, %219 : vector<4x32xf32>
      %cst_165 = arith.constant 0.000000e+00 : f32
      %221 = vector.broadcast %cst_165 : f32 to vector<4x32xf32>
      %222 = arith.maximumf %220, %221 : vector<4x32xf32>
      %c1_i32_166 = arith.constant 1 : i32
      %223 = arith.addi %c1_i32_166, %arg22 : i32
      %224 = arith.index_cast %223 : i32 to index
      %c1_167 = arith.constant 1 : index
      %c0_168 = arith.constant 0 : index
      %225 = vector.load %arg19[%224, %c1_167, %c0_168] : memref<6x6x32xf32, #tpu.memory_space<vmem>>, vector<1x4x32xf32>
      %226 = vector.shape_cast %225 : vector<1x4x32xf32> to vector<4x32xf32>
      %227 = vector.shape_cast %222 : vector<4x32xf32> to vector<1x4x32xf32>
      tpu.vector_store %arg19[%224, %c1_167, %c0_168], %227 {strides = array<i32>} : memref<6x6x32xf32, #tpu.memory_space<vmem>>, vector<1x4x32xf32>,
    }
    %c4_i32_31 = arith.constant 4 : i32
    %c0_32 = arith.constant 0 : index
    %c0_33 = arith.constant 0 : index
    %17 = vector.load %arg9[%c0_32, %c0_33] : memref<1x64xf32, #tpu.memory_space<vmem>>, vector<1x64xf32>
    %c0_34 = arith.constant 0 : index
    %c0_35 = arith.constant 0 : index
    %18 = vector.load %arg10[%c0_34, %c0_35] : memref<1x64xf32, #tpu.memory_space<vmem>>, vector<1x64xf32>
    %c0_i32_36 = arith.constant 0 : i32
    %c4_i32_37 = arith.constant 4 : i32
    %19 = arith.addi %c0_i32_36, %c4_i32_37 : i32
    %c1_i32_38 = arith.constant 1 : i32
    scf.for %arg22 = %c0_i32_36 to %19 step %c1_i32_38  : i32 {
      %cst_57 = arith.constant 0.000000e+00 : f32
      %31 = vector.broadcast %cst_57 : f32 to vector<4x64xf32>
      %c1_i32_58 = arith.constant 1 : i32
      %32 = arith.muli %arg22, %c1_i32_58 : i32
      %c0_i32_59 = arith.constant 0 : i32
      %33 = arith.addi %32, %c0_i32_59 : i32
      %34 = arith.index_cast %33 : i32 to index
      %c0_60 = arith.constant 0 : index
      %c0_61 = arith.constant 0 : index
      %35 = vector.load %arg19[%34, %c0_60, %c0_61] : memref<6x6x32xf32, #tpu.memory_space<vmem>>, vector<1x4x32xf32>
      %36 = vector.shape_cast %35 : vector<1x4x32xf32> to vector<4x32xf32>
      %c0_62 = arith.constant 0 : index
      %c0_63 = arith.constant 0 : index
      %37 = vector.load %arg8[%c0_62, %c0_63] : memref<288x64xbf16, #tpu.memory_space<vmem>>, vector<32x64xbf16>
      %38 = arith.truncf %36 : vector<4x32xf32> to vector<4x32xbf16>
      %cst_64 = arith.constant dense<0.000000e+00> : vector<4x64xf32>
      %39 = tpu.matmul %38, %37, %cst_64 {dimension_numbers = #tpu.dot_dimension_numbers<[1], [0], [0], [1], [0, 0, 1, 1], [], []>} : vector<4x32xbf16>, vector<32x64xbf16>, vector<4x64xf32> -> vector<4x64xf32>
      %40 = arith.addf %31, %39 : vector<4x64xf32>
      %41 = arith.index_cast %33 : i32 to index
      %c1 = arith.constant 1 : index
      %c0_65 = arith.constant 0 : index
      %42 = vector.load %arg19[%41, %c1, %c0_65] : memref<6x6x32xf32, #tpu.memory_space<vmem>>, vector<1x4x32xf32>
      %43 = vector.shape_cast %42 : vector<1x4x32xf32> to vector<4x32xf32>
      %c32 = arith.constant 32 : index
      %c0_66 = arith.constant 0 : index
      %44 = vector.load %arg8[%c32, %c0_66] : memref<288x64xbf16, #tpu.memory_space<vmem>>, vector<32x64xbf16>
      %45 = arith.truncf %43 : vector<4x32xf32> to vector<4x32xbf16>
      %cst_67 = arith.constant dense<0.000000e+00> : vector<4x64xf32>
      %46 = tpu.matmul %45, %44, %cst_67 {dimension_numbers = #tpu.dot_dimension_numbers<[1], [0], [0], [1], [0, 0, 1, 1], [], []>} : vector<4x32xbf16>, vector<32x64xbf16>, vector<4x64xf32> -> vector<4x64xf32>
      %47 = arith.addf %40, %46 : vector<4x64xf32>
      %48 = arith.index_cast %33 : i32 to index
      %c2 = arith.constant 2 : index
      %c0_68 = arith.constant 0 : index
      %49 = vector.load %arg19[%48, %c2, %c0_68] : memref<6x6x32xf32, #tpu.memory_space<vmem>>, vector<1x4x32xf32>
      %50 = vector.shape_cast %49 : vector<1x4x32xf32> to vector<4x32xf32>
      %c64 = arith.constant 64 : index
      %c0_69 = arith.constant 0 : index
      %51 = vector.load %arg8[%c64, %c0_69] : memref<288x64xbf16, #tpu.memory_space<vmem>>, vector<32x64xbf16>
      %52 = arith.truncf %50 : vector<4x32xf32> to vector<4x32xbf16>
      %cst_70 = arith.constant dense<0.000000e+00> : vector<4x64xf32>
      %53 = tpu.matmul %52, %51, %cst_70 {dimension_numbers = #tpu.dot_dimension_numbers<[1], [0], [0], [1], [0, 0, 1, 1], [], []>} : vector<4x32xbf16>, vector<32x64xbf16>, vector<4x64xf32> -> vector<4x64xf32>
      %54 = arith.addf %47, %53 : vector<4x64xf32>
      %c1_i32_71 = arith.constant 1 : i32
      %55 = arith.muli %arg22, %c1_i32_71 : i32
      %c1_i32_72 = arith.constant 1 : i32
      %56 = arith.addi %55, %c1_i32_72 : i32
      %57 = arith.index_cast %56 : i32 to index
      %c0_73 = arith.constant 0 : index
      %c0_74 = arith.constant 0 : index
      %58 = vector.load %arg19[%57, %c0_73, %c0_74] : memref<6x6x32xf32, #tpu.memory_space<vmem>>, vector<1x4x32xf32>
      %59 = vector.shape_cast %58 : vector<1x4x32xf32> to vector<4x32xf32>
      %c96 = arith.constant 96 : index
      %c0_75 = arith.constant 0 : index
      %60 = vector.load %arg8[%c96, %c0_75] : memref<288x64xbf16, #tpu.memory_space<vmem>>, vector<32x64xbf16>
      %61 = arith.truncf %59 : vector<4x32xf32> to vector<4x32xbf16>
      %cst_76 = arith.constant dense<0.000000e+00> : vector<4x64xf32>
      %62 = tpu.matmul %61, %60, %cst_76 {dimension_numbers = #tpu.dot_dimension_numbers<[1], [0], [0], [1], [0, 0, 1, 1], [], []>} : vector<4x32xbf16>, vector<32x64xbf16>, vector<4x64xf32> -> vector<4x64xf32>
      %63 = arith.addf %54, %62 : vector<4x64xf32>
      %64 = arith.index_cast %56 : i32 to index
      %c1_77 = arith.constant 1 : index
      %c0_78 = arith.constant 0 : index
      %65 = vector.load %arg19[%64, %c1_77, %c0_78] : memref<6x6x32xf32, #tpu.memory_space<vmem>>, vector<1x4x32xf32>
      %66 = vector.shape_cast %65 : vector<1x4x32xf32> to vector<4x32xf32>
      %c128 = arith.constant 128 : index
      %c0_79 = arith.constant 0 : index
      %67 = vector.load %arg8[%c128, %c0_79] : memref<288x64xbf16, #tpu.memory_space<vmem>>, vector<32x64xbf16>
      %68 = arith.truncf %66 : vector<4x32xf32> to vector<4x32xbf16>
      %cst_80 = arith.constant dense<0.000000e+00> : vector<4x64xf32>
      %69 = tpu.matmul %68, %67, %cst_80 {dimension_numbers = #tpu.dot_dimension_numbers<[1], [0], [0], [1], [0, 0, 1, 1], [], []>} : vector<4x32xbf16>, vector<32x64xbf16>, vector<4x64xf32> -> vector<4x64xf32>
      %70 = arith.addf %63, %69 : vector<4x64xf32>
      %71 = arith.index_cast %56 : i32 to index
      %c2_81 = arith.constant 2 : index
      %c0_82 = arith.constant 0 : index
      %72 = vector.load %arg19[%71, %c2_81, %c0_82] : memref<6x6x32xf32, #tpu.memory_space<vmem>>, vector<1x4x32xf32>
      %73 = vector.shape_cast %72 : vector<1x4x32xf32> to vector<4x32xf32>
      %c160 = arith.constant 160 : index
      %c0_83 = arith.constant 0 : index
      %74 = vector.load %arg8[%c160, %c0_83] : memref<288x64xbf16, #tpu.memory_space<vmem>>, vector<32x64xbf16>
      %75 = arith.truncf %73 : vector<4x32xf32> to vector<4x32xbf16>
      %cst_84 = arith.constant dense<0.000000e+00> : vector<4x64xf32>
      %76 = tpu.matmul %75, %74, %cst_84 {dimension_numbers = #tpu.dot_dimension_numbers<[1], [0], [0], [1], [0, 0, 1, 1], [], []>} : vector<4x32xbf16>, vector<32x64xbf16>, vector<4x64xf32> -> vector<4x64xf32>
      %77 = arith.addf %70, %76 : vector<4x64xf32>
      %c1_i32_85 = arith.constant 1 : i32
      %78 = arith.muli %arg22, %c1_i32_85 : i32
      %c2_i32_86 = arith.constant 2 : i32
      %79 = arith.addi %78, %c2_i32_86 : i32
      %80 = arith.index_cast %79 : i32 to index
      %c0_87 = arith.constant 0 : index
      %c0_88 = arith.constant 0 : index
      %81 = vector.load %arg19[%80, %c0_87, %c0_88] : memref<6x6x32xf32, #tpu.memory_space<vmem>>, vector<1x4x32xf32>
      %82 = vector.shape_cast %81 : vector<1x4x32xf32> to vector<4x32xf32>
      %c192 = arith.constant 192 : index
      %c0_89 = arith.constant 0 : index
      %83 = vector.load %arg8[%c192, %c0_89] : memref<288x64xbf16, #tpu.memory_space<vmem>>, vector<32x64xbf16>
      %84 = arith.truncf %82 : vector<4x32xf32> to vector<4x32xbf16>
      %cst_90 = arith.constant dense<0.000000e+00> : vector<4x64xf32>
      %85 = tpu.matmul %84, %83, %cst_90 {dimension_numbers = #tpu.dot_dimension_numbers<[1], [0], [0], [1], [0, 0, 1, 1], [], []>} : vector<4x32xbf16>, vector<32x64xbf16>, vector<4x64xf32> -> vector<4x64xf32>
      %86 = arith.addf %77, %85 : vector<4x64xf32>
      %87 = arith.index_cast %79 : i32 to index
      %c1_91 = arith.constant 1 : index
      %c0_92 = arith.constant 0 : index
      %88 = vector.load %arg19[%87, %c1_91, %c0_92] : memref<6x6x32xf32, #tpu.memory_space<vmem>>, vector<1x4x32xf32>
      %89 = vector.shape_cast %88 : vector<1x4x32xf32> to vector<4x32xf32>
      %c224 = arith.constant 224 : index
      %c0_93 = arith.constant 0 : index
      %90 = vector.load %arg8[%c224, %c0_93] : memref<288x64xbf16, #tpu.memory_space<vmem>>, vector<32x64xbf16>
      %91 = arith.truncf %89 : vector<4x32xf32> to vector<4x32xbf16>
      %cst_94 = arith.constant dense<0.000000e+00> : vector<4x64xf32>
      %92 = tpu.matmul %91, %90, %cst_94 {dimension_numbers = #tpu.dot_dimension_numbers<[1], [0], [0], [1], [0, 0, 1, 1], [], []>} : vector<4x32xbf16>, vector<32x64xbf16>, vector<4x64xf32> -> vector<4x64xf32>
      %93 = arith.addf %86, %92 : vector<4x64xf32>
      %94 = arith.index_cast %79 : i32 to index
      %c2_95 = arith.constant 2 : index
      %c0_96 = arith.constant 0 : index
      %95 = vector.load %arg19[%94, %c2_95, %c0_96] : memref<6x6x32xf32, #tpu.memory_space<vmem>>, vector<1x4x32xf32>
      %96 = vector.shape_cast %95 : vector<1x4x32xf32> to vector<4x32xf32>
      %c256 = arith.constant 256 : index
      %c0_97 = arith.constant 0 : index
      %97 = vector.load %arg8[%c256, %c0_97] : memref<288x64xbf16, #tpu.memory_space<vmem>>, vector<32x64xbf16>
      %98 = arith.truncf %96 : vector<4x32xf32> to vector<4x32xbf16>
      %cst_98 = arith.constant dense<0.000000e+00> : vector<4x64xf32>
      %99 = tpu.matmul %98, %97, %cst_98 {dimension_numbers = #tpu.dot_dimension_numbers<[1], [0], [0], [1], [0, 0, 1, 1], [], []>} : vector<4x32xbf16>, vector<32x64xbf16>, vector<4x64xf32> -> vector<4x64xf32>
      %100 = arith.addf %93, %99 : vector<4x64xf32>
      %101 = vector.broadcast %17 : vector<1x64xf32> to vector<4x64xf32>
      %102 = arith.mulf %100, %101 : vector<4x64xf32>
      %103 = vector.broadcast %18 : vector<1x64xf32> to vector<4x64xf32>
      %104 = arith.addf %102, %103 : vector<4x64xf32>
      %cst_99 = arith.constant 0.000000e+00 : f32
      %105 = vector.broadcast %cst_99 : f32 to vector<4x64xf32>
      %106 = arith.maximumf %104, %105 : vector<4x64xf32>
      %c1_i32_100 = arith.constant 1 : i32
      %107 = arith.addi %c1_i32_100, %arg22 : i32
      %108 = arith.index_cast %107 : i32 to index
      %c1_101 = arith.constant 1 : index
      %c0_102 = arith.constant 0 : index
      %109 = vector.load %arg20[%108, %c1_101, %c0_102] : memref<6x6x64xf32, #tpu.memory_space<vmem>>, vector<1x4x64xf32>
      %110 = vector.shape_cast %109 : vector<1x4x64xf32> to vector<4x64xf32>
      %111 = vector.shape_cast %106 : vector<4x64xf32> to vector<1x4x64xf32>
      tpu.vector_store %arg20[%108, %c1_101, %c0_102], %111 {strides = array<i32>} : memref<6x6x64xf32, #tpu.memory_space<vmem>>, vector<1x4x64xf32>,
    }
    %c4_i32_39 = arith.constant 4 : i32
    %c0_40 = arith.constant 0 : index
    %c0_41 = arith.constant 0 : index
    %20 = vector.load %arg12[%c0_40, %c0_41] : memref<1x128xf32, #tpu.memory_space<vmem>>, vector<1x128xf32>
    %c0_42 = arith.constant 0 : index
    %c0_43 = arith.constant 0 : index
    %21 = vector.load %arg13[%c0_42, %c0_43] : memref<1x128xf32, #tpu.memory_space<vmem>>, vector<1x128xf32>
    %c0_i32_44 = arith.constant 0 : i32
    %c4_i32_45 = arith.constant 4 : i32
    %22 = arith.addi %c0_i32_44, %c4_i32_45 : i32
    %c1_i32_46 = arith.constant 1 : i32
    scf.for %arg22 = %c0_i32_44 to %22 step %c1_i32_46  : i32 {
      %cst_57 = arith.constant 0.000000e+00 : f32
      %31 = vector.broadcast %cst_57 : f32 to vector<4x128xf32>
      %c1_i32_58 = arith.constant 1 : i32
      %32 = arith.muli %arg22, %c1_i32_58 : i32
      %c0_i32_59 = arith.constant 0 : i32
      %33 = arith.addi %32, %c0_i32_59 : i32
      %34 = arith.index_cast %33 : i32 to index
      %c0_60 = arith.constant 0 : index
      %c0_61 = arith.constant 0 : index
      %35 = vector.load %arg20[%34, %c0_60, %c0_61] : memref<6x6x64xf32, #tpu.memory_space<vmem>>, vector<1x4x64xf32>
      %36 = vector.shape_cast %35 : vector<1x4x64xf32> to vector<4x64xf32>
      %c0_62 = arith.constant 0 : index
      %c0_63 = arith.constant 0 : index
      %37 = vector.load %arg11[%c0_62, %c0_63] : memref<576x128xbf16, #tpu.memory_space<vmem>>, vector<64x128xbf16>
      %38 = arith.truncf %36 : vector<4x64xf32> to vector<4x64xbf16>
      %cst_64 = arith.constant dense<0.000000e+00> : vector<4x128xf32>
      %39 = tpu.matmul %38, %37, %cst_64 {dimension_numbers = #tpu.dot_dimension_numbers<[1], [0], [0], [1], [0, 0, 1, 1], [], []>} : vector<4x64xbf16>, vector<64x128xbf16>, vector<4x128xf32> -> vector<4x128xf32>
      %40 = arith.addf %31, %39 : vector<4x128xf32>
      %41 = arith.index_cast %33 : i32 to index
      %c1 = arith.constant 1 : index
      %c0_65 = arith.constant 0 : index
      %42 = vector.load %arg20[%41, %c1, %c0_65] : memref<6x6x64xf32, #tpu.memory_space<vmem>>, vector<1x4x64xf32>
      %43 = vector.shape_cast %42 : vector<1x4x64xf32> to vector<4x64xf32>
      %c64 = arith.constant 64 : index
      %c0_66 = arith.constant 0 : index
      %44 = vector.load %arg11[%c64, %c0_66] : memref<576x128xbf16, #tpu.memory_space<vmem>>, vector<64x128xbf16>
      %45 = arith.truncf %43 : vector<4x64xf32> to vector<4x64xbf16>
      %cst_67 = arith.constant dense<0.000000e+00> : vector<4x128xf32>
      %46 = tpu.matmul %45, %44, %cst_67 {dimension_numbers = #tpu.dot_dimension_numbers<[1], [0], [0], [1], [0, 0, 1, 1], [], []>} : vector<4x64xbf16>, vector<64x128xbf16>, vector<4x128xf32> -> vector<4x128xf32>
      %47 = arith.addf %40, %46 : vector<4x128xf32>
      %48 = arith.index_cast %33 : i32 to index
      %c2 = arith.constant 2 : index
      %c0_68 = arith.constant 0 : index
      %49 = vector.load %arg20[%48, %c2, %c0_68] : memref<6x6x64xf32, #tpu.memory_space<vmem>>, vector<1x4x64xf32>
      %50 = vector.shape_cast %49 : vector<1x4x64xf32> to vector<4x64xf32>
      %c128 = arith.constant 128 : index
      %c0_69 = arith.constant 0 : index
      %51 = vector.load %arg11[%c128, %c0_69] : memref<576x128xbf16, #tpu.memory_space<vmem>>, vector<64x128xbf16>
      %52 = arith.truncf %50 : vector<4x64xf32> to vector<4x64xbf16>
      %cst_70 = arith.constant dense<0.000000e+00> : vector<4x128xf32>
      %53 = tpu.matmul %52, %51, %cst_70 {dimension_numbers = #tpu.dot_dimension_numbers<[1], [0], [0], [1], [0, 0, 1, 1], [], []>} : vector<4x64xbf16>, vector<64x128xbf16>, vector<4x128xf32> -> vector<4x128xf32>
      %54 = arith.addf %47, %53 : vector<4x128xf32>
      %c1_i32_71 = arith.constant 1 : i32
      %55 = arith.muli %arg22, %c1_i32_71 : i32
      %c1_i32_72 = arith.constant 1 : i32
      %56 = arith.addi %55, %c1_i32_72 : i32
      %57 = arith.index_cast %56 : i32 to index
      %c0_73 = arith.constant 0 : index
      %c0_74 = arith.constant 0 : index
      %58 = vector.load %arg20[%57, %c0_73, %c0_74] : memref<6x6x64xf32, #tpu.memory_space<vmem>>, vector<1x4x64xf32>
      %59 = vector.shape_cast %58 : vector<1x4x64xf32> to vector<4x64xf32>
      %c192 = arith.constant 192 : index
      %c0_75 = arith.constant 0 : index
      %60 = vector.load %arg11[%c192, %c0_75] : memref<576x128xbf16, #tpu.memory_space<vmem>>, vector<64x128xbf16>
      %61 = arith.truncf %59 : vector<4x64xf32> to vector<4x64xbf16>
      %cst_76 = arith.constant dense<0.000000e+00> : vector<4x128xf32>
      %62 = tpu.matmul %61, %60, %cst_76 {dimension_numbers = #tpu.dot_dimension_numbers<[1], [0], [0], [1], [0, 0, 1, 1], [], []>} : vector<4x64xbf16>, vector<64x128xbf16>, vector<4x128xf32> -> vector<4x128xf32>
      %63 = arith.addf %54, %62 : vector<4x128xf32>
      %64 = arith.index_cast %56 : i32 to index
      %c1_77 = arith.constant 1 : index
      %c0_78 = arith.constant 0 : index
      %65 = vector.load %arg20[%64, %c1_77, %c0_78] : memref<6x6x64xf32, #tpu.memory_space<vmem>>, vector<1x4x64xf32>
      %66 = vector.shape_cast %65 : vector<1x4x64xf32> to vector<4x64xf32>
      %c256 = arith.constant 256 : index
      %c0_79 = arith.constant 0 : index
      %67 = vector.load %arg11[%c256, %c0_79] : memref<576x128xbf16, #tpu.memory_space<vmem>>, vector<64x128xbf16>
      %68 = arith.truncf %66 : vector<4x64xf32> to vector<4x64xbf16>
      %cst_80 = arith.constant dense<0.000000e+00> : vector<4x128xf32>
      %69 = tpu.matmul %68, %67, %cst_80 {dimension_numbers = #tpu.dot_dimension_numbers<[1], [0], [0], [1], [0, 0, 1, 1], [], []>} : vector<4x64xbf16>, vector<64x128xbf16>, vector<4x128xf32> -> vector<4x128xf32>
      %70 = arith.addf %63, %69 : vector<4x128xf32>
      %71 = arith.index_cast %56 : i32 to index
      %c2_81 = arith.constant 2 : index
      %c0_82 = arith.constant 0 : index
      %72 = vector.load %arg20[%71, %c2_81, %c0_82] : memref<6x6x64xf32, #tpu.memory_space<vmem>>, vector<1x4x64xf32>
      %73 = vector.shape_cast %72 : vector<1x4x64xf32> to vector<4x64xf32>
      %c320 = arith.constant 320 : index
      %c0_83 = arith.constant 0 : index
      %74 = vector.load %arg11[%c320, %c0_83] : memref<576x128xbf16, #tpu.memory_space<vmem>>, vector<64x128xbf16>
      %75 = arith.truncf %73 : vector<4x64xf32> to vector<4x64xbf16>
      %cst_84 = arith.constant dense<0.000000e+00> : vector<4x128xf32>
      %76 = tpu.matmul %75, %74, %cst_84 {dimension_numbers = #tpu.dot_dimension_numbers<[1], [0], [0], [1], [0, 0, 1, 1], [], []>} : vector<4x64xbf16>, vector<64x128xbf16>, vector<4x128xf32> -> vector<4x128xf32>
      %77 = arith.addf %70, %76 : vector<4x128xf32>
      %c1_i32_85 = arith.constant 1 : i32
      %78 = arith.muli %arg22, %c1_i32_85 : i32
      %c2_i32_86 = arith.constant 2 : i32
      %79 = arith.addi %78, %c2_i32_86 : i32
      %80 = arith.index_cast %79 : i32 to index
      %c0_87 = arith.constant 0 : index
      %c0_88 = arith.constant 0 : index
      %81 = vector.load %arg20[%80, %c0_87, %c0_88] : memref<6x6x64xf32, #tpu.memory_space<vmem>>, vector<1x4x64xf32>
      %82 = vector.shape_cast %81 : vector<1x4x64xf32> to vector<4x64xf32>
      %c384 = arith.constant 384 : index
      %c0_89 = arith.constant 0 : index
      %83 = vector.load %arg11[%c384, %c0_89] : memref<576x128xbf16, #tpu.memory_space<vmem>>, vector<64x128xbf16>
      %84 = arith.truncf %82 : vector<4x64xf32> to vector<4x64xbf16>
      %cst_90 = arith.constant dense<0.000000e+00> : vector<4x128xf32>
      %85 = tpu.matmul %84, %83, %cst_90 {dimension_numbers = #tpu.dot_dimension_numbers<[1], [0], [0], [1], [0, 0, 1, 1], [], []>} : vector<4x64xbf16>, vector<64x128xbf16>, vector<4x128xf32> -> vector<4x128xf32>
      %86 = arith.addf %77, %85 : vector<4x128xf32>
      %87 = arith.index_cast %79 : i32 to index
      %c1_91 = arith.constant 1 : index
      %c0_92 = arith.constant 0 : index
      %88 = vector.load %arg20[%87, %c1_91, %c0_92] : memref<6x6x64xf32, #tpu.memory_space<vmem>>, vector<1x4x64xf32>
      %89 = vector.shape_cast %88 : vector<1x4x64xf32> to vector<4x64xf32>
      %c448 = arith.constant 448 : index
      %c0_93 = arith.constant 0 : index
      %90 = vector.load %arg11[%c448, %c0_93] : memref<576x128xbf16, #tpu.memory_space<vmem>>, vector<64x128xbf16>
      %91 = arith.truncf %89 : vector<4x64xf32> to vector<4x64xbf16>
      %cst_94 = arith.constant dense<0.000000e+00> : vector<4x128xf32>
      %92 = tpu.matmul %91, %90, %cst_94 {dimension_numbers = #tpu.dot_dimension_numbers<[1], [0], [0], [1], [0, 0, 1, 1], [], []>} : vector<4x64xbf16>, vector<64x128xbf16>, vector<4x128xf32> -> vector<4x128xf32>
      %93 = arith.addf %86, %92 : vector<4x128xf32>
      %94 = arith.index_cast %79 : i32 to index
      %c2_95 = arith.constant 2 : index
      %c0_96 = arith.constant 0 : index
      %95 = vector.load %arg20[%94, %c2_95, %c0_96] : memref<6x6x64xf32, #tpu.memory_space<vmem>>, vector<1x4x64xf32>
      %96 = vector.shape_cast %95 : vector<1x4x64xf32> to vector<4x64xf32>
      %c512 = arith.constant 512 : index
      %c0_97 = arith.constant 0 : index
      %97 = vector.load %arg11[%c512, %c0_97] : memref<576x128xbf16, #tpu.memory_space<vmem>>, vector<64x128xbf16>
      %98 = arith.truncf %96 : vector<4x64xf32> to vector<4x64xbf16>
      %cst_98 = arith.constant dense<0.000000e+00> : vector<4x128xf32>
      %99 = tpu.matmul %98, %97, %cst_98 {dimension_numbers = #tpu.dot_dimension_numbers<[1], [0], [0], [1], [0, 0, 1, 1], [], []>} : vector<4x64xbf16>, vector<64x128xbf16>, vector<4x128xf32> -> vector<4x128xf32>
      %100 = arith.addf %93, %99 : vector<4x128xf32>
      %101 = vector.broadcast %20 : vector<1x128xf32> to vector<4x128xf32>
      %102 = arith.mulf %100, %101 : vector<4x128xf32>
      %103 = vector.broadcast %21 : vector<1x128xf32> to vector<4x128xf32>
      %104 = arith.addf %102, %103 : vector<4x128xf32>
      %cst_99 = arith.constant 0.000000e+00 : f32
      %105 = vector.broadcast %cst_99 : f32 to vector<4x128xf32>
      %106 = arith.maximumf %104, %105 : vector<4x128xf32>
      %c0_i32_100 = arith.constant 0 : i32
      %107 = arith.addi %c0_i32_100, %arg22 : i32
      %108 = arith.index_cast %107 : i32 to index
      %c0_101 = arith.constant 0 : index
      %c0_102 = arith.constant 0 : index
      %109 = vector.load %arg21[%108, %c0_101, %c0_102] : memref<4x4x128xf32, #tpu.memory_space<vmem>>, vector<1x4x128xf32>
      %110 = vector.shape_cast %109 : vector<1x4x128xf32> to vector<4x128xf32>
      %111 = vector.shape_cast %106 : vector<4x128xf32> to vector<1x4x128xf32>
      tpu.vector_store %arg21[%108, %c0_101, %c0_102], %111 {strides = array<i32>} : memref<4x4x128xf32, #tpu.memory_space<vmem>>, vector<1x4x128xf32>,
    }
    %c4_i32_47 = arith.constant 4 : i32
    %cst_48 = arith.constant 0.000000e+00 : f32
    %23 = vector.broadcast %cst_48 : f32 to vector<1x10xf32>
    %c0_i32_49 = arith.constant 0 : i32
    %c2_i32 = arith.constant 2 : i32
    %24 = arith.addi %c0_i32_49, %c2_i32 : i32
    %c1_i32_50 = arith.constant 1 : i32
    %25 = scf.for %arg22 = %c0_i32_49 to %24 step %c1_i32_50 iter_args(%arg23 = %23) -> (vector<1x10xf32>)  : i32 {
      %c2_i32_57 = arith.constant 2 : i32
      %31 = arith.muli %c2_i32_57, %arg22 : i32
      %32 = arith.index_cast %31 : i32 to index
      %c0_58 = arith.constant 0 : index
      %c0_59 = arith.constant 0 : index
      %33 = tpu.strided_load %arg21[%32, %c0_58, %c0_59] {strides = array<i32: 1, 2, 1>} : memref<4x4x128xf32, #tpu.memory_space<vmem>>, vector<1x2x128xf32>
      %34 = vector.shape_cast %33 : vector<1x2x128xf32> to vector<2x128xf32>
      %35 = arith.index_cast %31 : i32 to index
      %c1 = arith.constant 1 : index
      %c0_60 = arith.constant 0 : index
      %36 = tpu.strided_load %arg21[%35, %c1, %c0_60] {strides = array<i32: 1, 2, 1>} : memref<4x4x128xf32, #tpu.memory_space<vmem>>, vector<1x2x128xf32>
      %37 = vector.shape_cast %36 : vector<1x2x128xf32> to vector<2x128xf32>
      %c1_i32_61 = arith.constant 1 : i32
      %38 = arith.addi %31, %c1_i32_61 : i32
      %39 = arith.index_cast %38 : i32 to index
      %c0_62 = arith.constant 0 : index
      %c0_63 = arith.constant 0 : index
      %40 = tpu.strided_load %arg21[%39, %c0_62, %c0_63] {strides = array<i32: 1, 2, 1>} : memref<4x4x128xf32, #tpu.memory_space<vmem>>, vector<1x2x128xf32>
      %41 = vector.shape_cast %40 : vector<1x2x128xf32> to vector<2x128xf32>
      %c1_i32_64 = arith.constant 1 : i32
      %42 = arith.addi %31, %c1_i32_64 : i32
      %43 = arith.index_cast %42 : i32 to index
      %c1_65 = arith.constant 1 : index
      %c0_66 = arith.constant 0 : index
      %44 = tpu.strided_load %arg21[%43, %c1_65, %c0_66] {strides = array<i32: 1, 2, 1>} : memref<4x4x128xf32, #tpu.memory_space<vmem>>, vector<1x2x128xf32>
      %45 = vector.shape_cast %44 : vector<1x2x128xf32> to vector<2x128xf32>
      %46 = arith.addf %34, %37 : vector<2x128xf32>
      %47 = arith.addf %46, %41 : vector<2x128xf32>
      %48 = arith.addf %47, %45 : vector<2x128xf32>
      %cst_67 = arith.constant 2.500000e-01 : f32
      %49 = vector.broadcast %cst_67 : f32 to vector<2x128xf32>
      %50 = arith.mulf %48, %49 : vector<2x128xf32>
      %51 = vector.extract_strided_slice %50 {offsets = [0, 0], sizes = [1, 128], strides = [1, 1]} : vector<2x128xf32> to vector<1x128xf32>
      %52 = arith.truncf %51 : vector<1x128xf32> to vector<1x128xbf16>
      %c2_i32_68 = arith.constant 2 : i32
      %53 = arith.muli %arg22, %c2_i32_68 : i32
      %c0_i32_69 = arith.constant 0 : i32
      %54 = arith.addi %53, %c0_i32_69 : i32
      %c128_i32 = arith.constant 128 : i32
      %55 = arith.muli %54, %c128_i32 : i32
      %56 = tpu.assume_multiple %55, 128 : i32
      %57 = arith.index_cast %56 : i32 to index
      %c0_70 = arith.constant 0 : index
      %58 = vector.load %arg14[%57, %c0_70] : memref<512x10xbf16, #tpu.memory_space<vmem>>, vector<128x10xbf16>
      %cst_71 = arith.constant dense<0.000000e+00> : vector<1x10xf32>
      %59 = tpu.matmul %52, %58, %cst_71 {dimension_numbers = #tpu.dot_dimension_numbers<[1], [0], [0], [1], [0, 0, 1, 1], [], []>} : vector<1x128xbf16>, vector<128x10xbf16>, vector<1x10xf32> -> vector<1x10xf32>
      %60 = arith.addf %arg23, %59 : vector<1x10xf32>
      %61 = vector.extract_strided_slice %50 {offsets = [1, 0], sizes = [1, 128], strides = [1, 1]} : vector<2x128xf32> to vector<1x128xf32>
      %62 = arith.truncf %61 : vector<1x128xf32> to vector<1x128xbf16>
      %c2_i32_72 = arith.constant 2 : i32
      %63 = arith.muli %arg22, %c2_i32_72 : i32
      %c1_i32_73 = arith.constant 1 : i32
      %64 = arith.addi %63, %c1_i32_73 : i32
      %c128_i32_74 = arith.constant 128 : i32
      %65 = arith.muli %64, %c128_i32_74 : i32
      %66 = tpu.assume_multiple %65, 128 : i32
      %67 = arith.index_cast %66 : i32 to index
      %c0_75 = arith.constant 0 : index
      %68 = vector.load %arg14[%67, %c0_75] : memref<512x10xbf16, #tpu.memory_space<vmem>>, vector<128x10xbf16>
      %cst_76 = arith.constant dense<0.000000e+00> : vector<1x10xf32>
      %69 = tpu.matmul %62, %68, %cst_76 {dimension_numbers = #tpu.dot_dimension_numbers<[1], [0], [0], [1], [0, 0, 1, 1], [], []>} : vector<1x128xbf16>, vector<128x10xbf16>, vector<1x10xf32> -> vector<1x10xf32>
      %70 = arith.addf %60, %69 : vector<1x10xf32>
      scf.yield %70 : vector<1x10xf32>
    }
    %c2_i32_51 = arith.constant 2 : i32
    %c0_52 = arith.constant 0 : index
    %c0_53 = arith.constant 0 : index
    %26 = vector.load %arg15[%c0_52, %c0_53] : memref<1x10xf32, #tpu.memory_space<vmem>>, vector<1x10xf32>
    %27 = arith.addf %25, %26 : vector<1x10xf32>
    %c0_54 = arith.constant 0 : index
    %c0_55 = arith.constant 0 : index
    %c0_56 = arith.constant 0 : index
    %28 = vector.load %arg16[%c0_54, %c0_55, %c0_56] : memref<1x1x10xf32, #tpu.memory_space<vmem>>, vector<1x1x10xf32>
    %29 = vector.shape_cast %28 : vector<1x1x10xf32> to vector<1x10xf32>
    %30 = vector.shape_cast %27 : vector<1x10xf32> to vector<1x1x10xf32>
    tpu.vector_store %arg16[%c0_54, %c0_55, %c0_56], %30 {strides = array<i32>} : memref<1x1x10xf32, #tpu.memory_space<vmem>>, vector<1x1x10xf32>,
    return
  }
  func.func @transform_0(%arg0: i32) -> (i32, i32, i32, i32) {
    %c0_i32 = arith.constant 0 : i32
    %c0_i32_0 = arith.constant 0 : i32
    %c0_i32_1 = arith.constant 0 : i32
    %c0_i32_2 = arith.constant 0 : i32
    return %arg0, %c0_i32, %c0_i32_0, %c0_i32_1 : i32, i32, i32, i32
  }
  func.func @transform_1(%arg0: i32) -> (i32, i32) {
    %c0_i32 = arith.constant 0 : i32
    %c0_i32_0 = arith.constant 0 : i32
    %c0_i32_1 = arith.constant 0 : i32
    return %c0_i32, %c0_i32_0 : i32, i32
  }
  func.func @transform_2(%arg0: i32) -> (i32, i32) {
    %c0_i32 = arith.constant 0 : i32
    %c0_i32_0 = arith.constant 0 : i32
    %c0_i32_1 = arith.constant 0 : i32
    return %c0_i32, %c0_i32_0 : i32, i32
  }
  func.func @transform_3(%arg0: i32) -> (i32, i32) {
    %c0_i32 = arith.constant 0 : i32
    %c0_i32_0 = arith.constant 0 : i32
    %c0_i32_1 = arith.constant 0 : i32
    return %c0_i32, %c0_i32_0 : i32, i32
  }
  func.func @transform_4(%arg0: i32) -> (i32, i32) {
    %c0_i32 = arith.constant 0 : i32
    %c0_i32_0 = arith.constant 0 : i32
    %c0_i32_1 = arith.constant 0 : i32
    return %c0_i32, %c0_i32_0 : i32, i32
  }
  func.func @transform_5(%arg0: i32) -> (i32, i32) {
    %c0_i32 = arith.constant 0 : i32
    %c0_i32_0 = arith.constant 0 : i32
    %c0_i32_1 = arith.constant 0 : i32
    return %c0_i32, %c0_i32_0 : i32, i32
  }
  func.func @transform_6(%arg0: i32) -> (i32, i32) {
    %c0_i32 = arith.constant 0 : i32
    %c0_i32_0 = arith.constant 0 : i32
    %c0_i32_1 = arith.constant 0 : i32
    return %c0_i32, %c0_i32_0 : i32, i32
  }
  func.func @transform_7(%arg0: i32) -> (i32, i32) {
    %c0_i32 = arith.constant 0 : i32
    %c0_i32_0 = arith.constant 0 : i32
    %c0_i32_1 = arith.constant 0 : i32
    return %c0_i32, %c0_i32_0 : i32, i32
  }
  func.func @transform_8(%arg0: i32) -> (i32, i32) {
    %c0_i32 = arith.constant 0 : i32
    %c0_i32_0 = arith.constant 0 : i32
    %c0_i32_1 = arith.constant 0 : i32
    return %c0_i32, %c0_i32_0 : i32, i32
  }
  func.func @transform_9(%arg0: i32) -> (i32, i32) {
    %c0_i32 = arith.constant 0 : i32
    %c0_i32_0 = arith.constant 0 : i32
    %c0_i32_1 = arith.constant 0 : i32
    return %c0_i32, %c0_i32_0 : i32, i32
  }
  func.func @transform_10(%arg0: i32) -> (i32, i32) {
    %c0_i32 = arith.constant 0 : i32
    %c0_i32_0 = arith.constant 0 : i32
    %c0_i32_1 = arith.constant 0 : i32
    return %c0_i32, %c0_i32_0 : i32, i32
  }
  func.func @transform_11(%arg0: i32) -> (i32, i32) {
    %c0_i32 = arith.constant 0 : i32
    %c0_i32_0 = arith.constant 0 : i32
    %c0_i32_1 = arith.constant 0 : i32
    return %c0_i32, %c0_i32_0 : i32, i32
  }
  func.func @transform_12(%arg0: i32) -> (i32, i32) {
    %c0_i32 = arith.constant 0 : i32
    %c0_i32_0 = arith.constant 0 : i32
    %c0_i32_1 = arith.constant 0 : i32
    return %c0_i32, %c0_i32_0 : i32, i32
  }
  func.func @transform_13(%arg0: i32) -> (i32, i32) {
    %c0_i32 = arith.constant 0 : i32
    %c0_i32_0 = arith.constant 0 : i32
    %c0_i32_1 = arith.constant 0 : i32
    return %c0_i32, %c0_i32_0 : i32, i32
  }
  func.func @transform_14(%arg0: i32) -> (i32, i32) {
    %c0_i32 = arith.constant 0 : i32
    %c0_i32_0 = arith.constant 0 : i32
    %c0_i32_1 = arith.constant 0 : i32
    return %c0_i32, %c0_i32_0 : i32, i32
  }
  func.func @transform_15(%arg0: i32) -> (i32, i32, i32) {
    %c0_i32 = arith.constant 0 : i32
    %c0_i32_0 = arith.constant 0 : i32
    %c0_i32_1 = arith.constant 0 : i32
    return %arg0, %c0_i32, %c0_i32_0 : i32, i32, i32
  }
}

</mosaic_0001>

<llo_original>
// kernel: cnn_network4_forward.1
$region0: #{cnn_network4_forward.1}
  #allocation0 [shape = 'u32[]', space=smem, size = 0x4, offset = 0x4, fixed_abs, tag = 'smem constant byte address 0x4 - core index']
  #allocation1 [shape = 'u32[72,128]{1,0:T(1,128)}', space=vmem, size = 0x9000, scoped, tag = 'internal scratch']
  #allocation2 [shape = 'f32[22,22,1]{2,1,0:T(8,128)}', space=vmem, size = 0x42000, scoped, tag = 'scratch operand']
  #allocation3 [shape = 'f32[12,12,16]{2,1,0:T(8,128)}', space=vmem, size = 0x18000, scoped, tag = 'scratch operand']
  #allocation4 [shape = 'f32[6,6,32]{2,1,0:T(8,128)}', space=vmem, size = 0x6000, scoped, tag = 'scratch operand']
  #allocation5 [shape = 'f32[6,6,64]{2,1,0:T(8,128)}', space=vmem, size = 0x6000, scoped, tag = 'scratch operand']
  #allocation6 [shape = 'f32[4,4,128]{2,1,0:T(4,128)}', space=vmem, size = 0x2000, scoped, tag = 'scratch operand']
  %s0 = inlined_call_operand.vmem [shape: f32[2,16,16,1], index: 0, kind: input, shape index: {}]
  %s1 = inlined_call_operand.vmem [shape: f32[49,16], index: 1, kind: input, shape index: {}]
  %s2 = inlined_call_operand.vmem [shape: f32[1,16], index: 2, kind: input, shape index: {}]
  %s3 = inlined_call_operand.vmem [shape: f32[1,16], index: 3, kind: input, shape index: {}]
  %s4 = inlined_call_operand.vmem [shape: bf16[400,32], index: 4, kind: input, shape index: {}]
  %s5 = inlined_call_operand.vmem [shape: f32[1,32], index: 5, kind: input, shape index: {}]
  %s6 = inlined_call_operand.vmem [shape: f32[1,32], index: 6, kind: input, shape index: {}]
  %s7 = inlined_call_operand.vmem [shape: bf16[288,64], index: 7, kind: input, shape index: {}]
  %s8 = inlined_call_operand.vmem [shape: f32[1,64], index: 8, kind: input, shape index: {}]
  %s9 = inlined_call_operand.vmem [shape: f32[1,64], index: 9, kind: input, shape index: {}]
  %s10 = inlined_call_operand.vmem [shape: bf16[576,128], index: 10, kind: input, shape index: {}]
  %s11 = inlined_call_operand.vmem [shape: f32[1,128], index: 11, kind: input, shape index: {}]
  %s12 = inlined_call_operand.vmem [shape: f32[1,128], index: 12, kind: input, shape index: {}]
  %s13 = inlined_call_operand.vmem [shape: bf16[512,10], index: 13, kind: input, shape index: {}]
  %s14 = inlined_call_operand.vmem [shape: f32[1,10], index: 14, kind: input, shape index: {}]
  %s15 = inlined_call_operand.hbm [shape: f32[2,1,10], index: 15, kind: output, shape index: {}]
  %s16 = sld [smem:[#allocation0]]
  $region128: #{cnn_network4_forward.1} parent=0
    _
  %s18 = ssub.s32 1, %s16
  %s19 = scalar_select 0, %s18, %s16
  $region1: #{cnn_network4_forward.1} parent=0
    #allocation7 [shape = 'u8[1024]{0}', space=vmem, size = 0x400, scoped, tag = 'output window, operand 0']
    #allocation8 [shape = 's32[2]{0}', space=sflag, size = 0x8, scoped, tag = 'scoped memory for cnn_network4_forward.1']
    %20 = vsyncpa [#allocation8], 0
    %s21 = scalar_lea.sflag [#allocation8], 1
    %22 = vsyncpa %s21, 0
    loop: start=0, step=1, limit=4
    $region2: #{cnn_network4_forward.1} parent=1 // loop_pre_header
      _
    $region3: #{cnn_network4_forward.1} parent=1 // loop_header
      %s24 = sphi 0, %s28
      %p25 = scmp.ge.s32.totalorder %s24, 4
      %s34 = sphi 0, %s36
      %s37 = sphi 0, %s34
      %s38 = sphi 0, %s37
      %s54 = sphi 0, %s38
      %s58 = sphi 0, %s58
      %s60 = sphi 0, %s58
      %s61 = sphi 0, %s60
      %s75 = sphi 0, %s61
      %s79 = sphi 0, %s79
      %s81 = sphi 0, %s79
      %s82 = sphi 0, %s81
      %s96 = sphi 0, %s82
      %s100 = sphi 0, %s100
      %s102 = sphi 0, %s100
      %s103 = sphi 0, %s102
      %s117 = sphi 0, %s103
      %s121 = sphi 0, %s121
      %s123 = sphi 0, %s121
      %s124 = sphi 0, %s123
      %s138 = sphi 0, %s124
      %s142 = sphi 0, %s142
      %s144 = sphi 0, %s142
      %s145 = sphi 0, %s144
      %s159 = sphi 0, %s145
      %s163 = sphi 0, %s163
      %s165 = sphi 0, %s163
      %s166 = sphi 0, %s165
      %s180 = sphi 0, %s166
      %s184 = sphi 0, %s184
      %s186 = sphi 0, %s184
      %s187 = sphi 0, %s186
      %s201 = sphi 0, %s187
      %s205 = sphi 0, %s205
      %s207 = sphi 0, %s205
      %s208 = sphi 0, %s207
      %s222 = sphi 0, %s208
      %s226 = sphi 0, %s226
      %s228 = sphi 0, %s226
      %s229 = sphi 0, %s228
      %s243 = sphi 0, %s229
      %s247 = sphi 0, %s247
      %s249 = sphi 0, %s247
      %s250 = sphi 0, %s249
      %s264 = sphi 0, %s250
      %s268 = sphi 0, %s268
      %s270 = sphi 0, %s268
      %s271 = sphi 0, %s270
      %s285 = sphi 0, %s271
      %s289 = sphi 0, %s289
      %s291 = sphi 0, %s289
      %s292 = sphi 0, %s291
      %s306 = sphi 0, %s292
      %s310 = sphi 0, %s310
      %s312 = sphi 0, %s310
      %s313 = sphi 0, %s312
      %s327 = sphi 0, %s313
      %s331 = sphi 0, %s331
      %s333 = sphi 0, %s331
      %s334 = sphi 0, %s333
      %s348 = sphi 0, %s334
      %s354 = sphi 0, %s356
      %s357 = sphi 0, %s354
      %s358 = sphi 0, %s357
      %s374 = sphi 0, %s358
    $region4: #{cnn_network4_forward.1} parent=1 // loop_header_branch
      %27 = sbr.rel (%p25) target = $region8
    $region5: #{cnn_network4_forward.1} parent=1 // loop_body
      %s29 = ssub.s32 %s24, 1
      %s30 = ssub.s32 %s24, 2
      %s31 = sadd.s32 %s24, 1
      %s32 = ssub.s32 %s24, %s31
      %p33 = scmp.eq.s32.totalorder %s32, 0
      %s35 = sadd.s32 %s34, 1
      %s36 = scalar_select %p33, %s34, %s35
      %p39 = pneg %p33
      %p40 = scmp.eq.s32.totalorder %s24, 1
      %p41 = por %p39, %p40
      %p42 = scmp.ne.s32.totalorder %s34, %s37
      %p43 = scmp.eq.s32.totalorder %s24, 0
      %p44 = por %p42, %p43
      %p45 = scmp.ne.s32.totalorder %s34, %s37
      %p46 = scmp.eq.s32.totalorder %s29, 1
      %p47 = por %p45, %p46
      %p48 = scmp.ne.s32.totalorder %s37, %s38
      %p49 = scmp.eq.s32.totalorder %s29, 0
      %p50 = por %p48, %p49
      %p51 = scmp.ne.s32.totalorder %s37, %s38
      %p52 = scmp.eq.s32.totalorder %s30, 1
      %p53 = por %p51, %p52
      %p55 = scmp.ne.s32.totalorder %s38, %s54
      %p56 = scmp.eq.s32.totalorder %s30, 0
      %p57 = por %p55, %p56
      %s59 = sadd.s32 %s58, 1
      %p62 = scmp.eq.s32.totalorder %s24, 1
      %p63 = scmp.ne.s32.totalorder %s58, %s60
      %p64 = scmp.eq.s32.totalorder %s24, 0
      %p65 = por %p63, %p64
      %p66 = scmp.ne.s32.totalorder %s58, %s60
      %p67 = scmp.eq.s32.totalorder %s29, 1
      %p68 = por %p66, %p67
      %p69 = scmp.ne.s32.totalorder %s60, %s61
      %p70 = scmp.eq.s32.totalorder %s29, 0
      %p71 = por %p69, %p70
      %p72 = scmp.ne.s32.totalorder %s60, %s61
      %p73 = scmp.eq.s32.totalorder %s30, 1
      %p74 = por %p72, %p73
      %p76 = scmp.ne.s32.totalorder %s61, %s75
      %p77 = scmp.eq.s32.totalorder %s30, 0
      %p78 = por %p76, %p77
      %s80 = sadd.s32 %s79, 1
      %p83 = scmp.eq.s32.totalorder %s24, 1
      %p84 = scmp.ne.s32.totalorder %s79, %s81
      %p85 = scmp.eq.s32.totalorder %s24, 0
      %p86 = por %p84, %p85
      %p87 = scmp.ne.s32.totalorder %s79, %s81
      %p88 = scmp.eq.s32.totalorder %s29, 1
      %p89 = por %p87, %p88
      %p90 = scmp.ne.s32.totalorder %s81, %s82
      %p91 = scmp.eq.s32.totalorder %s29, 0
      %p92 = por %p90, %p91
      %p93 = scmp.ne.s32.totalorder %s81, %s82
      %p94 = scmp.eq.s32.totalorder %s30, 1
      %p95 = por %p93, %p94
      %p97 = scmp.ne.s32.totalorder %s82, %s96
      %p98 = scmp.eq.s32.totalorder %s30, 0
      %p99 = por %p97, %p98
      %s101 = sadd.s32 %s100, 1
      %p104 = scmp.eq.s32.totalorder %s24, 1
      %p105 = scmp.ne.s32.totalorder %s100, %s102
      %p106 = scmp.eq.s32.totalorder %s24, 0
      %p107 = por %p105, %p106
      %p108 = scmp.ne.s32.totalorder %s100, %s102
      %p109 = scmp.eq.s32.totalorder %s29, 1
      %p110 = por %p108, %p109
      %p111 = scmp.ne.s32.totalorder %s102, %s103
      %p112 = scmp.eq.s32.totalorder %s29, 0
      %p113 = por %p111, %p112
      %p114 = scmp.ne.s32.totalorder %s102, %s103
      %p115 = scmp.eq.s32.totalorder %s30, 1
      %p116 = por %p114, %p115
      %p118 = scmp.ne.s32.totalorder %s103, %s117
      %p119 = scmp.eq.s32.totalorder %s30, 0
      %p120 = por %p118, %p119
      %s122 = sadd.s32 %s121, 1
      %p125 = scmp.eq.s32.totalorder %s24, 1
      %p126 = scmp.ne.s32.totalorder %s121, %s123
      %p127 = scmp.eq.s32.totalorder %s24, 0
      %p128 = por %p126, %p127
      %p129 = scmp.ne.s32.totalorder %s121, %s123
      %p130 = scmp.eq.s32.totalorder %s29, 1
      %p131 = por %p129, %p130
      %p132 = scmp.ne.s32.totalorder %s123, %s124
      %p133 = scmp.eq.s32.totalorder %s29, 0
      %p134 = por %p132, %p133
      %p135 = scmp.ne.s32.totalorder %s123, %s124
      %p136 = scmp.eq.s32.totalorder %s30, 1
      %p137 = por %p135, %p136
      %p139 = scmp.ne.s32.totalorder %s124, %s138
      %p140 = scmp.eq.s32.totalorder %s30, 0
      %p141 = por %p139, %p140
      %s143 = sadd.s32 %s142, 1
      %p146 = scmp.eq.s32.totalorder %s24, 1
      %p147 = scmp.ne.s32.totalorder %s142, %s144
      %p148 = scmp.eq.s32.totalorder %s24, 0
      %p149 = por %p147, %p148
      %p150 = scmp.ne.s32.totalorder %s142, %s144
      %p151 = scmp.eq.s32.totalorder %s29, 1
      %p152 = por %p150, %p151
      %p153 = scmp.ne.s32.totalorder %s144, %s145
      %p154 = scmp.eq.s32.totalorder %s29, 0
      %p155 = por %p153, %p154
      %p156 = scmp.ne.s32.totalorder %s144, %s145
      %p157 = scmp.eq.s32.totalorder %s30, 1
      %p158 = por %p156, %p157
      %p160 = scmp.ne.s32.totalorder %s145, %s159
      %p161 = scmp.eq.s32.totalorder %s30, 0
      %p162 = por %p160, %p161
      %s164 = sadd.s32 %s163, 1
      %p167 = scmp.eq.s32.totalorder %s24, 1
      %p168 = scmp.ne.s32.totalorder %s163, %s165
      %p169 = scmp.eq.s32.totalorder %s24, 0
      %p170 = por %p168, %p169
      %p171 = scmp.ne.s32.totalorder %s163, %s165
      %p172 = scmp.eq.s32.totalorder %s29, 1
      %p173 = por %p171, %p172
      %p174 = scmp.ne.s32.totalorder %s165, %s166
      %p175 = scmp.eq.s32.totalorder %s29, 0
      %p176 = por %p174, %p175
      %p177 = scmp.ne.s32.totalorder %s165, %s166
      %p178 = scmp.eq.s32.totalorder %s30, 1
      %p179 = por %p177, %p178
      %p181 = scmp.ne.s32.totalorder %s166, %s180
      %p182 = scmp.eq.s32.totalorder %s30, 0
      %p183 = por %p181, %p182
      %s185 = sadd.s32 %s184, 1
      %p188 = scmp.eq.s32.totalorder %s24, 1
      %p189 = scmp.ne.s32.totalorder %s184, %s186
      %p190 = scmp.eq.s32.totalorder %s24, 0
      %p191 = por %p189, %p190
      %p192 = scmp.ne.s32.totalorder %s184, %s186
      %p193 = scmp.eq.s32.totalorder %s29, 1
      %p194 = por %p192, %p193
      %p195 = scmp.ne.s32.totalorder %s186, %s187
      %p196 = scmp.eq.s32.totalorder %s29, 0
      %p197 = por %p195, %p196
      %p198 = scmp.ne.s32.totalorder %s186, %s187
      %p199 = scmp.eq.s32.totalorder %s30, 1
      %p200 = por %p198, %p199
      %p202 = scmp.ne.s32.totalorder %s187, %s201
      %p203 = scmp.eq.s32.totalorder %s30, 0
      %p204 = por %p202, %p203
      %s206 = sadd.s32 %s205, 1
      %p209 = scmp.eq.s32.totalorder %s24, 1
      %p210 = scmp.ne.s32.totalorder %s205, %s207
      %p211 = scmp.eq.s32.totalorder %s24, 0
      %p212 = por %p210, %p211
      %p213 = scmp.ne.s32.totalorder %s205, %s207
      %p214 = scmp.eq.s32.totalorder %s29, 1
      %p215 = por %p213, %p214
      %p216 = scmp.ne.s32.totalorder %s207, %s208
      %p217 = scmp.eq.s32.totalorder %s29, 0
      %p218 = por %p216, %p217
      %p219 = scmp.ne.s32.totalorder %s207, %s208
      %p220 = scmp.eq.s32.totalorder %s30, 1
      %p221 = por %p219, %p220
      %p223 = scmp.ne.s32.totalorder %s208, %s222
      %p224 = scmp.eq.s32.totalorder %s30, 0
      %p225 = por %p223, %p224
      %s227 = sadd.s32 %s226, 1
      %p230 = scmp.eq.s32.totalorder %s24, 1
      %p231 = scmp.ne.s32.totalorder %s226, %s228
      %p232 = scmp.eq.s32.totalorder %s24, 0
      %p233 = por %p231, %p232
      %p234 = scmp.ne.s32.totalorder %s226, %s228
      %p235 = scmp.eq.s32.totalorder %s29, 1
      %p236 = por %p234, %p235
      %p237 = scmp.ne.s32.totalorder %s228, %s229
      %p238 = scmp.eq.s32.totalorder %s29, 0
      %p239 = por %p237, %p238
      %p240 = scmp.ne.s32.totalorder %s228, %s229
      %p241 = scmp.eq.s32.totalorder %s30, 1
      %p242 = por %p240, %p241
      %p244 = scmp.ne.s32.totalorder %s229, %s243
      %p245 = scmp.eq.s32.totalorder %s30, 0
      %p246 = por %p244, %p245
      %s248 = sadd.s32 %s247, 1
      %p251 = scmp.eq.s32.totalorder %s24, 1
      %p252 = scmp.ne.s32.totalorder %s247, %s249
      %p253 = scmp.eq.s32.totalorder %s24, 0
      %p254 = por %p252, %p253
      %p255 = scmp.ne.s32.totalorder %s247, %s249
      %p256 = scmp.eq.s32.totalorder %s29, 1
      %p257 = por %p255, %p256
      %p258 = scmp.ne.s32.totalorder %s249, %s250
      %p259 = scmp.eq.s32.totalorder %s29, 0
      %p260 = por %p258, %p259
      %p261 = scmp.ne.s32.totalorder %s249, %s250
      %p262 = scmp.eq.s32.totalorder %s30, 1
      %p263 = por %p261, %p262
      %p265 = scmp.ne.s32.totalorder %s250, %s264
      %p266 = scmp.eq.s32.totalorder %s30, 0
      %p267 = por %p265, %p266
      %s269 = sadd.s32 %s268, 1
      %p272 = scmp.eq.s32.totalorder %s24, 1
      %p273 = scmp.ne.s32.totalorder %s268, %s270
      %p274 = scmp.eq.s32.totalorder %s24, 0
      %p275 = por %p273, %p274
      %p276 = scmp.ne.s32.totalorder %s268, %s270
      %p277 = scmp.eq.s32.totalorder %s29, 1
      %p278 = por %p276, %p277
      %p279 = scmp.ne.s32.totalorder %s270, %s271
      %p280 = scmp.eq.s32.totalorder %s29, 0
      %p281 = por %p279, %p280
      %p282 = scmp.ne.s32.totalorder %s270, %s271
      %p283 = scmp.eq.s32.totalorder %s30, 1
      %p284 = por %p282, %p283
      %p286 = scmp.ne.s32.totalorder %s271, %s285
      %p287 = scmp.eq.s32.totalorder %s30, 0
      %p288 = por %p286, %p287
      %s290 = sadd.s32 %s289, 1
      %p293 = scmp.eq.s32.totalorder %s24, 1
      %p294 = scmp.ne.s32.totalorder %s289, %s291
      %p295 = scmp.eq.s32.totalorder %s24, 0
      %p296 = por %p294, %p295
      %p297 = scmp.ne.s32.totalorder %s289, %s291
      %p298 = scmp.eq.s32.totalorder %s29, 1
      %p299 = por %p297, %p298
      %p300 = scmp.ne.s32.totalorder %s291, %s292
      %p301 = scmp.eq.s32.totalorder %s29, 0
      %p302 = por %p300, %p301
      %p303 = scmp.ne.s32.totalorder %s291, %s292
      %p304 = scmp.eq.s32.totalorder %s30, 1
      %p305 = por %p303, %p304
      %p307 = scmp.ne.s32.totalorder %s292, %s306
      %p308 = scmp.eq.s32.totalorder %s30, 0
      %p309 = por %p307, %p308
      %s311 = sadd.s32 %s310, 1
      %p314 = scmp.eq.s32.totalorder %s24, 1
      %p315 = scmp.ne.s32.totalorder %s310, %s312
      %p316 = scmp.eq.s32.totalorder %s24, 0
      %p317 = por %p315, %p316
      %p318 = scmp.ne.s32.totalorder %s310, %s312
      %p319 = scmp.eq.s32.totalorder %s29, 1
      %p320 = por %p318, %p319
      %p321 = scmp.ne.s32.totalorder %s312, %s313
      %p322 = scmp.eq.s32.totalorder %s29, 0
      %p323 = por %p321, %p322
      %p324 = scmp.ne.s32.totalorder %s312, %s313
      %p325 = scmp.eq.s32.totalorder %s30, 1
      %p326 = por %p324, %p325
      %p328 = scmp.ne.s32.totalorder %s313, %s327
      %p329 = scmp.eq.s32.totalorder %s30, 0
      %p330 = por %p328, %p329
      %s332 = sadd.s32 %s331, 1
      %p335 = scmp.eq.s32.totalorder %s24, 1
      %p336 = scmp.ne.s32.totalorder %s331, %s333
      %p337 = scmp.eq.s32.totalorder %s24, 0
      %p338 = por %p336, %p337
      %p339 = scmp.ne.s32.totalorder %s331, %s333
      %p340 = scmp.eq.s32.totalorder %s29, 1
      %p341 = por %p339, %p340
      %p342 = scmp.ne.s32.totalorder %s333, %s334
      %p343 = scmp.eq.s32.totalorder %s29, 0
      %p344 = por %p342, %p343
      %p345 = scmp.ne.s32.totalorder %s333, %s334
      %p346 = scmp.eq.s32.totalorder %s30, 1
      %p347 = por %p345, %p346
      %p349 = scmp.ne.s32.totalorder %s334, %s348
      %p350 = scmp.eq.s32.totalorder %s30, 0
      %p351 = por %p349, %p350
      %s352 = ssub.s32 %s24, %s31
      %p353 = scmp.eq.s32.totalorder %s352, 0
      %s355 = sadd.s32 %s354, 1
      %s356 = scalar_select %p353, %s354, %s355
      %p359 = pneg %p353
      %p360 = scmp.eq.s32.totalorder %s24, 1
      %p361 = por %p359, %p360
      %p362 = scmp.ne.s32.totalorder %s354, %s357
      %p363 = scmp.eq.s32.totalorder %s24, 0
      %p364 = por %p362, %p363
      %p365 = scmp.ne.s32.totalorder %s354, %s357
      %p366 = scmp.eq.s32.totalorder %s29, 1
      %p367 = por %p365, %p366
      %p368 = scmp.ne.s32.totalorder %s357, %s358
      %p369 = scmp.eq.s32.totalorder %s29, 0
      %p370 = por %p368, %p369
      %p371 = scmp.ne.s32.totalorder %s357, %s358
      %p372 = scmp.eq.s32.totalorder %s30, 1
      %p373 = por %p371, %p372
      %p375 = scmp.ne.s32.totalorder %s358, %s374
      %p376 = scmp.eq.s32.totalorder %s30, 0
      %p377 = por %p375, %p376
      %p378 = scmp.le.s32.totalorder 1, %s24
      %p379 = scmp.lt.s32.totalorder %s24, 3
      %p380 = pnand %p378, %p379
      %p381 = pneg %p380
      // Predicated region
      $region9: #{cnn_network4_forward.1} parent=5 // pred_check
        _
      $region10: #{cnn_network4_forward.1} parent=5 // pred_check_branch
        %383 = sbr.rel (%p380) target = $region12
      $region11: #{cnn_network4_forward.1} parent=5 // pred_region
        %s384 = ssub.s32 %s24, 1
        // Predicated region
        $region13: #{cnn_network4_forward.1} parent=11 // pred_check
          %p385 = pneg %p71
        $region14: #{cnn_network4_forward.1} parent=11 // pred_check_branch
          %387 = sbr.rel (%p385) target = $region16
        $region15: #{cnn_network4_forward.1} parent=11 // pred_region
          _
        $region16: #{cnn_network4_forward.1} parent=11 // pred_fallthru
          _
        // Predicated region
        $region17: #{cnn_network4_forward.1} parent=11 // pred_check
          %p388 = pneg %p92
        $region18: #{cnn_network4_forward.1} parent=11 // pred_check_branch
          %390 = sbr.rel (%p388) target = $region20
        $region19: #{cnn_network4_forward.1} parent=11 // pred_region
          _
        $region20: #{cnn_network4_forward.1} parent=11 // pred_fallthru
          _
        // Predicated region
        $region21: #{cnn_network4_forward.1} parent=11 // pred_check
          %p391 = pneg %p113
        $region22: #{cnn_network4_forward.1} parent=11 // pred_check_branch
          %393 = sbr.rel (%p391) target = $region24
        $region23: #{cnn_network4_forward.1} parent=11 // pred_region
          _
        $region24: #{cnn_network4_forward.1} parent=11 // pred_fallthru
          _
        // Predicated region
        $region25: #{cnn_network4_forward.1} parent=11 // pred_check
          %p394 = pneg %p134
        $region26: #{cnn_network4_forward.1} parent=11 // pred_check_branch
          %396 = sbr.rel (%p394) target = $region28
        $region27: #{cnn_network4_forward.1} parent=11 // pred_region
          _
        $region28: #{cnn_network4_forward.1} parent=11 // pred_fallthru
          _
        // Predicated region
        $region29: #{cnn_network4_forward.1} parent=11 // pred_check
          %p397 = pneg %p155
        $region30: #{cnn_network4_forward.1} parent=11 // pred_check_branch
          %399 = sbr.rel (%p397) target = $region32
        $region31: #{cnn_network4_forward.1} parent=11 // pred_region
          _
        $region32: #{cnn_network4_forward.1} parent=11 // pred_fallthru
          _
        // Predicated region
        $region33: #{cnn_network4_forward.1} parent=11 // pred_check
          %p400 = pneg %p176
        $region34: #{cnn_network4_forward.1} parent=11 // pred_check_branch
          %402 = sbr.rel (%p400) target = $region36
        $region35: #{cnn_network4_forward.1} parent=11 // pred_region
          _
        $region36: #{cnn_network4_forward.1} parent=11 // pred_fallthru
          _
        // Predicated region
        $region37: #{cnn_network4_forward.1} parent=11 // pred_check
          %p403 = pneg %p197
        $region38: #{cnn_network4_forward.1} parent=11 // pred_check_branch
          %405 = sbr.rel (%p403) target = $region40
        $region39: #{cnn_network4_forward.1} parent=11 // pred_region
          _
        $region40: #{cnn_network4_forward.1} parent=11 // pred_fallthru
          _
        // Predicated region
        $region41: #{cnn_network4_forward.1} parent=11 // pred_check
          %p406 = pneg %p218
        $region42: #{cnn_network4_forward.1} parent=11 // pred_check_branch
          %408 = sbr.rel (%p406) target = $region44
        $region43: #{cnn_network4_forward.1} parent=11 // pred_region
          _
        $region44: #{cnn_network4_forward.1} parent=11 // pred_fallthru
          _
        // Predicated region
        $region45: #{cnn_network4_forward.1} parent=11 // pred_check
          %p409 = pneg %p239
        $region46: #{cnn_network4_forward.1} parent=11 // pred_check_branch
          %411 = sbr.rel (%p409) target = $region48
        $region47: #{cnn_network4_forward.1} parent=11 // pred_region
          _
        $region48: #{cnn_network4_forward.1} parent=11 // pred_fallthru
          _
        // Predicated region
        $region49: #{cnn_network4_forward.1} parent=11 // pred_check
          %p412 = pneg %p260
        $region50: #{cnn_network4_forward.1} parent=11 // pred_check_branch
          %414 = sbr.rel (%p412) target = $region52
        $region51: #{cnn_network4_forward.1} parent=11 // pred_region
          _
        $region52: #{cnn_network4_forward.1} parent=11 // pred_fallthru
          _
        // Predicated region
        $region53: #{cnn_network4_forward.1} parent=11 // pred_check
          %p415 = pneg %p281
        $region54: #{cnn_network4_forward.1} parent=11 // pred_check_branch
          %417 = sbr.rel (%p415) target = $region56
        $region55: #{cnn_network4_forward.1} parent=11 // pred_region
          _
        $region56: #{cnn_network4_forward.1} parent=11 // pred_fallthru
          _
        // Predicated region
        $region57: #{cnn_network4_forward.1} parent=11 // pred_check
          %p418 = pneg %p302
        $region58: #{cnn_network4_forward.1} parent=11 // pred_check_branch
          %420 = sbr.rel (%p418) target = $region60
        $region59: #{cnn_network4_forward.1} parent=11 // pred_region
          _
        $region60: #{cnn_network4_forward.1} parent=11 // pred_fallthru
          _
        // Predicated region
        $region61: #{cnn_network4_forward.1} parent=11 // pred_check
          %p421 = pneg %p323
        $region62: #{cnn_network4_forward.1} parent=11 // pred_check_branch
          %423 = sbr.rel (%p421) target = $region64
        $region63: #{cnn_network4_forward.1} parent=11 // pred_region
          _
        $region64: #{cnn_network4_forward.1} parent=11 // pred_fallthru
          _
        // Predicated region
        $region65: #{cnn_network4_forward.1} parent=11 // pred_check
          %p424 = pneg %p344
        $region66: #{cnn_network4_forward.1} parent=11 // pred_check_branch
          %426 = sbr.rel (%p424) target = $region68
        $region67: #{cnn_network4_forward.1} parent=11 // pred_region
          _
        $region68: #{cnn_network4_forward.1} parent=11 // pred_fallthru
          _
      $region12: #{cnn_network4_forward.1} parent=5 // pred_fallthru
        _
      %p427 = scmp.lt.s32.totalorder %s24, 2
      // Predicated region
      $region69: #{cnn_network4_forward.1} parent=5 // pred_check
        %p428 = pneg %p427
      $region70: #{cnn_network4_forward.1} parent=5 // pred_check_branch
        %430 = sbr.rel (%p428) target = $region72
      $region71: #{cnn_network4_forward.1} parent=5 // pred_region
        // Predicated region
        $region73: #{cnn_network4_forward.1} parent=71 // pred_check
          %p431 = pneg %p44
        $region74: #{cnn_network4_forward.1} parent=71 // pred_check_branch
          %433 = sbr.rel (%p431) target = $region76
        $region75: #{cnn_network4_forward.1} parent=71 // pred_region
          %p434 = scmp.lt.s32.totalorder %s24, 1
          %s435 = scalar_select %p434, %s24, 1
          %s436 = smul.addr %s435, 32
          %s437 = smul.addr %s436, 8
          %s438 = scalar_lea.vmem %s0, %s437
        $region76: #{cnn_network4_forward.1} parent=71 // pred_fallthru
          _
      $region72: #{cnn_network4_forward.1} parent=5 // pred_fallthru
        _
      %p439 = scmp.le.s32.totalorder 1, %s24
      %p440 = scmp.lt.s32.totalorder %s24, 3
      %p441 = pnand %p439, %p440
      %p442 = pneg %p441
      // Predicated region
      $region77: #{cnn_network4_forward.1} parent=5 // pred_check
        _
      $region78: #{cnn_network4_forward.1} parent=5 // pred_check_branch
        %444 = sbr.rel (%p441) target = $region80
      $region79: #{cnn_network4_forward.1} parent=5 // pred_region
        %s445 = ssub.s32 %s24, 1
        %p446 = scmp.lt.s32.totalorder %s29, 1
        %s447 = scalar_select %p446, %s29, 1
        %s448 = smul.addr %s447, 32
        %s449 = smul.addr %s448, 8
        %s450 = scalar_lea.vmem %s0, %s449
        %p451 = pneg %p50
        %p452 = pneg %p47
        %p453 = pneg %p71
        %p454 = pneg %p68
        %p455 = pneg %p92
        %p456 = pneg %p89
        %p457 = pneg %p113
        %p458 = pneg %p110
        %p459 = pneg %p134
        %p460 = pneg %p131
        %p461 = pneg %p155
        %p462 = pneg %p152
        %p463 = pneg %p176
        %p464 = pneg %p173
        %p465 = pneg %p197
        %p466 = pneg %p194
        %p467 = pneg %p218
        %p468 = pneg %p215
        %p469 = pneg %p239
        %p470 = pneg %p236
        %p471 = pneg %p260
        %p472 = pneg %p257
        %p473 = pneg %p281
        %p474 = pneg %p278
        %p475 = pneg %p302
        %p476 = pneg %p299
        %p477 = pneg %p323
        %p478 = pneg %p320
        %p479 = pneg %p344
        %p480 = pneg %p341
        %p481 = pneg %p370
        %p482 = pneg %p367
        %s483 = sand.u32 %s357, 1
        %s484 = scalar_lea.sflag [#allocation8], %s483
        %s485 = sand.u32 %s357, 1
        %s486 = scalar_lea.vmem [#allocation7], %s485
        %p487 = scmp.lt.s32.totalorder %s29, 1
        %s488 = scalar_select %p487, %s29, 1
        %s489 = smul.addr %s488, 32
        %s490 = smul.addr %s489, 8
        %s491 = scalar_lea.vmem %s0, %s490
        %vm493 = vcmask 7168
        %494 = vst.msk [vmem:[#allocation2] sm:$0xff] %vm493, 0.0
        %495 = vst.msk [vmem:[#allocation2 + $0x8] sm:$0xff] %vm493, 0.0
        %vm496 = vcmask 5120
        %497 = vst.msk [vmem:[#allocation2 + $0x10] sm:$0x3f] %vm496, 0.0
        %498 = vst.msk [vmem:[#allocation2 + $0x18] sm:$0xff] %vm493, 0.0
        %499 = vst.msk [vmem:[#allocation2 + $0x20] sm:$0xff] %vm493, 0.0
        %500 = vst.msk [vmem:[#allocation2 + $0x28] sm:$0x3f] %vm496, 0.0
        %501 = vst.msk [vmem:[#allocation2 + $0x30] sm:$0xff] %vm493, 0.0
        %502 = vst.msk [vmem:[#allocation2 + $0x38] sm:$0xff] %vm493, 0.0
        %503 = vst.msk [vmem:[#allocation2 + $0x40] sm:$0x3f] %vm496, 0.0
        %504 = vst.msk [vmem:[#allocation2 + $0x48] sm:$0xff] %vm493, 0.0
        %505 = vst.msk [vmem:[#allocation2 + $0x50] sm:$0xff] %vm493, 0.0
        %506 = vst.msk [vmem:[#allocation2 + $0x58] sm:$0x3f] %vm496, 0.0
        %507 = vst.msk [vmem:[#allocation2 + $0x60] sm:$0xff] %vm493, 0.0
        %508 = vst.msk [vmem:[#allocation2 + $0x68] sm:$0xff] %vm493, 0.0
        %509 = vst.msk [vmem:[#allocation2 + $0x70] sm:$0x3f] %vm496, 0.0
        %510 = vst.msk [vmem:[#allocation2 + $0x78] sm:$0xff] %vm493, 0.0
        %511 = vst.msk [vmem:[#allocation2 + $0x80] sm:$0xff] %vm493, 0.0
        %512 = vst.msk [vmem:[#allocation2 + $0x88] sm:$0x3f] %vm496, 0.0
        %513 = vst.msk [vmem:[#allocation2 + $0x90] sm:$0xff] %vm493, 0.0
        %514 = vst.msk [vmem:[#allocation2 + $0x98] sm:$0xff] %vm493, 0.0
        %515 = vst.msk [vmem:[#allocation2 + $0xa0] sm:$0x3f] %vm496, 0.0
        %516 = vst.msk [vmem:[#allocation2 + $0xa8] sm:$0xff] %vm493, 0.0
        %517 = vst.msk [vmem:[#allocation2 + $0xb0] sm:$0xff] %vm493, 0.0
        %518 = vst.msk [vmem:[#allocation2 + $0xb8] sm:$0x3f] %vm496, 0.0
        %519 = vst.msk [vmem:[#allocation2 + $0xc0] sm:$0xff] %vm493, 0.0
        %520 = vst.msk [vmem:[#allocation2 + $0xc8] sm:$0xff] %vm493, 0.0
        %521 = vst.msk [vmem:[#allocation2 + $0xd0] sm:$0x3f] %vm496, 0.0
        %522 = vst.msk [vmem:[#allocation2 + $0xd8] sm:$0xff] %vm493, 0.0
        %523 = vst.msk [vmem:[#allocation2 + $0xe0] sm:$0xff] %vm493, 0.0
        %524 = vst.msk [vmem:[#allocation2 + $0xe8] sm:$0x3f] %vm496, 0.0
        %525 = vst.msk [vmem:[#allocation2 + $0xf0] sm:$0xff] %vm493, 0.0
        %526 = vst.msk [vmem:[#allocation2 + $0xf8] sm:$0xff] %vm493, 0.0
        %527 = vst.msk [vmem:[#allocation2 + $0x100] sm:$0x3f] %vm496, 0.0
        %528 = vst.msk [vmem:[#allocation2 + $0x108] sm:$0xff] %vm493, 0.0
        %529 = vst.msk [vmem:[#allocation2 + $0x110] sm:$0xff] %vm493, 0.0
        %530 = vst.msk [vmem:[#allocation2 + $0x118] sm:$0x3f] %vm496, 0.0
        %531 = vst.msk [vmem:[#allocation2 + $0x120] sm:$0xff] %vm493, 0.0
        %532 = vst.msk [vmem:[#allocation2 + $0x128] sm:$0xff] %vm493, 0.0
        %533 = vst.msk [vmem:[#allocation2 + $0x130] sm:$0x3f] %vm496, 0.0
        %534 = vst.msk [vmem:[#allocation2 + $0x138] sm:$0xff] %vm493, 0.0
        %535 = vst.msk [vmem:[#allocation2 + $0x140] sm:$0xff] %vm493, 0.0
        %536 = vst.msk [vmem:[#allocation2 + $0x148] sm:$0x3f] %vm496, 0.0
        %537 = vst.msk [vmem:[#allocation2 + $0x150] sm:$0xff] %vm493, 0.0
        %538 = vst.msk [vmem:[#allocation2 + $0x158] sm:$0xff] %vm493, 0.0
        %539 = vst.msk [vmem:[#allocation2 + $0x160] sm:$0x3f] %vm496, 0.0
        %540 = vst.msk [vmem:[#allocation2 + $0x168] sm:$0xff] %vm493, 0.0
        %541 = vst.msk [vmem:[#allocation2 + $0x170] sm:$0xff] %vm493, 0.0
        %542 = vst.msk [vmem:[#allocation2 + $0x178] sm:$0x3f] %vm496, 0.0
        %543 = vst.msk [vmem:[#allocation2 + $0x180] sm:$0xff] %vm493, 0.0
        %544 = vst.msk [vmem:[#allocation2 + $0x188] sm:$0xff] %vm493, 0.0
        %545 = vst.msk [vmem:[#allocation2 + $0x190] sm:$0x3f] %vm496, 0.0
        %546 = vst.msk [vmem:[#allocation2 + $0x198] sm:$0xff] %vm493, 0.0
        %547 = vst.msk [vmem:[#allocation2 + $0x1a0] sm:$0xff] %vm493, 0.0
        %548 = vst.msk [vmem:[#allocation2 + $0x1a8] sm:$0x3f] %vm496, 0.0
        %549 = vst.msk [vmem:[#allocation2 + $0x1b0] sm:$0xff] %vm493, 0.0
        %550 = vst.msk [vmem:[#allocation2 + $0x1b8] sm:$0xff] %vm493, 0.0
        %551 = vst.msk [vmem:[#allocation2 + $0x1c0] sm:$0x3f] %vm496, 0.0
        %552 = vst.msk [vmem:[#allocation2 + $0x1c8] sm:$0xff] %vm493, 0.0
        %553 = vst.msk [vmem:[#allocation2 + $0x1d0] sm:$0xff] %vm493, 0.0
        %554 = vst.msk [vmem:[#allocation2 + $0x1d8] sm:$0x3f] %vm496, 0.0
        %555 = vst.msk [vmem:[#allocation2 + $0x1e0] sm:$0xff] %vm493, 0.0
        %556 = vst.msk [vmem:[#allocation2 + $0x1e8] sm:$0xff] %vm493, 0.0
        %557 = vst.msk [vmem:[#allocation2 + $0x1f0] sm:$0x3f] %vm496, 0.0
        %558 = vst.msk [vmem:[#allocation2 + $0x1f8] sm:$0xff] %vm493, 0.0
        %559 = vst.msk [vmem:[#allocation2 + $0x200] sm:$0xff] %vm493, 0.0
        %560 = vst.msk [vmem:[#allocation2 + $0x208] sm:$0x3f] %vm496, 0.0
        %vm561 = vcmask 130048
        %562 = vst.msk [vmem:[#allocation3] sm:$0xff] %vm561, 0.0
        %vm563 = vcmask 125952
        %564 = vst.msk [vmem:[#allocation3 + $0x8] sm:$0xf] %vm563, 0.0
        %565 = vst.msk [vmem:[#allocation3 + $0x10] sm:$0xff] %vm561, 0.0
        %566 = vst.msk [vmem:[#allocation3 + $0x18] sm:$0xf] %vm563, 0.0
        %567 = vst.msk [vmem:[#allocation3 + $0x20] sm:$0xff] %vm561, 0.0
        %568 = vst.msk [vmem:[#allocation3 + $0x28] sm:$0xf] %vm563, 0.0
        %569 = vst.msk [vmem:[#allocation3 + $0x30] sm:$0xff] %vm561, 0.0
        %570 = vst.msk [vmem:[#allocation3 + $0x38] sm:$0xf] %vm563, 0.0
        %571 = vst.msk [vmem:[#allocation3 + $0x40] sm:$0xff] %vm561, 0.0
        %572 = vst.msk [vmem:[#allocation3 + $0x48] sm:$0xf] %vm563, 0.0
        %573 = vst.msk [vmem:[#allocation3 + $0x50] sm:$0xff] %vm561, 0.0
        %574 = vst.msk [vmem:[#allocation3 + $0x58] sm:$0xf] %vm563, 0.0
        %575 = vst.msk [vmem:[#allocation3 + $0x60] sm:$0xff] %vm561, 0.0
        %576 = vst.msk [vmem:[#allocation3 + $0x68] sm:$0xf] %vm563, 0.0
        %577 = vst.msk [vmem:[#allocation3 + $0x70] sm:$0xff] %vm561, 0.0
        %578 = vst.msk [vmem:[#allocation3 + $0x78] sm:$0xf] %vm563, 0.0
        %579 = vst.msk [vmem:[#allocation3 + $0x80] sm:$0xff] %vm561, 0.0
        %580 = vst.msk [vmem:[#allocation3 + $0x88] sm:$0xf] %vm563, 0.0
        %581 = vst.msk [vmem:[#allocation3 + $0x90] sm:$0xff] %vm561, 0.0
        %582 = vst.msk [vmem:[#allocation3 + $0x98] sm:$0xf] %vm563, 0.0
        %583 = vst.msk [vmem:[#allocation3 + $0xa0] sm:$0xff] %vm561, 0.0
        %584 = vst.msk [vmem:[#allocation3 + $0xa8] sm:$0xf] %vm563, 0.0
        %585 = vst.msk [vmem:[#allocation3 + $0xb0] sm:$0xff] %vm561, 0.0
        %586 = vst.msk [vmem:[#allocation3 + $0xb8] sm:$0xf] %vm563, 0.0
        %vm587 = vcmask 259072
        %588 = vst.msk [vmem:[#allocation4] sm:$0x3f] %vm587, 0.0
        %589 = vst.msk [vmem:[#allocation4 + $0x8] sm:$0x3f] %vm587, 0.0
        %590 = vst.msk [vmem:[#allocation4 + $0x10] sm:$0x3f] %vm587, 0.0
        %591 = vst.msk [vmem:[#allocation4 + $0x18] sm:$0x3f] %vm587, 0.0
        %592 = vst.msk [vmem:[#allocation4 + $0x20] sm:$0x3f] %vm587, 0.0
        %593 = vst.msk [vmem:[#allocation4 + $0x28] sm:$0x3f] %vm587, 0.0
        %vm594 = vcmask 521216
        %595 = vst.msk [vmem:[#allocation5] sm:$0x3f] %vm594, 0.0
        %596 = vst.msk [vmem:[#allocation5 + $0x8] sm:$0x3f] %vm594, 0.0
        %597 = vst.msk [vmem:[#allocation5 + $0x10] sm:$0x3f] %vm594, 0.0
        %598 = vst.msk [vmem:[#allocation5 + $0x18] sm:$0x3f] %vm594, 0.0
        %599 = vst.msk [vmem:[#allocation5 + $0x20] sm:$0x3f] %vm594, 0.0
        %600 = vst.msk [vmem:[#allocation5 + $0x28] sm:$0x3f] %vm594, 0.0
        %v601 = vld [vmem:[%s491] sm:$0xff]
        %v602 = vld [vmem:[%s491 + $0x8] sm:$0xff]
        %v603 = vld [vmem:[%s491 + $0x10] sm:$0xff]
        %v604 = vld [vmem:[%s491 + $0x18] sm:$0xff]
        %v605 = vld [vmem:[%s491 + $0x20] sm:$0xff]
        %v606 = vld [vmem:[%s491 + $0x28] sm:$0xff]
        %v607 = vld [vmem:[%s491 + $0x30] sm:$0xff]
        %v608 = vld [vmem:[%s491 + $0x38] sm:$0xff]
        %v609 = vld [vmem:[%s491 + $0x40] sm:$0xff]
        %v610 = vld [vmem:[%s491 + $0x48] sm:$0xff]
        %v611 = vld [vmem:[%s491 + $0x50] sm:$0xff]
        %v612 = vld [vmem:[%s491 + $0x58] sm:$0xff]
        %v613 = vld [vmem:[%s491 + $0x60] sm:$0xff]
        %v614 = vld [vmem:[%s491 + $0x68] sm:$0xff]
        %v615 = vld [vmem:[%s491 + $0x70] sm:$0xff]
        %v616 = vld [vmem:[%s491 + $0x78] sm:$0xff]
        %v617 = vld [vmem:[%s491 + $0x80] sm:$0xff]
        %v618 = vld [vmem:[%s491 + $0x88] sm:$0xff]
        %v619 = vld [vmem:[%s491 + $0x90] sm:$0xff]
        %v620 = vld [vmem:[%s491 + $0x98] sm:$0xff]
        %v621 = vld [vmem:[%s491 + $0xa0] sm:$0xff]
        %v622 = vld [vmem:[%s491 + $0xa8] sm:$0xff]
        %v623 = vld [vmem:[%s491 + $0xb0] sm:$0xff]
        %v624 = vld [vmem:[%s491 + $0xb8] sm:$0xff]
        %v625 = vld [vmem:[%s491 + $0xc0] sm:$0xff]
        %v626 = vld [vmem:[%s491 + $0xc8] sm:$0xff]
        %v627 = vld [vmem:[%s491 + $0xd0] sm:$0xff]
        %v628 = vld [vmem:[%s491 + $0xd8] sm:$0xff]
        %v629 = vld [vmem:[%s491 + $0xe0] sm:$0xff]
        %v630 = vld [vmem:[%s491 + $0xe8] sm:$0xff]
        %v631 = vld [vmem:[%s491 + $0xf0] sm:$0xff]
        %v632 = vld [vmem:[%s491 + $0xf8] sm:$0xff]
        %s633 = scalar_lea.vmem [#allocation2], 72
        %634 = vst.msk [vmem:[%s633 + $0x3] sm:$0xff] %vm493, %v601
        %635 = vst.msk [vmem:[%s633 + $0xb] sm:$0xff] %vm493, %v602
        %636 = vst.msk [vmem:[%s633 + $0x1b] sm:$0xff] %vm493, %v603
        %637 = vst.msk [vmem:[%s633 + $0x23] sm:$0xff] %vm493, %v604
        %638 = vst.msk [vmem:[%s633 + $0x33] sm:$0xff] %vm493, %v605
        %639 = vst.msk [vmem:[%s633 + $0x3b] sm:$0xff] %vm493, %v606
        %640 = vst.msk [vmem:[%s633 + $0x4b] sm:$0xff] %vm493, %v607
        %641 = vst.msk [vmem:[%s633 + $0x53] sm:$0xff] %vm493, %v608
        %642 = vst.msk [vmem:[%s633 + $0x63] sm:$0xff] %vm493, %v609
        %643 = vst.msk [vmem:[%s633 + $0x6b] sm:$0xff] %vm493, %v610
        %644 = vst.msk [vmem:[%s633 + $0x7b] sm:$0xff] %vm493, %v611
        %645 = vst.msk [vmem:[%s633 + $0x83] sm:$0xff] %vm493, %v612
        %646 = vst.msk [vmem:[%s633 + $0x93] sm:$0xff] %vm493, %v613
        %647 = vst.msk [vmem:[%s633 + $0x9b] sm:$0xff] %vm493, %v614
        %648 = vst.msk [vmem:[%s633 + $0xab] sm:$0xff] %vm493, %v615
        %649 = vst.msk [vmem:[%s633 + $0xb3] sm:$0xff] %vm493, %v616
        %650 = vst.msk [vmem:[%s633 + $0xc3] sm:$0xff] %vm493, %v617
        %651 = vst.msk [vmem:[%s633 + $0xcb] sm:$0xff] %vm493, %v618
        %652 = vst.msk [vmem:[%s633 + $0xdb] sm:$0xff] %vm493, %v619
        %653 = vst.msk [vmem:[%s633 + $0xe3] sm:$0xff] %vm493, %v620
        %654 = vst.msk [vmem:[%s633 + $0xf3] sm:$0xff] %vm493, %v621
        %655 = vst.msk [vmem:[%s633 + $0xfb] sm:$0xff] %vm493, %v622
        %656 = vst.msk [vmem:[%s633 + $0x10b] sm:$0xff] %vm493, %v623
        %657 = vst.msk [vmem:[%s633 + $0x113] sm:$0xff] %vm493, %v624
        %658 = vst.msk [vmem:[%s633 + $0x123] sm:$0xff] %vm493, %v625
        %659 = vst.msk [vmem:[%s633 + $0x12b] sm:$0xff] %vm493, %v626
        %660 = vst.msk [vmem:[%s633 + $0x13b] sm:$0xff] %vm493, %v627
        %661 = vst.msk [vmem:[%s633 + $0x143] sm:$0xff] %vm493, %v628
        %662 = vst.msk [vmem:[%s633 + $0x153] sm:$0xff] %vm493, %v629
        %663 = vst.msk [vmem:[%s633 + $0x15b] sm:$0xff] %vm493, %v630
        %664 = vst.msk [vmem:[%s633 + $0x16b] sm:$0xff] %vm493, %v631
        %665 = vst.msk [vmem:[%s633 + $0x173] sm:$0xff] %vm493, %v632
        %v666 = vld [vmem:[%s2] sm:$0x1]
        %v667 = vld [vmem:[%s3] sm:$0x1]
        loop: start=0, step=1, limit=8
        $region81: #{cnn_network4_forward.1} parent=79 // loop_pre_header
          _
        $region82: #{cnn_network4_forward.1} parent=79 // loop_header
          %s669 = sphi 0, %s673
          %p670 = scmp.ge.s32.totalorder %s669, 8
        $region83: #{cnn_network4_forward.1} parent=79 // loop_header_branch
          %672 = sbr.rel (%p670) target = $region87
        $region84: #{cnn_network4_forward.1} parent=79 // loop_body
          %s674 = smul.u32 %s669, 2
          %s675 = smul.u32 %s674, 24
          %s676 = scalar_lea.vmem [#allocation2], %s675
          %v677 = vld [vmem:[%s676] ss:$2 sm:$0xff]
          %v678 = vld [vmem:[%s1] sm:$0x1]
          %680 = vset.pattern.permute.xlu0 0
          %681 = vperm.xlu0 %680, %v677
          %v682 = vpop.permute.xlu0 %681
          %v684 = vperm.slane %v678, 0
          %v685 = vmul.f32 %v682, %v684
          %v686 = vadd.f32 %v685, 0.0
          %s687 = scalar_lea.vmem %s676, 1 [#allocation2]
          %v688 = vld [vmem:[%s687] ss:$2 sm:$0xff]
          %v689 = vld [vmem:[%s1 + $0x1] sm:$0x1]
          %691 = vset.pattern.permute.xlu0 0
          %692 = vperm.xlu0 %691, %v688
          %v693 = vpop.permute.xlu0 %692
          %v695 = vperm.slane %v689, 0
          %v696 = vmul.f32 %v693, %v695
          %v697 = vadd.f32 %v686, %v696
          %s698 = scalar_lea.vmem %s676, 2 [#allocation2]
          %v699 = vld [vmem:[%s698] ss:$2 sm:$0xff]
          %v700 = vld [vmem:[%s1 + $0x2] sm:$0x1]
          %702 = vset.pattern.permute.xlu0 0
          %703 = vperm.xlu0 %702, %v699
          %v704 = vpop.permute.xlu0 %703
          %v706 = vperm.slane %v700, 0
          %v707 = vmul.f32 %v704, %v706
          %v708 = vadd.f32 %v697, %v707
          %s709 = scalar_lea.vmem %s676, 3 [#allocation2]
          %v710 = vld [vmem:[%s709] ss:$2 sm:$0xff]
          %v711 = vld [vmem:[%s1 + $0x3] sm:$0x1]
          %713 = vset.pattern.permute.xlu0 0
          %714 = vperm.xlu0 %713, %v710
          %v715 = vpop.permute.xlu0 %714
          %v717 = vperm.slane %v711, 0
          %v718 = vmul.f32 %v715, %v717
          %v719 = vadd.f32 %v708, %v718
          %s720 = scalar_lea.vmem %s676, 4 [#allocation2]
          %v721 = vld [vmem:[%s720] ss:$2 sm:$0xff]
          %v722 = vld [vmem:[%s1 + $0x4] sm:$0x1]
          %724 = vset.pattern.permute.xlu0 0
          %725 = vperm.xlu0 %724, %v721
          %v726 = vpop.permute.xlu0 %725
          %v728 = vperm.slane %v722, 0
          %v729 = vmul.f32 %v726, %v728
          %v730 = vadd.f32 %v719, %v729
          %s731 = scalar_lea.vmem %s676, 5 [#allocation2]
          %v732 = vld [vmem:[%s731] ss:$2 sm:$0xff]
          %v733 = vld [vmem:[%s1 + $0x5] sm:$0x1]
          %735 = vset.pattern.permute.xlu0 0
          %736 = vperm.xlu0 %735, %v732
          %v737 = vpop.permute.xlu0 %736
          %v739 = vperm.slane %v733, 0
          %v740 = vmul.f32 %v737, %v739
          %v741 = vadd.f32 %v730, %v740
          %s742 = scalar_lea.vmem %s676, 6 [#allocation2]
          %v743 = vld [vmem:[%s742] ss:$2 sm:$0xff]
          %v744 = vld [vmem:[%s1 + $0x6] sm:$0x1]
          %746 = vset.pattern.permute.xlu0 0
          %747 = vperm.xlu0 %746, %v743
          %v748 = vpop.permute.xlu0 %747
          %v750 = vperm.slane %v744, 0
          %v751 = vmul.f32 %v748, %v750
          %v752 = vadd.f32 %v741, %v751
          %s753 = sadd.s32 %s674, 1
          %s754 = smul.u32 %s753, 24
          %s755 = scalar_lea.vmem [#allocation2], %s754
          %v756 = vld [vmem:[%s755] ss:$2 sm:$0xff]
          %v757 = vld [vmem:[%s1 + $0x7] sm:$0x1]
          %759 = vset.pattern.permute.xlu0 0
          %760 = vperm.xlu0 %759, %v756
          %v761 = vpop.permute.xlu0 %760
          %v763 = vperm.slane %v757, 0
          %v764 = vmul.f32 %v761, %v763
          %v765 = vadd.f32 %v752, %v764
          %s766 = scalar_lea.vmem %s755, 1 [#allocation2]
          %v767 = vld [vmem:[%s766] ss:$2 sm:$0xff]
          %v768 = vld [vmem:[%s1 + $0x8] sm:$0x1]
          %770 = vset.pattern.permute.xlu0 0
          %771 = vperm.xlu0 %770, %v767
          %v772 = vpop.permute.xlu0 %771
          %v774 = vperm.slane %v768, 0
          %v775 = vmul.f32 %v772, %v774
          %v776 = vadd.f32 %v765, %v775
          %s777 = scalar_lea.vmem %s755, 2 [#allocation2]
          %v778 = vld [vmem:[%s777] ss:$2 sm:$0xff]
          %v779 = vld [vmem:[%s1 + $0x9] sm:$0x1]
          %781 = vset.pattern.permute.xlu0 0
          %782 = vperm.xlu0 %781, %v778
          %v783 = vpop.permute.xlu0 %782
          %v785 = vperm.slane %v779, 0
          %v786 = vmul.f32 %v783, %v785
          %v787 = vadd.f32 %v776, %v786
          %s788 = scalar_lea.vmem %s755, 3 [#allocation2]
          %v789 = vld [vmem:[%s788] ss:$2 sm:$0xff]
          %v790 = vld [vmem:[%s1 + $0xa] sm:$0x1]
          %792 = vset.pattern.permute.xlu0 0
          %793 = vperm.xlu0 %792, %v789
          %v794 = vpop.permute.xlu0 %793
          %v796 = vperm.slane %v790, 0
          %v797 = vmul.f32 %v794, %v796
          %v798 = vadd.f32 %v787, %v797
          %s799 = scalar_lea.vmem %s755, 4 [#allocation2]
          %v800 = vld [vmem:[%s799] ss:$2 sm:$0xff]
          %v801 = vld [vmem:[%s1 + $0xb] sm:$0x1]
          %803 = vset.pattern.permute.xlu0 0
          %804 = vperm.xlu0 %803, %v800
          %v805 = vpop.permute.xlu0 %804
          %v807 = vperm.slane %v801, 0
          %v808 = vmul.f32 %v805, %v807
          %v809 = vadd.f32 %v798, %v808
          %s810 = scalar_lea.vmem %s755, 5 [#allocation2]
          %v811 = vld [vmem:[%s810] ss:$2 sm:$0xff]
          %v812 = vld [vmem:[%s1 + $0xc] sm:$0x1]
          %814 = vset.pattern.permute.xlu0 0
          %815 = vperm.xlu0 %814, %v811
          %v816 = vpop.permute.xlu0 %815
          %v818 = vperm.slane %v812, 0
          %v819 = vmul.f32 %v816, %v818
          %v820 = vadd.f32 %v809, %v819
          %s821 = scalar_lea.vmem %s755, 6 [#allocation2]
          %v822 = vld [vmem:[%s821] ss:$2 sm:$0xff]
          %v823 = vld [vmem:[%s1 + $0xd] sm:$0x1]
          %825 = vset.pattern.permute.xlu0 0
          %826 = vperm.xlu0 %825, %v822
          %v827 = vpop.permute.xlu0 %826
          %v829 = vperm.slane %v823, 0
          %v830 = vmul.f32 %v827, %v829
          %v831 = vadd.f32 %v820, %v830
          %s832 = sadd.s32 %s674, 2
          %s833 = smul.u32 %s832, 24
          %s834 = scalar_lea.vmem [#allocation2], %s833
          %v835 = vld [vmem:[%s834] ss:$2 sm:$0xff]
          %v836 = vld [vmem:[%s1 + $0xe] sm:$0x1]
          %838 = vset.pattern.permute.xlu0 0
          %839 = vperm.xlu0 %838, %v835
          %v840 = vpop.permute.xlu0 %839
          %v842 = vperm.slane %v836, 0
          %v843 = vmul.f32 %v840, %v842
          %v844 = vadd.f32 %v831, %v843
          %s845 = scalar_lea.vmem %s834, 1 [#allocation2]
          %v846 = vld [vmem:[%s845] ss:$2 sm:$0xff]
          %v847 = vld [vmem:[%s1 + $0xf] sm:$0x1]
          %849 = vset.pattern.permute.xlu0 0
          %850 = vperm.xlu0 %849, %v846
          %v851 = vpop.permute.xlu0 %850
          %v853 = vperm.slane %v847, 0
          %v854 = vmul.f32 %v851, %v853
          %v855 = vadd.f32 %v844, %v854
          %s856 = scalar_lea.vmem %s834, 2 [#allocation2]
          %v857 = vld [vmem:[%s856] ss:$2 sm:$0xff]
          %v858 = vld [vmem:[%s1 + $0x10] sm:$0x1]
          %860 = vset.pattern.permute.xlu0 0
          %861 = vperm.xlu0 %860, %v857
          %v862 = vpop.permute.xlu0 %861
          %v864 = vperm.slane %v858, 0
          %v865 = vmul.f32 %v862, %v864
          %v866 = vadd.f32 %v855, %v865
          %s867 = scalar_lea.vmem %s834, 3 [#allocation2]
          %v868 = vld [vmem:[%s867] ss:$2 sm:$0xff]
          %v869 = vld [vmem:[%s1 + $0x11] sm:$0x1]
          %871 = vset.pattern.permute.xlu0 0
          %872 = vperm.xlu0 %871, %v868
          %v873 = vpop.permute.xlu0 %872
          %v875 = vperm.slane %v869, 0
          %v876 = vmul.f32 %v873, %v875
          %v877 = vadd.f32 %v866, %v876
          %s878 = scalar_lea.vmem %s834, 4 [#allocation2]
          %v879 = vld [vmem:[%s878] ss:$2 sm:$0xff]
          %v880 = vld [vmem:[%s1 + $0x12] sm:$0x1]
          %882 = vset.pattern.permute.xlu0 0
          %883 = vperm.xlu0 %882, %v879
          %v884 = vpop.permute.xlu0 %883
          %v886 = vperm.slane %v880, 0
          %v887 = vmul.f32 %v884, %v886
          %v888 = vadd.f32 %v877, %v887
          %s889 = scalar_lea.vmem %s834, 5 [#allocation2]
          %v890 = vld [vmem:[%s889] ss:$2 sm:$0xff]
          %v891 = vld [vmem:[%s1 + $0x13] sm:$0x1]
          %893 = vset.pattern.permute.xlu0 0
          %894 = vperm.xlu0 %893, %v890
          %v895 = vpop.permute.xlu0 %894
          %v897 = vperm.slane %v891, 0
          %v898 = vmul.f32 %v895, %v897
          %v899 = vadd.f32 %v888, %v898
          %s900 = scalar_lea.vmem %s834, 6 [#allocation2]
          %v901 = vld [vmem:[%s900] ss:$2 sm:$0xff]
          %v902 = vld [vmem:[%s1 + $0x14] sm:$0x1]
          %904 = vset.pattern.permute.xlu0 0
          %905 = vperm.xlu0 %904, %v901
          %v906 = vpop.permute.xlu0 %905
          %v908 = vperm.slane %v902, 0
          %v909 = vmul.f32 %v906, %v908
          %v910 = vadd.f32 %v899, %v909
          %s911 = sadd.s32 %s674, 3
          %s912 = smul.u32 %s911, 24
          %s913 = scalar_lea.vmem [#allocation2], %s912
          %v914 = vld [vmem:[%s913] ss:$2 sm:$0xff]
          %v915 = vld [vmem:[%s1 + $0x15] sm:$0x1]
          %917 = vset.pattern.permute.xlu0 0
          %918 = vperm.xlu0 %917, %v914
          %v919 = vpop.permute.xlu0 %918
          %v921 = vperm.slane %v915, 0
          %v922 = vmul.f32 %v919, %v921
          %v923 = vadd.f32 %v910, %v922
          %s924 = scalar_lea.vmem %s913, 1 [#allocation2]
          %v925 = vld [vmem:[%s924] ss:$2 sm:$0xff]
          %v926 = vld [vmem:[%s1 + $0x16] sm:$0x1]
          %928 = vset.pattern.permute.xlu0 0
          %929 = vperm.xlu0 %928, %v925
          %v930 = vpop.permute.xlu0 %929
          %v932 = vperm.slane %v926, 0
          %v933 = vmul.f32 %v930, %v932
          %v934 = vadd.f32 %v923, %v933
          %s935 = scalar_lea.vmem %s913, 2 [#allocation2]
          %v936 = vld [vmem:[%s935] ss:$2 sm:$0xff]
          %v937 = vld [vmem:[%s1 + $0x17] sm:$0x1]
          %939 = vset.pattern.permute.xlu0 0
          %940 = vperm.xlu0 %939, %v936
          %v941 = vpop.permute.xlu0 %940
          %v943 = vperm.slane %v937, 0
          %v944 = vmul.f32 %v941, %v943
          %v945 = vadd.f32 %v934, %v944
          %s946 = scalar_lea.vmem %s913, 3 [#allocation2]
          %v947 = vld [vmem:[%s946] ss:$2 sm:$0xff]
          %v948 = vld [vmem:[%s1 + $0x18] sm:$0x1]
          %950 = vset.pattern.permute.xlu0 0
          %951 = vperm.xlu0 %950, %v947
          %v952 = vpop.permute.xlu0 %951
          %v954 = vperm.slane %v948, 0
          %v955 = vmul.f32 %v952, %v954
          %v956 = vadd.f32 %v945, %v955
          %s957 = scalar_lea.vmem %s913, 4 [#allocation2]
          %v958 = vld [vmem:[%s957] ss:$2 sm:$0xff]
          %v959 = vld [vmem:[%s1 + $0x19] sm:$0x1]
          %961 = vset.pattern.permute.xlu0 0
          %962 = vperm.xlu0 %961, %v958
          %v963 = vpop.permute.xlu0 %962
          %v965 = vperm.slane %v959, 0
          %v966 = vmul.f32 %v963, %v965
          %v967 = vadd.f32 %v956, %v966
          %s968 = scalar_lea.vmem %s913, 5 [#allocation2]
          %v969 = vld [vmem:[%s968] ss:$2 sm:$0xff]
          %v970 = vld [vmem:[%s1 + $0x1a] sm:$0x1]
          %972 = vset.pattern.permute.xlu0 0
          %973 = vperm.xlu0 %972, %v969
          %v974 = vpop.permute.xlu0 %973
          %v976 = vperm.slane %v970, 0
          %v977 = vmul.f32 %v974, %v976
          %v978 = vadd.f32 %v967, %v977
          %s979 = scalar_lea.vmem %s913, 6 [#allocation2]
          %v980 = vld [vmem:[%s979] ss:$2 sm:$0xff]
          %v981 = vld [vmem:[%s1 + $0x1b] sm:$0x1]
          %983 = vset.pattern.permute.xlu0 0
          %984 = vperm.xlu0 %983, %v980
          %v985 = vpop.permute.xlu0 %984
          %v987 = vperm.slane %v981, 0
          %v988 = vmul.f32 %v985, %v987
          %v989 = vadd.f32 %v978, %v988
          %s990 = sadd.s32 %s674, 4
          %s991 = smul.u32 %s990, 24
          %s992 = scalar_lea.vmem [#allocation2], %s991
          %v993 = vld [vmem:[%s992] ss:$2 sm:$0xff]
          %v994 = vld [vmem:[%s1 + $0x1c] sm:$0x1]
          %996 = vset.pattern.permute.xlu0 0
          %997 = vperm.xlu0 %996, %v993
          %v998 = vpop.permute.xlu0 %997
          %v1000 = vperm.slane %v994, 0
          %v1001 = vmul.f32 %v998, %v1000
          %v1002 = vadd.f32 %v989, %v1001
          %s1003 = scalar_lea.vmem %s992, 1 [#allocation2]
          %v1004 = vld [vmem:[%s1003] ss:$2 sm:$0xff]
          %v1005 = vld [vmem:[%s1 + $0x1d] sm:$0x1]
          %1007 = vset.pattern.permute.xlu0 0
          %1008 = vperm.xlu0 %1007, %v1004
          %v1009 = vpop.permute.xlu0 %1008
          %v1011 = vperm.slane %v1005, 0
          %v1012 = vmul.f32 %v1009, %v1011
          %v1013 = vadd.f32 %v1002, %v1012
          %s1014 = scalar_lea.vmem %s992, 2 [#allocation2]
          %v1015 = vld [vmem:[%s1014] ss:$2 sm:$0xff]
          %v1016 = vld [vmem:[%s1 + $0x1e] sm:$0x1]
          %1018 = vset.pattern.permute.xlu0 0
          %1019 = vperm.xlu0 %1018, %v1015
          %v1020 = vpop.permute.xlu0 %1019
          %v1022 = vperm.slane %v1016, 0
          %v1023 = vmul.f32 %v1020, %v1022
          %v1024 = vadd.f32 %v1013, %v1023
          %s1025 = scalar_lea.vmem %s992, 3 [#allocation2]
          %v1026 = vld [vmem:[%s1025] ss:$2 sm:$0xff]
          %v1027 = vld [vmem:[%s1 + $0x1f] sm:$0x1]
          %1029 = vset.pattern.permute.xlu0 0
          %1030 = vperm.xlu0 %1029, %v1026
          %v1031 = vpop.permute.xlu0 %1030
          %v1033 = vperm.slane %v1027, 0
          %v1034 = vmul.f32 %v1031, %v1033
          %v1035 = vadd.f32 %v1024, %v1034
          %s1036 = scalar_lea.vmem %s992, 4 [#allocation2]
          %v1037 = vld [vmem:[%s1036] ss:$2 sm:$0xff]
          %v1038 = vld [vmem:[%s1 + $0x20] sm:$0x1]
          %1040 = vset.pattern.permute.xlu0 0
          %1041 = vperm.xlu0 %1040, %v1037
          %v1042 = vpop.permute.xlu0 %1041
          %v1044 = vperm.slane %v1038, 0
          %v1045 = vmul.f32 %v1042, %v1044
          %v1046 = vadd.f32 %v1035, %v1045
          %s1047 = scalar_lea.vmem %s992, 5 [#allocation2]
          %v1048 = vld [vmem:[%s1047] ss:$2 sm:$0xff]
          %v1049 = vld [vmem:[%s1 + $0x21] sm:$0x1]
          %1051 = vset.pattern.permute.xlu0 0
          %1052 = vperm.xlu0 %1051, %v1048
          %v1053 = vpop.permute.xlu0 %1052
          %v1055 = vperm.slane %v1049, 0
          %v1056 = vmul.f32 %v1053, %v1055
          %v1057 = vadd.f32 %v1046, %v1056
          %s1058 = scalar_lea.vmem %s992, 6 [#allocation2]
          %v1059 = vld [vmem:[%s1058] ss:$2 sm:$0xff]
          %v1060 = vld [vmem:[%s1 + $0x22] sm:$0x1]
          %1062 = vset.pattern.permute.xlu0 0
          %1063 = vperm.xlu0 %1062, %v1059
          %v1064 = vpop.permute.xlu0 %1063
          %v1066 = vperm.slane %v1060, 0
          %v1067 = vmul.f32 %v1064, %v1066
          %v1068 = vadd.f32 %v1057, %v1067
          %s1069 = sadd.s32 %s674, 5
          %s1070 = smul.u32 %s1069, 24
          %s1071 = scalar_lea.vmem [#allocation2], %s1070
          %v1072 = vld [vmem:[%s1071] ss:$2 sm:$0xff]
          %v1073 = vld [vmem:[%s1 + $0x23] sm:$0x1]
          %1075 = vset.pattern.permute.xlu0 0
          %1076 = vperm.xlu0 %1075, %v1072
          %v1077 = vpop.permute.xlu0 %1076
          %v1079 = vperm.slane %v1073, 0
          %v1080 = vmul.f32 %v1077, %v1079
          %v1081 = vadd.f32 %v1068, %v1080
          %s1082 = scalar_lea.vmem %s1071, 1 [#allocation2]
          %v1083 = vld [vmem:[%s1082] ss:$2 sm:$0xff]
          %v1084 = vld [vmem:[%s1 + $0x24] sm:$0x1]
          %1086 = vset.pattern.permute.xlu0 0
          %1087 = vperm.xlu0 %1086, %v1083
          %v1088 = vpop.permute.xlu0 %1087
          %v1090 = vperm.slane %v1084, 0
          %v1091 = vmul.f32 %v1088, %v1090
          %v1092 = vadd.f32 %v1081, %v1091
          %s1093 = scalar_lea.vmem %s1071, 2 [#allocation2]
          %v1094 = vld [vmem:[%s1093] ss:$2 sm:$0xff]
          %v1095 = vld [vmem:[%s1 + $0x25] sm:$0x1]
          %1097 = vset.pattern.permute.xlu0 0
          %1098 = vperm.xlu0 %1097, %v1094
          %v1099 = vpop.permute.xlu0 %1098
          %v1101 = vperm.slane %v1095, 0
          %v1102 = vmul.f32 %v1099, %v1101
          %v1103 = vadd.f32 %v1092, %v1102
          %s1104 = scalar_lea.vmem %s1071, 3 [#allocation2]
          %v1105 = vld [vmem:[%s1104] ss:$2 sm:$0xff]
          %v1106 = vld [vmem:[%s1 + $0x26] sm:$0x1]
          %1108 = vset.pattern.permute.xlu0 0
          %1109 = vperm.xlu0 %1108, %v1105
          %v1110 = vpop.permute.xlu0 %1109
          %v1112 = vperm.slane %v1106, 0
          %v1113 = vmul.f32 %v1110, %v1112
          %v1114 = vadd.f32 %v1103, %v1113
          %s1115 = scalar_lea.vmem %s1071, 4 [#allocation2]
          %v1116 = vld [vmem:[%s1115] ss:$2 sm:$0xff]
          %v1117 = vld [vmem:[%s1 + $0x27] sm:$0x1]
          %1119 = vset.pattern.permute.xlu0 0
          %1120 = vperm.xlu0 %1119, %v1116
          %v1121 = vpop.permute.xlu0 %1120
          %v1123 = vperm.slane %v1117, 0
          %v1124 = vmul.f32 %v1121, %v1123
          %v1125 = vadd.f32 %v1114, %v1124
          %s1126 = scalar_lea.vmem %s1071, 5 [#allocation2]
          %v1127 = vld [vmem:[%s1126] ss:$2 sm:$0xff]
          %v1128 = vld [vmem:[%s1 + $0x28] sm:$0x1]
          %1130 = vset.pattern.permute.xlu0 0
          %1131 = vperm.xlu0 %1130, %v1127
          %v1132 = vpop.permute.xlu0 %1131
          %v1134 = vperm.slane %v1128, 0
          %v1135 = vmul.f32 %v1132, %v1134
          %v1136 = vadd.f32 %v1125, %v1135
          %s1137 = scalar_lea.vmem %s1071, 6 [#allocation2]
          %v1138 = vld [vmem:[%s1137] ss:$2 sm:$0xff]
          %v1139 = vld [vmem:[%s1 + $0x29] sm:$0x1]
          %1141 = vset.pattern.permute.xlu0 0
          %1142 = vperm.xlu0 %1141, %v1138
          %v1143 = vpop.permute.xlu0 %1142
          %v1145 = vperm.slane %v1139, 0
          %v1146 = vmul.f32 %v1143, %v1145
          %v1147 = vadd.f32 %v1136, %v1146
          %s1148 = sadd.s32 %s674, 6
          %s1149 = smul.u32 %s1148, 24
          %s1150 = scalar_lea.vmem [#allocation2], %s1149
          %v1151 = vld [vmem:[%s1150] ss:$2 sm:$0xff]
          %v1152 = vld [vmem:[%s1 + $0x2a] sm:$0x1]
          %1154 = vset.pattern.permute.xlu0 0
          %1155 = vperm.xlu0 %1154, %v1151
          %v1156 = vpop.permute.xlu0 %1155
          %v1158 = vperm.slane %v1152, 0
          %v1159 = vmul.f32 %v1156, %v1158
          %v1160 = vadd.f32 %v1147, %v1159
          %s1161 = scalar_lea.vmem %s1150, 1 [#allocation2]
          %v1162 = vld [vmem:[%s1161] ss:$2 sm:$0xff]
          %v1163 = vld [vmem:[%s1 + $0x2b] sm:$0x1]
          %1165 = vset.pattern.permute.xlu0 0
          %1166 = vperm.xlu0 %1165, %v1162
          %v1167 = vpop.permute.xlu0 %1166
          %v1169 = vperm.slane %v1163, 0
          %v1170 = vmul.f32 %v1167, %v1169
          %v1171 = vadd.f32 %v1160, %v1170
          %s1172 = scalar_lea.vmem %s1150, 2 [#allocation2]
          %v1173 = vld [vmem:[%s1172] ss:$2 sm:$0xff]
          %v1174 = vld [vmem:[%s1 + $0x2c] sm:$0x1]
          %1176 = vset.pattern.permute.xlu0 0
          %1177 = vperm.xlu0 %1176, %v1173
          %v1178 = vpop.permute.xlu0 %1177
          %v1180 = vperm.slane %v1174, 0
          %v1181 = vmul.f32 %v1178, %v1180
          %v1182 = vadd.f32 %v1171, %v1181
          %s1183 = scalar_lea.vmem %s1150, 3 [#allocation2]
          %v1184 = vld [vmem:[%s1183] ss:$2 sm:$0xff]
          %v1185 = vld [vmem:[%s1 + $0x2d] sm:$0x1]
          %1187 = vset.pattern.permute.xlu0 0
          %1188 = vperm.xlu0 %1187, %v1184
          %v1189 = vpop.permute.xlu0 %1188
          %v1191 = vperm.slane %v1185, 0
          %v1192 = vmul.f32 %v1189, %v1191
          %v1193 = vadd.f32 %v1182, %v1192
          %s1194 = scalar_lea.vmem %s1150, 4 [#allocation2]
          %v1195 = vld [vmem:[%s1194] ss:$2 sm:$0xff]
          %v1196 = vld [vmem:[%s1 + $0x2e] sm:$0x1]
          %1198 = vset.pattern.permute.xlu0 0
          %1199 = vperm.xlu0 %1198, %v1195
          %v1200 = vpop.permute.xlu0 %1199
          %v1202 = vperm.slane %v1196, 0
          %v1203 = vmul.f32 %v1200, %v1202
          %v1204 = vadd.f32 %v1193, %v1203
          %s1205 = scalar_lea.vmem %s1150, 5 [#allocation2]
          %v1206 = vld [vmem:[%s1205] ss:$2 sm:$0xff]
          %v1207 = vld [vmem:[%s1 + $0x2f] sm:$0x1]
          %1209 = vset.pattern.permute.xlu0 0
          %1210 = vperm.xlu0 %1209, %v1206
          %v1211 = vpop.permute.xlu0 %1210
          %v1213 = vperm.slane %v1207, 0
          %v1214 = vmul.f32 %v1211, %v1213
          %v1215 = vadd.f32 %v1204, %v1214
          %s1216 = scalar_lea.vmem %s1150, 6 [#allocation2]
          %v1217 = vld [vmem:[%s1216] ss:$2 sm:$0xff]
          %v1218 = vld [vmem:[%s1 + $0x30] sm:$0x1]
          %1220 = vset.pattern.permute.xlu0 0
          %1221 = vperm.xlu0 %1220, %v1217
          %v1222 = vpop.permute.xlu0 %1221
          %v1224 = vperm.slane %v1218, 0
          %v1225 = vmul.f32 %v1222, %v1224
          %v1226 = vadd.f32 %v1215, %v1225
          %v1228 = vperm.slane %v666, 0
          %v1230 = vmul.f32 %v1226, %v1228
          %v1232 = vperm.slane %v667, 0
          %v1234 = vadd.f32 %v1230, %v1232
          %v1235 = vmax.f32 %v1234, 0.0
          %s1236 = sadd.s32 %s669, 2
          %s1237 = smul.u32 %s1236, 16
          %s1238 = scalar_lea.vmem [#allocation3], %s1237
          %1239 = vst.msk [vmem:[%s1238 + $0x2] sm:$0xff] %vm561, %v1235
        $region85: #{cnn_network4_forward.1} parent=79 // loop_footer
          %s673 = sadd.s32 1, %s669
        $region86: #{cnn_network4_forward.1} parent=79 // loop_footer_branch
          %668 = sbr.rel target = $region82
        $region87: #{cnn_network4_forward.1} parent=79 // loop_exit
          _
        %v1240 = vld [vmem:[%s5] sm:$0x1]
        %v1241 = vld [vmem:[%s6] sm:$0x1]
        loop: start=0, step=1, limit=4
        $region88: #{cnn_network4_forward.1} parent=79 // loop_pre_header
          _
        $region89: #{cnn_network4_forward.1} parent=79 // loop_header
          %s1243 = sphi 0, %s1247
          %p1244 = scmp.ge.s32.totalorder %s1243, 4
        $region90: #{cnn_network4_forward.1} parent=79 // loop_header_branch
          %1246 = sbr.rel (%p1244) target = $region94
        $region91: #{cnn_network4_forward.1} parent=79 // loop_body
          %s1248 = smul.u32 %s1243, 2
          %s1249 = smul.u32 %s1248, 16
          %s1250 = scalar_lea.vmem [#allocation3], %s1249
          %v1251 = vld [vmem:[%s1250] ss:$2 sm:$0xf]
          %v1252 = vld [vmem:[%s4] sm:$0xf]
          %v1253 = vld [vmem:[%s4 + $0x4] sm:$0xf]
          %v1254 = vpack.c.bf16 %v1251, %v1251
          %s1255 = scalar_lea.vmem %s1250, 1 [#allocation3]
          %v1256 = vld [vmem:[%s1255] ss:$2 sm:$0xf]
          %v1257 = vld [vmem:[%s4 + $0x8] sm:$0xf]
          %v1258 = vld [vmem:[%s4 + $0xc] sm:$0xf]
          %v1259 = vpack.c.bf16 %v1256, %v1256
          %v1262 = vunpack.c.l.b16 %v1257
          %v1263 = vunpack.c.l.b16 %v1258
          %v1264 = vpack.c.b16 %v1263, %v1262
          %v1267 = vsel %vm561, %v1259, 0
          %1269 = vmatpush.bf16.msra.mxu0 0
          %1270 = vmatpush.bf16.msra.mxu0 0
          %1271 = vmatpush.bf16.msra.mxu0 0
          %1272 = vmatpush.bf16.msra.mxu0 0
          %1273 = vmatpush.bf16.msra.mxu0 0
          %1274 = vmatpush.bf16.msra.mxu0 0
          %1275 = vmatpush.bf16.msra.mxu0 0
          %1276 = vmatpush.bf16.msra.mxu0 %v1264
          %1277 = vmatmul.bf16.gmra.mxu0 %v1267
          %v1278 = vpop.f32.mrf.mxu0
          %v1279 = vadd.f32 0.0, %v1278
          %v1280 = vpop.f32.mrf.mxu0
          %1281 = vdwg.mxu0
          %v1284 = vunpack.c.l.b16 %v1252
          %v1285 = vunpack.c.l.b16 %v1253
          %v1286 = vpack.c.b16 %v1285, %v1284
          %v1289 = vsel %vm561, %v1254, 0
          %1291 = vmatpush.bf16.msra.mxu0 0
          %1292 = vmatpush.bf16.msra.mxu0 0
          %1293 = vmatpush.bf16.msra.mxu0 0
          %1294 = vmatpush.bf16.msra.mxu0 0
          %1295 = vmatpush.bf16.msra.mxu0 0
          %1296 = vmatpush.bf16.msra.mxu0 0
          %1297 = vmatpush.bf16.msra.mxu0 0
          %1298 = vmatpush.bf16.msra.mxu0 %v1286
          %1299 = vmatmul.bf16.gmra.mxu0 %v1289
          %v1300 = vpop.f32.mrf.mxu0
          %v1301 = vadd.f32 %v1279, %v1300
          %v1302 = vpop.f32.mrf.mxu0
          %1303 = vdwg.mxu0
          %s1304 = scalar_lea.vmem %s1250, 2 [#allocation3]
          %v1305 = vld [vmem:[%s1304] ss:$2 sm:$0xf]
          %v1306 = vld [vmem:[%s4 + $0x10] sm:$0xf]
          %v1307 = vld [vmem:[%s4 + $0x14] sm:$0xf]
          %v1308 = vpack.c.bf16 %v1305, %v1305
          %v1311 = vunpack.c.l.b16 %v1306
          %v1312 = vunpack.c.l.b16 %v1307
          %v1313 = vpack.c.b16 %v1312, %v1311
          %v1316 = vsel %vm561, %v1308, 0
          %1318 = vmatpush.bf16.msra.mxu0 0
          %1319 = vmatpush.bf16.msra.mxu0 0
          %1320 = vmatpush.bf16.msra.mxu0 0
          %1321 = vmatpush.bf16.msra.mxu0 0
          %1322 = vmatpush.bf16.msra.mxu0 0
          %1323 = vmatpush.bf16.msra.mxu0 0
          %1324 = vmatpush.bf16.msra.mxu0 0
          %1325 = vmatpush.bf16.msra.mxu0 %v1313
          %1326 = vmatmul.bf16.gmra.mxu0 %v1316
          %v1327 = vpop.f32.mrf.mxu0
          %v1328 = vadd.f32 0.0, %v1327
          %v1329 = vpop.f32.mrf.mxu0
          %1330 = vdwg.mxu0
          %v1331 = vadd.f32 %v1301, %v1328
          %s1332 = scalar_lea.vmem %s1250, 3 [#allocation3]
          %v1333 = vld [vmem:[%s1332] ss:$2 sm:$0xf]
          %v1334 = vld [vmem:[%s4 + $0x18] sm:$0xf]
          %v1335 = vld [vmem:[%s4 + $0x1c] sm:$0xf]
          %v1336 = vpack.c.bf16 %v1333, %v1333
          %v1339 = vunpack.c.l.b16 %v1334
          %v1340 = vunpack.c.l.b16 %v1335
          %v1341 = vpack.c.b16 %v1340, %v1339
          %v1344 = vsel %vm561, %v1336, 0
          %1346 = vmatpush.bf16.msra.mxu0 0
          %1347 = vmatpush.bf16.msra.mxu0 0
          %1348 = vmatpush.bf16.msra.mxu0 0
          %1349 = vmatpush.bf16.msra.mxu0 0
          %1350 = vmatpush.bf16.msra.mxu0 0
          %1351 = vmatpush.bf16.msra.mxu0 0
          %1352 = vmatpush.bf16.msra.mxu0 0
          %1353 = vmatpush.bf16.msra.mxu0 %v1341
          %1354 = vmatmul.bf16.gmra.mxu0 %v1344
          %v1355 = vpop.f32.mrf.mxu0
          %v1356 = vadd.f32 0.0, %v1355
          %v1357 = vpop.f32.mrf.mxu0
          %1358 = vdwg.mxu0
          %v1359 = vadd.f32 %v1331, %v1356
          %s1360 = scalar_lea.vmem %s1250, 4 [#allocation3]
          %v1361 = vld [vmem:[%s1360] ss:$2 sm:$0xf]
          %v1362 = vld [vmem:[%s4 + $0x20] sm:$0xf]
          %v1363 = vld [vmem:[%s4 + $0x24] sm:$0xf]
          %v1364 = vpack.c.bf16 %v1361, %v1361
          %v1367 = vunpack.c.l.b16 %v1362
          %v1368 = vunpack.c.l.b16 %v1363
          %v1369 = vpack.c.b16 %v1368, %v1367
          %v1372 = vsel %vm561, %v1364, 0
          %1374 = vmatpush.bf16.msra.mxu0 0
          %1375 = vmatpush.bf16.msra.mxu0 0
          %1376 = vmatpush.bf16.msra.mxu0 0
          %1377 = vmatpush.bf16.msra.mxu0 0
          %1378 = vmatpush.bf16.msra.mxu0 0
          %1379 = vmatpush.bf16.msra.mxu0 0
          %1380 = vmatpush.bf16.msra.mxu0 0
          %1381 = vmatpush.bf16.msra.mxu0 %v1369
          %1382 = vmatmul.bf16.gmra.mxu0 %v1372
          %v1383 = vpop.f32.mrf.mxu0
          %v1384 = vadd.f32 0.0, %v1383
          %v1385 = vpop.f32.mrf.mxu0
          %1386 = vdwg.mxu0
          %v1387 = vadd.f32 %v1359, %v1384
          %s1388 = sadd.s32 %s1248, 1
          %s1389 = smul.u32 %s1388, 16
          %s1390 = scalar_lea.vmem [#allocation3], %s1389
          %v1391 = vld [vmem:[%s1390] ss:$2 sm:$0xf]
          %v1392 = vld [vmem:[%s4 + $0x28] sm:$0xf]
          %v1393 = vld [vmem:[%s4 + $0x2c] sm:$0xf]
          %v1394 = vpack.c.bf16 %v1391, %v1391
          %v1397 = vunpack.c.l.b16 %v1392
          %v1398 = vunpack.c.l.b16 %v1393
          %v1399 = vpack.c.b16 %v1398, %v1397
          %v1402 = vsel %vm561, %v1394, 0
          %1404 = vmatpush.bf16.msra.mxu0 0
          %1405 = vmatpush.bf16.msra.mxu0 0
          %1406 = vmatpush.bf16.msra.mxu0 0
          %1407 = vmatpush.bf16.msra.mxu0 0
          %1408 = vmatpush.bf16.msra.mxu0 0
          %1409 = vmatpush.bf16.msra.mxu0 0
          %1410 = vmatpush.bf16.msra.mxu0 0
          %1411 = vmatpush.bf16.msra.mxu0 %v1399
          %1412 = vmatmul.bf16.gmra.mxu0 %v1402
          %v1413 = vpop.f32.mrf.mxu0
          %v1414 = vadd.f32 0.0, %v1413
          %v1415 = vpop.f32.mrf.mxu0
          %1416 = vdwg.mxu0
          %v1417 = vadd.f32 %v1387, %v1414
          %s1418 = scalar_lea.vmem %s1390, 1 [#allocation3]
          %v1419 = vld [vmem:[%s1418] ss:$2 sm:$0xf]
          %v1420 = vld [vmem:[%s4 + $0x30] sm:$0xf]
          %v1421 = vld [vmem:[%s4 + $0x34] sm:$0xf]
          %v1422 = vpack.c.bf16 %v1419, %v1419
          %v1425 = vunpack.c.l.b16 %v1420
          %v1426 = vunpack.c.l.b16 %v1421
          %v1427 = vpack.c.b16 %v1426, %v1425
          %v1430 = vsel %vm561, %v1422, 0
          %1432 = vmatpush.bf16.msra.mxu0 0
          %1433 = vmatpush.bf16.msra.mxu0 0
          %1434 = vmatpush.bf16.msra.mxu0 0
          %1435 = vmatpush.bf16.msra.mxu0 0
          %1436 = vmatpush.bf16.msra.mxu0 0
          %1437 = vmatpush.bf16.msra.mxu0 0
          %1438 = vmatpush.bf16.msra.mxu0 0
          %1439 = vmatpush.bf16.msra.mxu0 %v1427
          %1440 = vmatmul.bf16.gmra.mxu0 %v1430
          %v1441 = vpop.f32.mrf.mxu0
          %v1442 = vadd.f32 0.0, %v1441
          %v1443 = vpop.f32.mrf.mxu0
          %1444 = vdwg.mxu0
          %v1445 = vadd.f32 %v1417, %v1442
          %s1446 = scalar_lea.vmem %s1390, 2 [#allocation3]
          %v1447 = vld [vmem:[%s1446] ss:$2 sm:$0xf]
          %v1448 = vld [vmem:[%s4 + $0x38] sm:$0xf]
          %v1449 = vld [vmem:[%s4 + $0x3c] sm:$0xf]
          %v1450 = vpack.c.bf16 %v1447, %v1447
          %v1453 = vunpack.c.l.b16 %v1448
          %v1454 = vunpack.c.l.b16 %v1449
          %v1455 = vpack.c.b16 %v1454, %v1453
          %v1458 = vsel %vm561, %v1450, 0
          %1460 = vmatpush.bf16.msra.mxu0 0
          %1461 = vmatpush.bf16.msra.mxu0 0
          %1462 = vmatpush.bf16.msra.mxu0 0
          %1463 = vmatpush.bf16.msra.mxu0 0
          %1464 = vmatpush.bf16.msra.mxu0 0
          %1465 = vmatpush.bf16.msra.mxu0 0
          %1466 = vmatpush.bf16.msra.mxu0 0
          %1467 = vmatpush.bf16.msra.mxu0 %v1455
          %1468 = vmatmul.bf16.gmra.mxu0 %v1458
          %v1469 = vpop.f32.mrf.mxu0
          %v1470 = vadd.f32 0.0, %v1469
          %v1471 = vpop.f32.mrf.mxu0
          %1472 = vdwg.mxu0
          %v1473 = vadd.f32 %v1445, %v1470
          %s1474 = scalar_lea.vmem %s1390, 3 [#allocation3]
          %v1475 = vld [vmem:[%s1474] ss:$2 sm:$0xf]
          %v1476 = vld [vmem:[%s4 + $0x40] sm:$0xf]
          %v1477 = vld [vmem:[%s4 + $0x44] sm:$0xf]
          %v1478 = vpack.c.bf16 %v1475, %v1475
          %v1481 = vunpack.c.l.b16 %v1476
          %v1482 = vunpack.c.l.b16 %v1477
          %v1483 = vpack.c.b16 %v1482, %v1481
          %v1486 = vsel %vm561, %v1478, 0
          %1488 = vmatpush.bf16.msra.mxu0 0
          %1489 = vmatpush.bf16.msra.mxu0 0
          %1490 = vmatpush.bf16.msra.mxu0 0
          %1491 = vmatpush.bf16.msra.mxu0 0
          %1492 = vmatpush.bf16.msra.mxu0 0
          %1493 = vmatpush.bf16.msra.mxu0 0
          %1494 = vmatpush.bf16.msra.mxu0 0
          %1495 = vmatpush.bf16.msra.mxu0 %v1483
          %1496 = vmatmul.bf16.gmra.mxu0 %v1486
          %v1497 = vpop.f32.mrf.mxu0
          %v1498 = vadd.f32 0.0, %v1497
          %v1499 = vpop.f32.mrf.mxu0
          %1500 = vdwg.mxu0
          %v1501 = vadd.f32 %v1473, %v1498
          %s1502 = scalar_lea.vmem %s1390, 4 [#allocation3]
          %v1503 = vld [vmem:[%s1502] ss:$2 sm:$0xf]
          %v1504 = vld [vmem:[%s4 + $0x48] sm:$0xf]
          %v1505 = vld [vmem:[%s4 + $0x4c] sm:$0xf]
          %v1506 = vpack.c.bf16 %v1503, %v1503
          %v1509 = vunpack.c.l.b16 %v1504
          %v1510 = vunpack.c.l.b16 %v1505
          %v1511 = vpack.c.b16 %v1510, %v1509
          %v1514 = vsel %vm561, %v1506, 0
          %1516 = vmatpush.bf16.msra.mxu0 0
          %1517 = vmatpush.bf16.msra.mxu0 0
          %1518 = vmatpush.bf16.msra.mxu0 0
          %1519 = vmatpush.bf16.msra.mxu0 0
          %1520 = vmatpush.bf16.msra.mxu0 0
          %1521 = vmatpush.bf16.msra.mxu0 0
          %1522 = vmatpush.bf16.msra.mxu0 0
          %1523 = vmatpush.bf16.msra.mxu0 %v1511
          %1524 = vmatmul.bf16.gmra.mxu0 %v1514
          %v1525 = vpop.f32.mrf.mxu0
          %v1526 = vadd.f32 0.0, %v1525
          %v1527 = vpop.f32.mrf.mxu0
          %1528 = vdwg.mxu0
          %v1529 = vadd.f32 %v1501, %v1526
          %s1530 = sadd.s32 %s1248, 2
          %s1531 = smul.u32 %s1530, 16
          %s1532 = scalar_lea.vmem [#allocation3], %s1531
          %v1533 = vld [vmem:[%s1532] ss:$2 sm:$0xf]
          %v1534 = vld [vmem:[%s4 + $0x50] sm:$0xf]
          %v1535 = vld [vmem:[%s4 + $0x54] sm:$0xf]
          %v1536 = vpack.c.bf16 %v1533, %v1533
          %v1539 = vunpack.c.l.b16 %v1534
          %v1540 = vunpack.c.l.b16 %v1535
          %v1541 = vpack.c.b16 %v1540, %v1539
          %v1544 = vsel %vm561, %v1536, 0
          %1546 = vmatpush.bf16.msra.mxu0 0
          %1547 = vmatpush.bf16.msra.mxu0 0
          %1548 = vmatpush.bf16.msra.mxu0 0
          %1549 = vmatpush.bf16.msra.mxu0 0
          %1550 = vmatpush.bf16.msra.mxu0 0
          %1551 = vmatpush.bf16.msra.mxu0 0
          %1552 = vmatpush.bf16.msra.mxu0 0
          %1553 = vmatpush.bf16.msra.mxu0 %v1541
          %1554 = vmatmul.bf16.gmra.mxu0 %v1544
          %v1555 = vpop.f32.mrf.mxu0
          %v1556 = vadd.f32 0.0, %v1555
          %v1557 = vpop.f32.mrf.mxu0
          %1558 = vdwg.mxu0
          %v1559 = vadd.f32 %v1529, %v1556
          %s1560 = scalar_lea.vmem %s1532, 1 [#allocation3]
          %v1561 = vld [vmem:[%s1560] ss:$2 sm:$0xf]
          %v1562 = vld [vmem:[%s4 + $0x58] sm:$0xf]
          %v1563 = vld [vmem:[%s4 + $0x5c] sm:$0xf]
          %v1564 = vpack.c.bf16 %v1561, %v1561
          %v1567 = vunpack.c.l.b16 %v1562
          %v1568 = vunpack.c.l.b16 %v1563
          %v1569 = vpack.c.b16 %v1568, %v1567
          %v1572 = vsel %vm561, %v1564, 0
          %1574 = vmatpush.bf16.msra.mxu0 0
          %1575 = vmatpush.bf16.msra.mxu0 0
          %1576 = vmatpush.bf16.msra.mxu0 0
          %1577 = vmatpush.bf16.msra.mxu0 0
          %1578 = vmatpush.bf16.msra.mxu0 0
          %1579 = vmatpush.bf16.msra.mxu0 0
          %1580 = vmatpush.bf16.msra.mxu0 0
          %1581 = vmatpush.bf16.msra.mxu0 %v1569
          %1582 = vmatmul.bf16.gmra.mxu0 %v1572
          %v1583 = vpop.f32.mrf.mxu0
          %v1584 = vadd.f32 0.0, %v1583
          %v1585 = vpop.f32.mrf.mxu0
          %1586 = vdwg.mxu0
          %v1587 = vadd.f32 %v1559, %v1584
          %s1588 = scalar_lea.vmem %s1532, 2 [#allocation3]
          %v1589 = vld [vmem:[%s1588] ss:$2 sm:$0xf]
          %v1590 = vld [vmem:[%s4 + $0x60] sm:$0xf]
          %v1591 = vld [vmem:[%s4 + $0x64] sm:$0xf]
          %v1592 = vpack.c.bf16 %v1589, %v1589
          %v1595 = vunpack.c.l.b16 %v1590
          %v1596 = vunpack.c.l.b16 %v1591
          %v1597 = vpack.c.b16 %v1596, %v1595
          %v1600 = vsel %vm561, %v1592, 0
          %1602 = vmatpush.bf16.msra.mxu0 0
          %1603 = vmatpush.bf16.msra.mxu0 0
          %1604 = vmatpush.bf16.msra.mxu0 0
          %1605 = vmatpush.bf16.msra.mxu0 0
          %1606 = vmatpush.bf16.msra.mxu0 0
          %1607 = vmatpush.bf16.msra.mxu0 0
          %1608 = vmatpush.bf16.msra.mxu0 0
          %1609 = vmatpush.bf16.msra.mxu0 %v1597
          %1610 = vmatmul.bf16.gmra.mxu0 %v1600
          %v1611 = vpop.f32.mrf.mxu0
          %v1612 = vadd.f32 0.0, %v1611
          %v1613 = vpop.f32.mrf.mxu0
          %1614 = vdwg.mxu0
          %v1615 = vadd.f32 %v1587, %v1612
          %s1616 = scalar_lea.vmem %s1532, 3 [#allocation3]
          %v1617 = vld [vmem:[%s1616] ss:$2 sm:$0xf]
          %v1618 = vld [vmem:[%s4 + $0x68] sm:$0xf]
          %v1619 = vld [vmem:[%s4 + $0x6c] sm:$0xf]
          %v1620 = vpack.c.bf16 %v1617, %v1617
          %v1623 = vunpack.c.l.b16 %v1618
          %v1624 = vunpack.c.l.b16 %v1619
          %v1625 = vpack.c.b16 %v1624, %v1623
          %v1628 = vsel %vm561, %v1620, 0
          %1630 = vmatpush.bf16.msra.mxu0 0
          %1631 = vmatpush.bf16.msra.mxu0 0
          %1632 = vmatpush.bf16.msra.mxu0 0
          %1633 = vmatpush.bf16.msra.mxu0 0
          %1634 = vmatpush.bf16.msra.mxu0 0
          %1635 = vmatpush.bf16.msra.mxu0 0
          %1636 = vmatpush.bf16.msra.mxu0 0
          %1637 = vmatpush.bf16.msra.mxu0 %v1625
          %1638 = vmatmul.bf16.gmra.mxu0 %v1628
          %v1639 = vpop.f32.mrf.mxu0
          %v1640 = vadd.f32 0.0, %v1639
          %v1641 = vpop.f32.mrf.mxu0
          %1642 = vdwg.mxu0
          %v1643 = vadd.f32 %v1615, %v1640
          %s1644 = scalar_lea.vmem %s1532, 4 [#allocation3]
          %v1645 = vld [vmem:[%s1644] ss:$2 sm:$0xf]
          %v1646 = vld [vmem:[%s4 + $0x70] sm:$0xf]
          %v1647 = vld [vmem:[%s4 + $0x74] sm:$0xf]
          %v1648 = vpack.c.bf16 %v1645, %v1645
          %v1651 = vunpack.c.l.b16 %v1646
          %v1652 = vunpack.c.l.b16 %v1647
          %v1653 = vpack.c.b16 %v1652, %v1651
          %v1656 = vsel %vm561, %v1648, 0
          %1658 = vmatpush.bf16.msra.mxu0 0
          %1659 = vmatpush.bf16.msra.mxu0 0
          %1660 = vmatpush.bf16.msra.mxu0 0
          %1661 = vmatpush.bf16.msra.mxu0 0
          %1662 = vmatpush.bf16.msra.mxu0 0
          %1663 = vmatpush.bf16.msra.mxu0 0
          %1664 = vmatpush.bf16.msra.mxu0 0
          %1665 = vmatpush.bf16.msra.mxu0 %v1653
          %1666 = vmatmul.bf16.gmra.mxu0 %v1656
          %v1667 = vpop.f32.mrf.mxu0
          %v1668 = vadd.f32 0.0, %v1667
          %v1669 = vpop.f32.mrf.mxu0
          %1670 = vdwg.mxu0
          %v1671 = vadd.f32 %v1643, %v1668
          %s1672 = sadd.s32 %s1248, 3
          %s1673 = smul.u32 %s1672, 16
          %s1674 = scalar_lea.vmem [#allocation3], %s1673
          %v1675 = vld [vmem:[%s1674] ss:$2 sm:$0xf]
          %v1676 = vld [vmem:[%s4 + $0x78] sm:$0xf]
          %v1677 = vld [vmem:[%s4 + $0x7c] sm:$0xf]
          %v1678 = vpack.c.bf16 %v1675, %v1675
          %v1681 = vunpack.c.l.b16 %v1676
          %v1682 = vunpack.c.l.b16 %v1677
          %v1683 = vpack.c.b16 %v1682, %v1681
          %v1686 = vsel %vm561, %v1678, 0
          %1688 = vmatpush.bf16.msra.mxu0 0
          %1689 = vmatpush.bf16.msra.mxu0 0
          %1690 = vmatpush.bf16.msra.mxu0 0
          %1691 = vmatpush.bf16.msra.mxu0 0
          %1692 = vmatpush.bf16.msra.mxu0 0
          %1693 = vmatpush.bf16.msra.mxu0 0
          %1694 = vmatpush.bf16.msra.mxu0 0
          %1695 = vmatpush.bf16.msra.mxu0 %v1683
          %1696 = vmatmul.bf16.gmra.mxu0 %v1686
          %v1697 = vpop.f32.mrf.mxu0
          %v1698 = vadd.f32 0.0, %v1697
          %v1699 = vpop.f32.mrf.mxu0
          %1700 = vdwg.mxu0
          %v1701 = vadd.f32 %v1671, %v1698
          %s1702 = scalar_lea.vmem %s1674, 1 [#allocation3]
          %v1703 = vld [vmem:[%s1702] ss:$2 sm:$0xf]
          %v1704 = vld [vmem:[%s4 + $0x80] sm:$0xf]
          %v1705 = vld [vmem:[%s4 + $0x84] sm:$0xf]
          %v1706 = vpack.c.bf16 %v1703, %v1703
          %v1709 = vunpack.c.l.b16 %v1704
          %v1710 = vunpack.c.l.b16 %v1705
          %v1711 = vpack.c.b16 %v1710, %v1709
          %v1714 = vsel %vm561, %v1706, 0
          %1716 = vmatpush.bf16.msra.mxu0 0
          %1717 = vmatpush.bf16.msra.mxu0 0
          %1718 = vmatpush.bf16.msra.mxu0 0
          %1719 = vmatpush.bf16.msra.mxu0 0
          %1720 = vmatpush.bf16.msra.mxu0 0
          %1721 = vmatpush.bf16.msra.mxu0 0
          %1722 = vmatpush.bf16.msra.mxu0 0
          %1723 = vmatpush.bf16.msra.mxu0 %v1711
          %1724 = vmatmul.bf16.gmra.mxu0 %v1714
          %v1725 = vpop.f32.mrf.mxu0
          %v1726 = vadd.f32 0.0, %v1725
          %v1727 = vpop.f32.mrf.mxu0
          %1728 = vdwg.mxu0
          %v1729 = vadd.f32 %v1701, %v1726
          %s1730 = scalar_lea.vmem %s1674, 2 [#allocation3]
          %v1731 = vld [vmem:[%s1730] ss:$2 sm:$0xf]
          %v1732 = vld [vmem:[%s4 + $0x88] sm:$0xf]
          %v1733 = vld [vmem:[%s4 + $0x8c] sm:$0xf]
          %v1734 = vpack.c.bf16 %v1731, %v1731
          %v1737 = vunpack.c.l.b16 %v1732
          %v1738 = vunpack.c.l.b16 %v1733
          %v1739 = vpack.c.b16 %v1738, %v1737
          %v1742 = vsel %vm561, %v1734, 0
          %1744 = vmatpush.bf16.msra.mxu0 0
          %1745 = vmatpush.bf16.msra.mxu0 0
          %1746 = vmatpush.bf16.msra.mxu0 0
          %1747 = vmatpush.bf16.msra.mxu0 0
          %1748 = vmatpush.bf16.msra.mxu0 0
          %1749 = vmatpush.bf16.msra.mxu0 0
          %1750 = vmatpush.bf16.msra.mxu0 0
          %1751 = vmatpush.bf16.msra.mxu0 %v1739
          %1752 = vmatmul.bf16.gmra.mxu0 %v1742
          %v1753 = vpop.f32.mrf.mxu0
          %v1754 = vadd.f32 0.0, %v1753
          %v1755 = vpop.f32.mrf.mxu0
          %1756 = vdwg.mxu0
          %v1757 = vadd.f32 %v1729, %v1754
          %s1758 = scalar_lea.vmem %s1674, 3 [#allocation3]
          %v1759 = vld [vmem:[%s1758] ss:$2 sm:$0xf]
          %v1760 = vld [vmem:[%s4 + $0x90] sm:$0xf]
          %v1761 = vld [vmem:[%s4 + $0x94] sm:$0xf]
          %v1762 = vpack.c.bf16 %v1759, %v1759
          %v1765 = vunpack.c.l.b16 %v1760
          %v1766 = vunpack.c.l.b16 %v1761
          %v1767 = vpack.c.b16 %v1766, %v1765
          %v1770 = vsel %vm561, %v1762, 0
          %1772 = vmatpush.bf16.msra.mxu0 0
          %1773 = vmatpush.bf16.msra.mxu0 0
          %1774 = vmatpush.bf16.msra.mxu0 0
          %1775 = vmatpush.bf16.msra.mxu0 0
          %1776 = vmatpush.bf16.msra.mxu0 0
          %1777 = vmatpush.bf16.msra.mxu0 0
          %1778 = vmatpush.bf16.msra.mxu0 0
          %1779 = vmatpush.bf16.msra.mxu0 %v1767
          %1780 = vmatmul.bf16.gmra.mxu0 %v1770
          %v1781 = vpop.f32.mrf.mxu0
          %v1782 = vadd.f32 0.0, %v1781
          %v1783 = vpop.f32.mrf.mxu0
          %1784 = vdwg.mxu0
          %v1785 = vadd.f32 %v1757, %v1782
          %s1786 = scalar_lea.vmem %s1674, 4 [#allocation3]
          %v1787 = vld [vmem:[%s1786] ss:$2 sm:$0xf]
          %v1788 = vld [vmem:[%s4 + $0x98] sm:$0xf]
          %v1789 = vld [vmem:[%s4 + $0x9c] sm:$0xf]
          %v1790 = vpack.c.bf16 %v1787, %v1787
          %v1793 = vunpack.c.l.b16 %v1788
          %v1794 = vunpack.c.l.b16 %v1789
          %v1795 = vpack.c.b16 %v1794, %v1793
          %v1798 = vsel %vm561, %v1790, 0
          %1800 = vmatpush.bf16.msra.mxu0 0
          %1801 = vmatpush.bf16.msra.mxu0 0
          %1802 = vmatpush.bf16.msra.mxu0 0
          %1803 = vmatpush.bf16.msra.mxu0 0
          %1804 = vmatpush.bf16.msra.mxu0 0
          %1805 = vmatpush.bf16.msra.mxu0 0
          %1806 = vmatpush.bf16.msra.mxu0 0
          %1807 = vmatpush.bf16.msra.mxu0 %v1795
          %1808 = vmatmul.bf16.gmra.mxu0 %v1798
          %v1809 = vpop.f32.mrf.mxu0
          %v1810 = vadd.f32 0.0, %v1809
          %v1811 = vpop.f32.mrf.mxu0
          %1812 = vdwg.mxu0
          %v1813 = vadd.f32 %v1785, %v1810
          %s1814 = sadd.s32 %s1248, 4
          %s1815 = smul.u32 %s1814, 16
          %s1816 = scalar_lea.vmem [#allocation3], %s1815
          %v1817 = vld [vmem:[%s1816] ss:$2 sm:$0xf]
          %v1818 = vld [vmem:[%s4 + $0xa0] sm:$0xf]
          %v1819 = vld [vmem:[%s4 + $0xa4] sm:$0xf]
          %v1820 = vpack.c.bf16 %v1817, %v1817
          %v1823 = vunpack.c.l.b16 %v1818
          %v1824 = vunpack.c.l.b16 %v1819
          %v1825 = vpack.c.b16 %v1824, %v1823
          %v1828 = vsel %vm561, %v1820, 0
          %1830 = vmatpush.bf16.msra.mxu0 0
          %1831 = vmatpush.bf16.msra.mxu0 0
          %1832 = vmatpush.bf16.msra.mxu0 0
          %1833 = vmatpush.bf16.msra.mxu0 0
          %1834 = vmatpush.bf16.msra.mxu0 0
          %1835 = vmatpush.bf16.msra.mxu0 0
          %1836 = vmatpush.bf16.msra.mxu0 0
          %1837 = vmatpush.bf16.msra.mxu0 %v1825
          %1838 = vmatmul.bf16.gmra.mxu0 %v1828
          %v1839 = vpop.f32.mrf.mxu0
          %v1840 = vadd.f32 0.0, %v1839
          %v1841 = vpop.f32.mrf.mxu0
          %1842 = vdwg.mxu0
          %v1843 = vadd.f32 %v1813, %v1840
          %s1844 = scalar_lea.vmem %s1816, 1 [#allocation3]
          %v1845 = vld [vmem:[%s1844] ss:$2 sm:$0xf]
          %v1846 = vld [vmem:[%s4 + $0xa8] sm:$0xf]
          %v1847 = vld [vmem:[%s4 + $0xac] sm:$0xf]
          %v1848 = vpack.c.bf16 %v1845, %v1845
          %v1851 = vunpack.c.l.b16 %v1846
          %v1852 = vunpack.c.l.b16 %v1847
          %v1853 = vpack.c.b16 %v1852, %v1851
          %v1856 = vsel %vm561, %v1848, 0
          %1858 = vmatpush.bf16.msra.mxu0 0
          %1859 = vmatpush.bf16.msra.mxu0 0
          %1860 = vmatpush.bf16.msra.mxu0 0
          %1861 = vmatpush.bf16.msra.mxu0 0
          %1862 = vmatpush.bf16.msra.mxu0 0
          %1863 = vmatpush.bf16.msra.mxu0 0
          %1864 = vmatpush.bf16.msra.mxu0 0
          %1865 = vmatpush.bf16.msra.mxu0 %v1853
          %1866 = vmatmul.bf16.gmra.mxu0 %v1856
          %v1867 = vpop.f32.mrf.mxu0
          %v1868 = vadd.f32 0.0, %v1867
          %v1869 = vpop.f32.mrf.mxu0
          %1870 = vdwg.mxu0
          %v1871 = vadd.f32 %v1843, %v1868
          %s1872 = scalar_lea.vmem %s1816, 2 [#allocation3]
          %v1873 = vld [vmem:[%s1872] ss:$2 sm:$0xf]
          %v1874 = vld [vmem:[%s4 + $0xb0] sm:$0xf]
          %v1875 = vld [vmem:[%s4 + $0xb4] sm:$0xf]
          %v1876 = vpack.c.bf16 %v1873, %v1873
          %v1879 = vunpack.c.l.b16 %v1874
          %v1880 = vunpack.c.l.b16 %v1875
          %v1881 = vpack.c.b16 %v1880, %v1879
          %v1884 = vsel %vm561, %v1876, 0
          %1886 = vmatpush.bf16.msra.mxu0 0
          %1887 = vmatpush.bf16.msra.mxu0 0
          %1888 = vmatpush.bf16.msra.mxu0 0
          %1889 = vmatpush.bf16.msra.mxu0 0
          %1890 = vmatpush.bf16.msra.mxu0 0
          %1891 = vmatpush.bf16.msra.mxu0 0
          %1892 = vmatpush.bf16.msra.mxu0 0
          %1893 = vmatpush.bf16.msra.mxu0 %v1881
          %1894 = vmatmul.bf16.gmra.mxu0 %v1884
          %v1895 = vpop.f32.mrf.mxu0
          %v1896 = vadd.f32 0.0, %v1895
          %v1897 = vpop.f32.mrf.mxu0
          %1898 = vdwg.mxu0
          %v1899 = vadd.f32 %v1871, %v1896
          %s1900 = scalar_lea.vmem %s1816, 3 [#allocation3]
          %v1901 = vld [vmem:[%s1900] ss:$2 sm:$0xf]
          %v1902 = vld [vmem:[%s4 + $0xb8] sm:$0xf]
          %v1903 = vld [vmem:[%s4 + $0xbc] sm:$0xf]
          %v1904 = vpack.c.bf16 %v1901, %v1901
          %v1907 = vunpack.c.l.b16 %v1902
          %v1908 = vunpack.c.l.b16 %v1903
          %v1909 = vpack.c.b16 %v1908, %v1907
          %v1912 = vsel %vm561, %v1904, 0
          %1914 = vmatpush.bf16.msra.mxu0 0
          %1915 = vmatpush.bf16.msra.mxu0 0
          %1916 = vmatpush.bf16.msra.mxu0 0
          %1917 = vmatpush.bf16.msra.mxu0 0
          %1918 = vmatpush.bf16.msra.mxu0 0
          %1919 = vmatpush.bf16.msra.mxu0 0
          %1920 = vmatpush.bf16.msra.mxu0 0
          %1921 = vmatpush.bf16.msra.mxu0 %v1909
          %1922 = vmatmul.bf16.gmra.mxu0 %v1912
          %v1923 = vpop.f32.mrf.mxu0
          %v1924 = vadd.f32 0.0, %v1923
          %v1925 = vpop.f32.mrf.mxu0
          %1926 = vdwg.mxu0
          %v1927 = vadd.f32 %v1899, %v1924
          %s1928 = scalar_lea.vmem %s1816, 4 [#allocation3]
          %v1929 = vld [vmem:[%s1928] ss:$2 sm:$0xf]
          %v1930 = vld [vmem:[%s4 + $0xc0] sm:$0xf]
          %v1931 = vld [vmem:[%s4 + $0xc4] sm:$0xf]
          %v1932 = vpack.c.bf16 %v1929, %v1929
          %v1935 = vunpack.c.l.b16 %v1930
          %v1936 = vunpack.c.l.b16 %v1931
          %v1937 = vpack.c.b16 %v1936, %v1935
          %v1940 = vsel %vm561, %v1932, 0
          %1942 = vmatpush.bf16.msra.mxu0 0
          %1943 = vmatpush.bf16.msra.mxu0 0
          %1944 = vmatpush.bf16.msra.mxu0 0
          %1945 = vmatpush.bf16.msra.mxu0 0
          %1946 = vmatpush.bf16.msra.mxu0 0
          %1947 = vmatpush.bf16.msra.mxu0 0
          %1948 = vmatpush.bf16.msra.mxu0 0
          %1949 = vmatpush.bf16.msra.mxu0 %v1937
          %1950 = vmatmul.bf16.gmra.mxu0 %v1940
          %v1951 = vpop.f32.mrf.mxu0
          %v1952 = vadd.f32 0.0, %v1951
          %v1953 = vpop.f32.mrf.mxu0
          %1954 = vdwg.mxu0
          %v1955 = vadd.f32 %v1927, %v1952
          %v1957 = vperm.slane %v1240, 0
          %v1959 = vmul.f32 %v1955, %v1957
          %v1961 = vperm.slane %v1241, 0
          %v1963 = vadd.f32 %v1959, %v1961
          %v1964 = vmax.f32 %v1963, 0.0
          %s1965 = sadd.s32 %s1243, 1
          %s1966 = smul.u32 %s1965, 8
          %s1967 = scalar_lea.vmem [#allocation4], %s1966
          %vm1968 = vcmask 257024
          %1969 = vst.msk [vmem:[%s1967 + $0x1] sm:$0xf] %vm1968, %v1964
        $region92: #{cnn_network4_forward.1} parent=79 // loop_footer
          %s1247 = sadd.s32 1, %s1243
        $region93: #{cnn_network4_forward.1} parent=79 // loop_footer_branch
          %1242 = sbr.rel target = $region89
        $region94: #{cnn_network4_forward.1} parent=79 // loop_exit
          _
        %v1970 = vld [vmem:[%s8] sm:$0x1]
        %v1971 = vld [vmem:[%s9] sm:$0x1]
        loop: start=0, step=1, limit=4
        $region95: #{cnn_network4_forward.1} parent=79 // loop_pre_header
          _
        $region96: #{cnn_network4_forward.1} parent=79 // loop_header
          %s1973 = sphi 0, %s1977
          %p1974 = scmp.ge.s32.totalorder %s1973, 4
        $region97: #{cnn_network4_forward.1} parent=79 // loop_header_branch
          %1976 = sbr.rel (%p1974) target = $region101
        $region98: #{cnn_network4_forward.1} parent=79 // loop_body
          %s1978 = smul.u32 %s1973, 8
          %s1979 = scalar_lea.vmem [#allocation4], %s1978
          %v1980 = vld [vmem:[%s1979] sm:$0xf]
          %v1981 = vld [vmem:[%s7] sm:$0xf]
          %v1982 = vld [vmem:[%s7 + $0x4] sm:$0xf]
          %v1983 = vld [vmem:[%s7 + $0x8] sm:$0xf]
          %v1984 = vld [vmem:[%s7 + $0xc] sm:$0xf]
          %v1985 = vpack.c.bf16 %v1980, %v1980
          %v1986 = vld [vmem:[%s1979 + $0x1] sm:$0xf]
          %v1987 = vld [vmem:[%s7 + $0x10] sm:$0xf]
          %v1988 = vld [vmem:[%s7 + $0x14] sm:$0xf]
          %v1989 = vld [vmem:[%s7 + $0x18] sm:$0xf]
          %v1990 = vld [vmem:[%s7 + $0x1c] sm:$0xf]
          %v1991 = vpack.c.bf16 %v1986, %v1986
          %v1996 = vunpack.c.l.b16 %v1987
          %v1997 = vunpack.c.l.b16 %v1988
          %v1998 = vunpack.c.l.b16 %v1989
          %v1999 = vunpack.c.l.b16 %v1990
          %v2000 = vpack.c.b16 %v1997, %v1996
          %v2001 = vpack.c.b16 %v1999, %v1998
          %vm2004 = vcmask 261120
          %v2006 = vsel %vm2004, %v1991, 0
          %2008 = vmatpush.bf16.msra.mxu0 0
          %2009 = vmatpush.bf16.msra.mxu0 0
          %2010 = vmatpush.bf16.msra.mxu0 0
          %2011 = vmatpush.bf16.msra.mxu0 0
          %2012 = vmatpush.bf16.msra.mxu0 0
          %2013 = vmatpush.bf16.msra.mxu0 0
          %2014 = vmatpush.bf16.msra.mxu0 %v2001
          %2015 = vmatpush.bf16.msra.mxu0 %v2000
          %2016 = vmatmul.bf16.gmra.mxu0 %v2006
          %v2017 = vpop.f32.mrf.mxu0
          %v2018 = vadd.f32 0.0, %v2017
          %v2019 = vpop.f32.mrf.mxu0
          %2020 = vdwg.mxu0
          %v2025 = vunpack.c.l.b16 %v1981
          %v2026 = vunpack.c.l.b16 %v1982
          %v2027 = vunpack.c.l.b16 %v1983
          %v2028 = vunpack.c.l.b16 %v1984
          %v2029 = vpack.c.b16 %v2026, %v2025
          %v2030 = vpack.c.b16 %v2028, %v2027
          %v2034 = vsel %vm2004, %v1985, 0
          %2036 = vmatpush.bf16.msra.mxu0 0
          %2037 = vmatpush.bf16.msra.mxu0 0
          %2038 = vmatpush.bf16.msra.mxu0 0
          %2039 = vmatpush.bf16.msra.mxu0 0
          %2040 = vmatpush.bf16.msra.mxu0 0
          %2041 = vmatpush.bf16.msra.mxu0 0
          %2042 = vmatpush.bf16.msra.mxu0 %v2030
          %2043 = vmatpush.bf16.msra.mxu0 %v2029
          %2044 = vmatmul.bf16.gmra.mxu0 %v2034
          %v2045 = vpop.f32.mrf.mxu0
          %v2046 = vadd.f32 %v2018, %v2045
          %v2047 = vpop.f32.mrf.mxu0
          %2048 = vdwg.mxu0
          %v2049 = vld [vmem:[%s1979 + $0x2] sm:$0xf]
          %v2050 = vld [vmem:[%s7 + $0x20] sm:$0xf]
          %v2051 = vld [vmem:[%s7 + $0x24] sm:$0xf]
          %v2052 = vld [vmem:[%s7 + $0x28] sm:$0xf]
          %v2053 = vld [vmem:[%s7 + $0x2c] sm:$0xf]
          %v2054 = vpack.c.bf16 %v2049, %v2049
          %v2059 = vunpack.c.l.b16 %v2050
          %v2060 = vunpack.c.l.b16 %v2051
          %v2061 = vunpack.c.l.b16 %v2052
          %v2062 = vunpack.c.l.b16 %v2053
          %v2063 = vpack.c.b16 %v2060, %v2059
          %v2064 = vpack.c.b16 %v2062, %v2061
          %v2068 = vsel %vm2004, %v2054, 0
          %2070 = vmatpush.bf16.msra.mxu0 0
          %2071 = vmatpush.bf16.msra.mxu0 0
          %2072 = vmatpush.bf16.msra.mxu0 0
          %2073 = vmatpush.bf16.msra.mxu0 0
          %2074 = vmatpush.bf16.msra.mxu0 0
          %2075 = vmatpush.bf16.msra.mxu0 0
          %2076 = vmatpush.bf16.msra.mxu0 %v2064
          %2077 = vmatpush.bf16.msra.mxu0 %v2063
          %2078 = vmatmul.bf16.gmra.mxu0 %v2068
          %v2079 = vpop.f32.mrf.mxu0
          %v2080 = vadd.f32 0.0, %v2079
          %v2081 = vpop.f32.mrf.mxu0
          %2082 = vdwg.mxu0
          %v2083 = vadd.f32 %v2046, %v2080
          %s2084 = sadd.s32 %s1973, 1
          %s2085 = smul.u32 %s2084, 8
          %s2086 = scalar_lea.vmem [#allocation4], %s2085
          %v2087 = vld [vmem:[%s2086] sm:$0xf]
          %v2088 = vld [vmem:[%s7 + $0x30] sm:$0xf]
          %v2089 = vld [vmem:[%s7 + $0x34] sm:$0xf]
          %v2090 = vld [vmem:[%s7 + $0x38] sm:$0xf]
          %v2091 = vld [vmem:[%s7 + $0x3c] sm:$0xf]
          %v2092 = vpack.c.bf16 %v2087, %v2087
          %v2097 = vunpack.c.l.b16 %v2088
          %v2098 = vunpack.c.l.b16 %v2089
          %v2099 = vunpack.c.l.b16 %v2090
          %v2100 = vunpack.c.l.b16 %v2091
          %v2101 = vpack.c.b16 %v2098, %v2097
          %v2102 = vpack.c.b16 %v2100, %v2099
          %v2106 = vsel %vm2004, %v2092, 0
          %2108 = vmatpush.bf16.msra.mxu0 0
          %2109 = vmatpush.bf16.msra.mxu0 0
          %2110 = vmatpush.bf16.msra.mxu0 0
          %2111 = vmatpush.bf16.msra.mxu0 0
          %2112 = vmatpush.bf16.msra.mxu0 0
          %2113 = vmatpush.bf16.msra.mxu0 0
          %2114 = vmatpush.bf16.msra.mxu0 %v2102
          %2115 = vmatpush.bf16.msra.mxu0 %v2101
          %2116 = vmatmul.bf16.gmra.mxu0 %v2106
          %v2117 = vpop.f32.mrf.mxu0
          %v2118 = vadd.f32 0.0, %v2117
          %v2119 = vpop.f32.mrf.mxu0
          %2120 = vdwg.mxu0
          %v2121 = vadd.f32 %v2083, %v2118
          %v2122 = vld [vmem:[%s2086 + $0x1] sm:$0xf]
          %v2123 = vld [vmem:[%s7 + $0x40] sm:$0xf]
          %v2124 = vld [vmem:[%s7 + $0x44] sm:$0xf]
          %v2125 = vld [vmem:[%s7 + $0x48] sm:$0xf]
          %v2126 = vld [vmem:[%s7 + $0x4c] sm:$0xf]
          %v2127 = vpack.c.bf16 %v2122, %v2122
          %v2132 = vunpack.c.l.b16 %v2123
          %v2133 = vunpack.c.l.b16 %v2124
          %v2134 = vunpack.c.l.b16 %v2125
          %v2135 = vunpack.c.l.b16 %v2126
          %v2136 = vpack.c.b16 %v2133, %v2132
          %v2137 = vpack.c.b16 %v2135, %v2134
          %v2141 = vsel %vm2004, %v2127, 0
          %2143 = vmatpush.bf16.msra.mxu0 0
          %2144 = vmatpush.bf16.msra.mxu0 0
          %2145 = vmatpush.bf16.msra.mxu0 0
          %2146 = vmatpush.bf16.msra.mxu0 0
          %2147 = vmatpush.bf16.msra.mxu0 0
          %2148 = vmatpush.bf16.msra.mxu0 0
          %2149 = vmatpush.bf16.msra.mxu0 %v2137
          %2150 = vmatpush.bf16.msra.mxu0 %v2136
          %2151 = vmatmul.bf16.gmra.mxu0 %v2141
          %v2152 = vpop.f32.mrf.mxu0
          %v2153 = vadd.f32 0.0, %v2152
          %v2154 = vpop.f32.mrf.mxu0
          %2155 = vdwg.mxu0
          %v2156 = vadd.f32 %v2121, %v2153
          %v2157 = vld [vmem:[%s2086 + $0x2] sm:$0xf]
          %v2158 = vld [vmem:[%s7 + $0x50] sm:$0xf]
          %v2159 = vld [vmem:[%s7 + $0x54] sm:$0xf]
          %v2160 = vld [vmem:[%s7 + $0x58] sm:$0xf]
          %v2161 = vld [vmem:[%s7 + $0x5c] sm:$0xf]
          %v2162 = vpack.c.bf16 %v2157, %v2157
          %v2167 = vunpack.c.l.b16 %v2158
          %v2168 = vunpack.c.l.b16 %v2159
          %v2169 = vunpack.c.l.b16 %v2160
          %v2170 = vunpack.c.l.b16 %v2161
          %v2171 = vpack.c.b16 %v2168, %v2167
          %v2172 = vpack.c.b16 %v2170, %v2169
          %v2176 = vsel %vm2004, %v2162, 0
          %2178 = vmatpush.bf16.msra.mxu0 0
          %2179 = vmatpush.bf16.msra.mxu0 0
          %2180 = vmatpush.bf16.msra.mxu0 0
          %2181 = vmatpush.bf16.msra.mxu0 0
          %2182 = vmatpush.bf16.msra.mxu0 0
          %2183 = vmatpush.bf16.msra.mxu0 0
          %2184 = vmatpush.bf16.msra.mxu0 %v2172
          %2185 = vmatpush.bf16.msra.mxu0 %v2171
          %2186 = vmatmul.bf16.gmra.mxu0 %v2176
          %v2187 = vpop.f32.mrf.mxu0
          %v2188 = vadd.f32 0.0, %v2187
          %v2189 = vpop.f32.mrf.mxu0
          %2190 = vdwg.mxu0
          %v2191 = vadd.f32 %v2156, %v2188
          %s2192 = sadd.s32 %s1973, 2
          %s2193 = smul.u32 %s2192, 8
          %s2194 = scalar_lea.vmem [#allocation4], %s2193
          %v2195 = vld [vmem:[%s2194] sm:$0xf]
          %v2196 = vld [vmem:[%s7 + $0x60] sm:$0xf]
          %v2197 = vld [vmem:[%s7 + $0x64] sm:$0xf]
          %v2198 = vld [vmem:[%s7 + $0x68] sm:$0xf]
          %v2199 = vld [vmem:[%s7 + $0x6c] sm:$0xf]
          %v2200 = vpack.c.bf16 %v2195, %v2195
          %v2205 = vunpack.c.l.b16 %v2196
          %v2206 = vunpack.c.l.b16 %v2197
          %v2207 = vunpack.c.l.b16 %v2198
          %v2208 = vunpack.c.l.b16 %v2199
          %v2209 = vpack.c.b16 %v2206, %v2205
          %v2210 = vpack.c.b16 %v2208, %v2207
          %v2214 = vsel %vm2004, %v2200, 0
          %2216 = vmatpush.bf16.msra.mxu0 0
          %2217 = vmatpush.bf16.msra.mxu0 0
          %2218 = vmatpush.bf16.msra.mxu0 0
          %2219 = vmatpush.bf16.msra.mxu0 0
          %2220 = vmatpush.bf16.msra.mxu0 0
          %2221 = vmatpush.bf16.msra.mxu0 0
          %2222 = vmatpush.bf16.msra.mxu0 %v2210
          %2223 = vmatpush.bf16.msra.mxu0 %v2209
          %2224 = vmatmul.bf16.gmra.mxu0 %v2214
          %v2225 = vpop.f32.mrf.mxu0
          %v2226 = vadd.f32 0.0, %v2225
          %v2227 = vpop.f32.mrf.mxu0
          %2228 = vdwg.mxu0
          %v2229 = vadd.f32 %v2191, %v2226
          %v2230 = vld [vmem:[%s2194 + $0x1] sm:$0xf]
          %v2231 = vld [vmem:[%s7 + $0x70] sm:$0xf]
          %v2232 = vld [vmem:[%s7 + $0x74] sm:$0xf]
          %v2233 = vld [vmem:[%s7 + $0x78] sm:$0xf]
          %v2234 = vld [vmem:[%s7 + $0x7c] sm:$0xf]
          %v2235 = vpack.c.bf16 %v2230, %v2230
          %v2240 = vunpack.c.l.b16 %v2231
          %v2241 = vunpack.c.l.b16 %v2232
          %v2242 = vunpack.c.l.b16 %v2233
          %v2243 = vunpack.c.l.b16 %v2234
          %v2244 = vpack.c.b16 %v2241, %v2240
          %v2245 = vpack.c.b16 %v2243, %v2242
          %v2249 = vsel %vm2004, %v2235, 0
          %2251 = vmatpush.bf16.msra.mxu0 0
          %2252 = vmatpush.bf16.msra.mxu0 0
          %2253 = vmatpush.bf16.msra.mxu0 0
          %2254 = vmatpush.bf16.msra.mxu0 0
          %2255 = vmatpush.bf16.msra.mxu0 0
          %2256 = vmatpush.bf16.msra.mxu0 0
          %2257 = vmatpush.bf16.msra.mxu0 %v2245
          %2258 = vmatpush.bf16.msra.mxu0 %v2244
          %2259 = vmatmul.bf16.gmra.mxu0 %v2249
          %v2260 = vpop.f32.mrf.mxu0
          %v2261 = vadd.f32 0.0, %v2260
          %v2262 = vpop.f32.mrf.mxu0
          %2263 = vdwg.mxu0
          %v2264 = vadd.f32 %v2229, %v2261
          %v2265 = vld [vmem:[%s2194 + $0x2] sm:$0xf]
          %v2266 = vld [vmem:[%s7 + $0x80] sm:$0xf]
          %v2267 = vld [vmem:[%s7 + $0x84] sm:$0xf]
          %v2268 = vld [vmem:[%s7 + $0x88] sm:$0xf]
          %v2269 = vld [vmem:[%s7 + $0x8c] sm:$0xf]
          %v2270 = vpack.c.bf16 %v2265, %v2265
          %v2275 = vunpack.c.l.b16 %v2266
          %v2276 = vunpack.c.l.b16 %v2267
          %v2277 = vunpack.c.l.b16 %v2268
          %v2278 = vunpack.c.l.b16 %v2269
          %v2279 = vpack.c.b16 %v2276, %v2275
          %v2280 = vpack.c.b16 %v2278, %v2277
          %v2284 = vsel %vm2004, %v2270, 0
          %2286 = vmatpush.bf16.msra.mxu0 0
          %2287 = vmatpush.bf16.msra.mxu0 0
          %2288 = vmatpush.bf16.msra.mxu0 0
          %2289 = vmatpush.bf16.msra.mxu0 0
          %2290 = vmatpush.bf16.msra.mxu0 0
          %2291 = vmatpush.bf16.msra.mxu0 0
          %2292 = vmatpush.bf16.msra.mxu0 %v2280
          %2293 = vmatpush.bf16.msra.mxu0 %v2279
          %2294 = vmatmul.bf16.gmra.mxu0 %v2284
          %v2295 = vpop.f32.mrf.mxu0
          %v2296 = vadd.f32 0.0, %v2295
          %v2297 = vpop.f32.mrf.mxu0
          %2298 = vdwg.mxu0
          %v2299 = vadd.f32 %v2264, %v2296
          %v2301 = vperm.slane %v1970, 0
          %v2303 = vmul.f32 %v2299, %v2301
          %v2305 = vperm.slane %v1971, 0
          %v2307 = vadd.f32 %v2303, %v2305
          %v2308 = vmax.f32 %v2307, 0.0
          %s2309 = scalar_lea.vmem [#allocation5], %s2085
          %vm2310 = vcmask 519168
          %2311 = vst.msk [vmem:[%s2309 + $0x1] sm:$0xf] %vm2310, %v2308
        $region99: #{cnn_network4_forward.1} parent=79 // loop_footer
          %s1977 = sadd.s32 1, %s1973
        $region100: #{cnn_network4_forward.1} parent=79 // loop_footer_branch
          %1972 = sbr.rel target = $region96
        $region101: #{cnn_network4_forward.1} parent=79 // loop_exit
          _
        %v2312 = vld [vmem:[%s11] sm:$0x1]
        %v2313 = vld [vmem:[%s12] sm:$0x1]
        loop: start=0, step=1, limit=4
        $region102: #{cnn_network4_forward.1} parent=79 // loop_pre_header
          _
        $region103: #{cnn_network4_forward.1} parent=79 // loop_header
          %s2315 = sphi 0, %s2319
          %p2316 = scmp.ge.s32.totalorder %s2315, 4
        $region104: #{cnn_network4_forward.1} parent=79 // loop_header_branch
          %2318 = sbr.rel (%p2316) target = $region108
        $region105: #{cnn_network4_forward.1} parent=79 // loop_body
          %s2320 = smul.u32 %s2315, 8
          %s2321 = scalar_lea.vmem [#allocation5], %s2320
          %v2322 = vld [vmem:[%s2321] sm:$0xf]
          %v2323 = vld [vmem:[%s10] sm:$0xf]
          %v2324 = vld [vmem:[%s10 + $0x4] sm:$0xf]
          %v2325 = vld [vmem:[%s10 + $0x8] sm:$0xf]
          %v2326 = vld [vmem:[%s10 + $0xc] sm:$0xf]
          %v2327 = vld [vmem:[%s10 + $0x10] sm:$0xf]
          %v2328 = vld [vmem:[%s10 + $0x14] sm:$0xf]
          %v2329 = vld [vmem:[%s10 + $0x18] sm:$0xf]
          %v2330 = vld [vmem:[%s10 + $0x1c] sm:$0xf]
          %v2331 = vpack.c.bf16 %v2322, %v2322
          %v2332 = vld [vmem:[%s2321 + $0x1] sm:$0xf]
          %v2333 = vld [vmem:[%s10 + $0x20] sm:$0xf]
          %v2334 = vld [vmem:[%s10 + $0x24] sm:$0xf]
          %v2335 = vld [vmem:[%s10 + $0x28] sm:$0xf]
          %v2336 = vld [vmem:[%s10 + $0x2c] sm:$0xf]
          %v2337 = vld [vmem:[%s10 + $0x30] sm:$0xf]
          %v2338 = vld [vmem:[%s10 + $0x34] sm:$0xf]
          %v2339 = vld [vmem:[%s10 + $0x38] sm:$0xf]
          %v2340 = vld [vmem:[%s10 + $0x3c] sm:$0xf]
          %v2341 = vpack.c.bf16 %v2332, %v2332
          %v2350 = vunpack.c.l.b16 %v2333
          %v2351 = vunpack.c.l.b16 %v2334
          %v2352 = vunpack.c.l.b16 %v2335
          %v2353 = vunpack.c.l.b16 %v2336
          %v2354 = vunpack.c.l.b16 %v2337
          %v2355 = vunpack.c.l.b16 %v2338
          %v2356 = vunpack.c.l.b16 %v2339
          %v2357 = vunpack.c.l.b16 %v2340
          %v2358 = vpack.c.b16 %v2351, %v2350
          %v2359 = vpack.c.b16 %v2353, %v2352
          %v2360 = vpack.c.b16 %v2355, %v2354
          %v2361 = vpack.c.b16 %v2357, %v2356
          %vm2366 = vcmask 523264
          %v2368 = vsel %vm2366, %v2341, 0
          %2370 = vmatpush.bf16.msra.mxu0 0
          %2371 = vmatpush.bf16.msra.mxu0 0
          %2372 = vmatpush.bf16.msra.mxu0 0
          %2373 = vmatpush.bf16.msra.mxu0 0
          %2374 = vmatpush.bf16.msra.mxu0 %v2361
          %2375 = vmatpush.bf16.msra.mxu0 %v2360
          %2376 = vmatpush.bf16.msra.mxu0 %v2359
          %2377 = vmatpush.bf16.msra.mxu0 %v2358
          %2378 = vmatmul.bf16.gmra.mxu0 %v2368
          %v2379 = vpop.f32.mrf.mxu0
          %v2380 = vadd.f32 0.0, %v2379
          %v2381 = vpop.f32.mrf.mxu0
          %2382 = vdwg.mxu0
          %v2391 = vunpack.c.l.b16 %v2323
          %v2392 = vunpack.c.l.b16 %v2324
          %v2393 = vunpack.c.l.b16 %v2325
          %v2394 = vunpack.c.l.b16 %v2326
          %v2395 = vunpack.c.l.b16 %v2327
          %v2396 = vunpack.c.l.b16 %v2328
          %v2397 = vunpack.c.l.b16 %v2329
          %v2398 = vunpack.c.l.b16 %v2330
          %v2399 = vpack.c.b16 %v2392, %v2391
          %v2400 = vpack.c.b16 %v2394, %v2393
          %v2401 = vpack.c.b16 %v2396, %v2395
          %v2402 = vpack.c.b16 %v2398, %v2397
          %v2408 = vsel %vm2366, %v2331, 0
          %2410 = vmatpush.bf16.msra.mxu0 0
          %2411 = vmatpush.bf16.msra.mxu0 0
          %2412 = vmatpush.bf16.msra.mxu0 0
          %2413 = vmatpush.bf16.msra.mxu0 0
          %2414 = vmatpush.bf16.msra.mxu0 %v2402
          %2415 = vmatpush.bf16.msra.mxu0 %v2401
          %2416 = vmatpush.bf16.msra.mxu0 %v2400
          %2417 = vmatpush.bf16.msra.mxu0 %v2399
          %2418 = vmatmul.bf16.gmra.mxu0 %v2408
          %v2419 = vpop.f32.mrf.mxu0
          %v2420 = vadd.f32 %v2380, %v2419
          %v2421 = vpop.f32.mrf.mxu0
          %2422 = vdwg.mxu0
          %v2423 = vld [vmem:[%s2321 + $0x2] sm:$0xf]
          %v2424 = vld [vmem:[%s10 + $0x40] sm:$0xf]
          %v2425 = vld [vmem:[%s10 + $0x44] sm:$0xf]
          %v2426 = vld [vmem:[%s10 + $0x48] sm:$0xf]
          %v2427 = vld [vmem:[%s10 + $0x4c] sm:$0xf]
          %v2428 = vld [vmem:[%s10 + $0x50] sm:$0xf]
          %v2429 = vld [vmem:[%s10 + $0x54] sm:$0xf]
          %v2430 = vld [vmem:[%s10 + $0x58] sm:$0xf]
          %v2431 = vld [vmem:[%s10 + $0x5c] sm:$0xf]
          %v2432 = vpack.c.bf16 %v2423, %v2423
          %v2441 = vunpack.c.l.b16 %v2424
          %v2442 = vunpack.c.l.b16 %v2425
          %v2443 = vunpack.c.l.b16 %v2426
          %v2444 = vunpack.c.l.b16 %v2427
          %v2445 = vunpack.c.l.b16 %v2428
          %v2446 = vunpack.c.l.b16 %v2429
          %v2447 = vunpack.c.l.b16 %v2430
          %v2448 = vunpack.c.l.b16 %v2431
          %v2449 = vpack.c.b16 %v2442, %v2441
          %v2450 = vpack.c.b16 %v2444, %v2443
          %v2451 = vpack.c.b16 %v2446, %v2445
          %v2452 = vpack.c.b16 %v2448, %v2447
          %v2458 = vsel %vm2366, %v2432, 0
          %2460 = vmatpush.bf16.msra.mxu0 0
          %2461 = vmatpush.bf16.msra.mxu0 0
          %2462 = vmatpush.bf16.msra.mxu0 0
          %2463 = vmatpush.bf16.msra.mxu0 0
          %2464 = vmatpush.bf16.msra.mxu0 %v2452
          %2465 = vmatpush.bf16.msra.mxu0 %v2451
          %2466 = vmatpush.bf16.msra.mxu0 %v2450
          %2467 = vmatpush.bf16.msra.mxu0 %v2449
          %2468 = vmatmul.bf16.gmra.mxu0 %v2458
          %v2469 = vpop.f32.mrf.mxu0
          %v2470 = vadd.f32 0.0, %v2469
          %v2471 = vpop.f32.mrf.mxu0
          %2472 = vdwg.mxu0
          %v2473 = vadd.f32 %v2420, %v2470
          %s2474 = sadd.s32 %s2315, 1
          %s2475 = smul.u32 %s2474, 8
          %s2476 = scalar_lea.vmem [#allocation5], %s2475
          %v2477 = vld [vmem:[%s2476] sm:$0xf]
          %v2478 = vld [vmem:[%s10 + $0x60] sm:$0xf]
          %v2479 = vld [vmem:[%s10 + $0x64] sm:$0xf]
          %v2480 = vld [vmem:[%s10 + $0x68] sm:$0xf]
          %v2481 = vld [vmem:[%s10 + $0x6c] sm:$0xf]
          %v2482 = vld [vmem:[%s10 + $0x70] sm:$0xf]
          %v2483 = vld [vmem:[%s10 + $0x74] sm:$0xf]
          %v2484 = vld [vmem:[%s10 + $0x78] sm:$0xf]
          %v2485 = vld [vmem:[%s10 + $0x7c] sm:$0xf]
          %v2486 = vpack.c.bf16 %v2477, %v2477
          %v2495 = vunpack.c.l.b16 %v2478
          %v2496 = vunpack.c.l.b16 %v2479
          %v2497 = vunpack.c.l.b16 %v2480
          %v2498 = vunpack.c.l.b16 %v2481
          %v2499 = vunpack.c.l.b16 %v2482
          %v2500 = vunpack.c.l.b16 %v2483
          %v2501 = vunpack.c.l.b16 %v2484
          %v2502 = vunpack.c.l.b16 %v2485
          %v2503 = vpack.c.b16 %v2496, %v2495
          %v2504 = vpack.c.b16 %v2498, %v2497
          %v2505 = vpack.c.b16 %v2500, %v2499
          %v2506 = vpack.c.b16 %v2502, %v2501
          %v2512 = vsel %vm2366, %v2486, 0
          %2514 = vmatpush.bf16.msra.mxu0 0
          %2515 = vmatpush.bf16.msra.mxu0 0
          %2516 = vmatpush.bf16.msra.mxu0 0
          %2517 = vmatpush.bf16.msra.mxu0 0
          %2518 = vmatpush.bf16.msra.mxu0 %v2506
          %2519 = vmatpush.bf16.msra.mxu0 %v2505
          %2520 = vmatpush.bf16.msra.mxu0 %v2504
          %2521 = vmatpush.bf16.msra.mxu0 %v2503
          %2522 = vmatmul.bf16.gmra.mxu0 %v2512
          %v2523 = vpop.f32.mrf.mxu0
          %v2524 = vadd.f32 0.0, %v2523
          %v2525 = vpop.f32.mrf.mxu0
          %2526 = vdwg.mxu0
          %v2527 = vadd.f32 %v2473, %v2524
          %v2528 = vld [vmem:[%s2476 + $0x1] sm:$0xf]
          %v2529 = vld [vmem:[%s10 + $0x80] sm:$0xf]
          %v2530 = vld [vmem:[%s10 + $0x84] sm:$0xf]
          %v2531 = vld [vmem:[%s10 + $0x88] sm:$0xf]
          %v2532 = vld [vmem:[%s10 + $0x8c] sm:$0xf]
          %v2533 = vld [vmem:[%s10 + $0x90] sm:$0xf]
          %v2534 = vld [vmem:[%s10 + $0x94] sm:$0xf]
          %v2535 = vld [vmem:[%s10 + $0x98] sm:$0xf]
          %v2536 = vld [vmem:[%s10 + $0x9c] sm:$0xf]
          %v2537 = vpack.c.bf16 %v2528, %v2528
          %v2546 = vunpack.c.l.b16 %v2529
          %v2547 = vunpack.c.l.b16 %v2530
          %v2548 = vunpack.c.l.b16 %v2531
          %v2549 = vunpack.c.l.b16 %v2532
          %v2550 = vunpack.c.l.b16 %v2533
          %v2551 = vunpack.c.l.b16 %v2534
          %v2552 = vunpack.c.l.b16 %v2535
          %v2553 = vunpack.c.l.b16 %v2536
          %v2554 = vpack.c.b16 %v2547, %v2546
          %v2555 = vpack.c.b16 %v2549, %v2548
          %v2556 = vpack.c.b16 %v2551, %v2550
          %v2557 = vpack.c.b16 %v2553, %v2552
          %v2563 = vsel %vm2366, %v2537, 0
          %2565 = vmatpush.bf16.msra.mxu0 0
          %2566 = vmatpush.bf16.msra.mxu0 0
          %2567 = vmatpush.bf16.msra.mxu0 0
          %2568 = vmatpush.bf16.msra.mxu0 0
          %2569 = vmatpush.bf16.msra.mxu0 %v2557
          %2570 = vmatpush.bf16.msra.mxu0 %v2556
          %2571 = vmatpush.bf16.msra.mxu0 %v2555
          %2572 = vmatpush.bf16.msra.mxu0 %v2554
          %2573 = vmatmul.bf16.gmra.mxu0 %v2563
          %v2574 = vpop.f32.mrf.mxu0
          %v2575 = vadd.f32 0.0, %v2574
          %v2576 = vpop.f32.mrf.mxu0
          %2577 = vdwg.mxu0
          %v2578 = vadd.f32 %v2527, %v2575
          %v2579 = vld [vmem:[%s2476 + $0x2] sm:$0xf]
          %v2580 = vld [vmem:[%s10 + $0xa0] sm:$0xf]
          %v2581 = vld [vmem:[%s10 + $0xa4] sm:$0xf]
          %v2582 = vld [vmem:[%s10 + $0xa8] sm:$0xf]
          %v2583 = vld [vmem:[%s10 + $0xac] sm:$0xf]
          %v2584 = vld [vmem:[%s10 + $0xb0] sm:$0xf]
          %v2585 = vld [vmem:[%s10 + $0xb4] sm:$0xf]
          %v2586 = vld [vmem:[%s10 + $0xb8] sm:$0xf]
          %v2587 = vld [vmem:[%s10 + $0xbc] sm:$0xf]
          %v2588 = vpack.c.bf16 %v2579, %v2579
          %v2597 = vunpack.c.l.b16 %v2580
          %v2598 = vunpack.c.l.b16 %v2581
          %v2599 = vunpack.c.l.b16 %v2582
          %v2600 = vunpack.c.l.b16 %v2583
          %v2601 = vunpack.c.l.b16 %v2584
          %v2602 = vunpack.c.l.b16 %v2585
          %v2603 = vunpack.c.l.b16 %v2586
          %v2604 = vunpack.c.l.b16 %v2587
          %v2605 = vpack.c.b16 %v2598, %v2597
          %v2606 = vpack.c.b16 %v2600, %v2599
          %v2607 = vpack.c.b16 %v2602, %v2601
          %v2608 = vpack.c.b16 %v2604, %v2603
          %v2614 = vsel %vm2366, %v2588, 0
          %2616 = vmatpush.bf16.msra.mxu0 0
          %2617 = vmatpush.bf16.msra.mxu0 0
          %2618 = vmatpush.bf16.msra.mxu0 0
          %2619 = vmatpush.bf16.msra.mxu0 0
          %2620 = vmatpush.bf16.msra.mxu0 %v2608
          %2621 = vmatpush.bf16.msra.mxu0 %v2607
          %2622 = vmatpush.bf16.msra.mxu0 %v2606
          %2623 = vmatpush.bf16.msra.mxu0 %v2605
          %2624 = vmatmul.bf16.gmra.mxu0 %v2614
          %v2625 = vpop.f32.mrf.mxu0
          %v2626 = vadd.f32 0.0, %v2625
          %v2627 = vpop.f32.mrf.mxu0
          %2628 = vdwg.mxu0
          %v2629 = vadd.f32 %v2578, %v2626
          %s2630 = sadd.s32 %s2315, 2
          %s2631 = smul.u32 %s2630, 8
          %s2632 = scalar_lea.vmem [#allocation5], %s2631
          %v2633 = vld [vmem:[%s2632] sm:$0xf]
          %v2634 = vld [vmem:[%s10 + $0xc0] sm:$0xf]
          %v2635 = vld [vmem:[%s10 + $0xc4] sm:$0xf]
          %v2636 = vld [vmem:[%s10 + $0xc8] sm:$0xf]
          %v2637 = vld [vmem:[%s10 + $0xcc] sm:$0xf]
          %v2638 = vld [vmem:[%s10 + $0xd0] sm:$0xf]
          %v2639 = vld [vmem:[%s10 + $0xd4] sm:$0xf]
          %v2640 = vld [vmem:[%s10 + $0xd8] sm:$0xf]
          %v2641 = vld [vmem:[%s10 + $0xdc] sm:$0xf]
          %v2642 = vpack.c.bf16 %v2633, %v2633
          %v2651 = vunpack.c.l.b16 %v2634
          %v2652 = vunpack.c.l.b16 %v2635
          %v2653 = vunpack.c.l.b16 %v2636
          %v2654 = vunpack.c.l.b16 %v2637
          %v2655 = vunpack.c.l.b16 %v2638
          %v2656 = vunpack.c.l.b16 %v2639
          %v2657 = vunpack.c.l.b16 %v2640
          %v2658 = vunpack.c.l.b16 %v2641
          %v2659 = vpack.c.b16 %v2652, %v2651
          %v2660 = vpack.c.b16 %v2654, %v2653
          %v2661 = vpack.c.b16 %v2656, %v2655
          %v2662 = vpack.c.b16 %v2658, %v2657
          %v2668 = vsel %vm2366, %v2642, 0
          %2670 = vmatpush.bf16.msra.mxu0 0
          %2671 = vmatpush.bf16.msra.mxu0 0
          %2672 = vmatpush.bf16.msra.mxu0 0
          %2673 = vmatpush.bf16.msra.mxu0 0
          %2674 = vmatpush.bf16.msra.mxu0 %v2662
          %2675 = vmatpush.bf16.msra.mxu0 %v2661
          %2676 = vmatpush.bf16.msra.mxu0 %v2660
          %2677 = vmatpush.bf16.msra.mxu0 %v2659
          %2678 = vmatmul.bf16.gmra.mxu0 %v2668
          %v2679 = vpop.f32.mrf.mxu0
          %v2680 = vadd.f32 0.0, %v2679
          %v2681 = vpop.f32.mrf.mxu0
          %2682 = vdwg.mxu0
          %v2683 = vadd.f32 %v2629, %v2680
          %v2684 = vld [vmem:[%s2632 + $0x1] sm:$0xf]
          %v2685 = vld [vmem:[%s10 + $0xe0] sm:$0xf]
          %v2686 = vld [vmem:[%s10 + $0xe4] sm:$0xf]
          %v2687 = vld [vmem:[%s10 + $0xe8] sm:$0xf]
          %v2688 = vld [vmem:[%s10 + $0xec] sm:$0xf]
          %v2689 = vld [vmem:[%s10 + $0xf0] sm:$0xf]
          %v2690 = vld [vmem:[%s10 + $0xf4] sm:$0xf]
          %v2691 = vld [vmem:[%s10 + $0xf8] sm:$0xf]
          %v2692 = vld [vmem:[%s10 + $0xfc] sm:$0xf]
          %v2693 = vpack.c.bf16 %v2684, %v2684
          %v2702 = vunpack.c.l.b16 %v2685
          %v2703 = vunpack.c.l.b16 %v2686
          %v2704 = vunpack.c.l.b16 %v2687
          %v2705 = vunpack.c.l.b16 %v2688
          %v2706 = vunpack.c.l.b16 %v2689
          %v2707 = vunpack.c.l.b16 %v2690
          %v2708 = vunpack.c.l.b16 %v2691
          %v2709 = vunpack.c.l.b16 %v2692
          %v2710 = vpack.c.b16 %v2703, %v2702
          %v2711 = vpack.c.b16 %v2705, %v2704
          %v2712 = vpack.c.b16 %v2707, %v2706
          %v2713 = vpack.c.b16 %v2709, %v2708
          %v2719 = vsel %vm2366, %v2693, 0
          %2721 = vmatpush.bf16.msra.mxu0 0
          %2722 = vmatpush.bf16.msra.mxu0 0
          %2723 = vmatpush.bf16.msra.mxu0 0
          %2724 = vmatpush.bf16.msra.mxu0 0
          %2725 = vmatpush.bf16.msra.mxu0 %v2713
          %2726 = vmatpush.bf16.msra.mxu0 %v2712
          %2727 = vmatpush.bf16.msra.mxu0 %v2711
          %2728 = vmatpush.bf16.msra.mxu0 %v2710
          %2729 = vmatmul.bf16.gmra.mxu0 %v2719
          %v2730 = vpop.f32.mrf.mxu0
          %v2731 = vadd.f32 0.0, %v2730
          %v2732 = vpop.f32.mrf.mxu0
          %2733 = vdwg.mxu0
          %v2734 = vadd.f32 %v2683, %v2731
          %v2735 = vld [vmem:[%s2632 + $0x2] sm:$0xf]
          %v2736 = vld [vmem:[%s10 + $0x100] sm:$0xf]
          %v2737 = vld [vmem:[%s10 + $0x104] sm:$0xf]
          %v2738 = vld [vmem:[%s10 + $0x108] sm:$0xf]
          %v2739 = vld [vmem:[%s10 + $0x10c] sm:$0xf]
          %v2740 = vld [vmem:[%s10 + $0x110] sm:$0xf]
          %v2741 = vld [vmem:[%s10 + $0x114] sm:$0xf]
          %v2742 = vld [vmem:[%s10 + $0x118] sm:$0xf]
          %v2743 = vld [vmem:[%s10 + $0x11c] sm:$0xf]
          %v2744 = vpack.c.bf16 %v2735, %v2735
          %v2753 = vunpack.c.l.b16 %v2736
          %v2754 = vunpack.c.l.b16 %v2737
          %v2755 = vunpack.c.l.b16 %v2738
          %v2756 = vunpack.c.l.b16 %v2739
          %v2757 = vunpack.c.l.b16 %v2740
          %v2758 = vunpack.c.l.b16 %v2741
          %v2759 = vunpack.c.l.b16 %v2742
          %v2760 = vunpack.c.l.b16 %v2743
          %v2761 = vpack.c.b16 %v2754, %v2753
          %v2762 = vpack.c.b16 %v2756, %v2755
          %v2763 = vpack.c.b16 %v2758, %v2757
          %v2764 = vpack.c.b16 %v2760, %v2759
          %v2770 = vsel %vm2366, %v2744, 0
          %2772 = vmatpush.bf16.msra.mxu0 0
          %2773 = vmatpush.bf16.msra.mxu0 0
          %2774 = vmatpush.bf16.msra.mxu0 0
          %2775 = vmatpush.bf16.msra.mxu0 0
          %2776 = vmatpush.bf16.msra.mxu0 %v2764
          %2777 = vmatpush.bf16.msra.mxu0 %v2763
          %2778 = vmatpush.bf16.msra.mxu0 %v2762
          %2779 = vmatpush.bf16.msra.mxu0 %v2761
          %2780 = vmatmul.bf16.gmra.mxu0 %v2770
          %v2781 = vpop.f32.mrf.mxu0
          %v2782 = vadd.f32 0.0, %v2781
          %v2783 = vpop.f32.mrf.mxu0
          %2784 = vdwg.mxu0
          %v2785 = vadd.f32 %v2734, %v2782
          %v2787 = vperm.slane %v2312, 0
          %v2789 = vmul.f32 %v2785, %v2787
          %v2791 = vperm.slane %v2313, 0
          %v2793 = vadd.f32 %v2789, %v2791
          %v2794 = vmax.f32 %v2793, 0.0
          %s2795 = smul.u32 %s2315, 4
          %s2796 = scalar_lea.vmem [#allocation6], %s2795
          %2797 = vst [vmem:[%s2796] sm:$0xf] %v2794
        $region106: #{cnn_network4_forward.1} parent=79 // loop_footer
          %s2319 = sadd.s32 1, %s2315
        $region107: #{cnn_network4_forward.1} parent=79 // loop_footer_branch
          %2314 = sbr.rel target = $region103
        $region108: #{cnn_network4_forward.1} parent=79 // loop_exit
          _
        loop: start=0, step=1, limit=2
        $region109: #{cnn_network4_forward.1} parent=79 // loop_pre_header
          _
        $region110: #{cnn_network4_forward.1} parent=79 // loop_header
          %s2799 = sphi 0, %s2803
          %p2800 = scmp.ge.s32.totalorder %s2799, 2
          %v2804 = vphi 0.0, %v2991
        $region111: #{cnn_network4_forward.1} parent=79 // loop_header_branch
          %2802 = sbr.rel (%p2800) target = $region115
        $region112: #{cnn_network4_forward.1} parent=79 // loop_body
          %s2805 = smul.u32 %s2799, 2
          %s2806 = smul.u32 %s2805, 4
          %s2807 = scalar_lea.vmem [#allocation6], %s2806
          %v2808 = vld [vmem:[%s2807] ss:$2 sm:$0x3]
          %s2809 = scalar_lea.vmem %s2807, 1 [#allocation6]
          %v2810 = vld [vmem:[%s2809] ss:$2 sm:$0x3]
          %s2811 = sadd.s32 %s2805, 1
          %s2812 = smul.u32 %s2811, 4
          %s2813 = scalar_lea.vmem [#allocation6], %s2812
          %v2814 = vld [vmem:[%s2813] ss:$2 sm:$0x3]
          %s2815 = scalar_lea.vmem %s2813, 1 [#allocation6]
          %v2816 = vld [vmem:[%s2815] ss:$2 sm:$0x3]
          %v2817 = vadd.f32 %v2808, %v2810
          %v2818 = vadd.f32 %v2817, %v2814
          %v2819 = vadd.f32 %v2818, %v2816
          %v2820 = vmul.f32 %v2819, 0.25
          %v2821 = vpack.c.bf16 %v2820, %v2820
          %s2822 = smul.u32 %s2799, 256
          %s2823 = sshra.s32 %s2822, 3
          %s2824 = sand.u32 %s2822, 7
          %s2825 = smul.addr %s2823, 4
          %s2826 = scalar_lea.vmem %s13, %s2825
          %v2827 = vld [vmem:[%s2826] sm:$0xf]
          %v2828 = vld [vmem:[%s2826 + $0x4] sm:$0xf]
          %v2829 = vld [vmem:[%s2826 + $0x8] sm:$0xf]
          %v2830 = vld [vmem:[%s2826 + $0xc] sm:$0xf]
          %v2831 = vld [vmem:[%s2826 + $0x10] sm:$0xf]
          %v2832 = vld [vmem:[%s2826 + $0x14] sm:$0xf]
          %v2833 = vld [vmem:[%s2826 + $0x18] sm:$0xf]
          %v2834 = vld [vmem:[%s2826 + $0x1c] sm:$0xf]
          %v2835 = vld [vmem:[%s2826 + $0x20] sm:$0xf]
          %v2836 = vld [vmem:[%s2826 + $0x24] sm:$0xf]
          %v2837 = vld [vmem:[%s2826 + $0x28] sm:$0xf]
          %v2838 = vld [vmem:[%s2826 + $0x2c] sm:$0xf]
          %v2839 = vld [vmem:[%s2826 + $0x30] sm:$0xf]
          %v2840 = vld [vmem:[%s2826 + $0x34] sm:$0xf]
          %v2841 = vld [vmem:[%s2826 + $0x38] sm:$0xf]
          %v2842 = vld [vmem:[%s2826 + $0x3c] sm:$0xf]
          %v2859 = vunpack.c.l.b16 %v2827
          %v2860 = vunpack.c.l.b16 %v2828
          %v2861 = vunpack.c.l.b16 %v2829
          %v2862 = vunpack.c.l.b16 %v2830
          %v2863 = vunpack.c.l.b16 %v2831
          %v2864 = vunpack.c.l.b16 %v2832
          %v2865 = vunpack.c.l.b16 %v2833
          %v2866 = vunpack.c.l.b16 %v2834
          %v2867 = vunpack.c.l.b16 %v2835
          %v2868 = vunpack.c.l.b16 %v2836
          %v2869 = vunpack.c.l.b16 %v2837
          %v2870 = vunpack.c.l.b16 %v2838
          %v2871 = vunpack.c.l.b16 %v2839
          %v2872 = vunpack.c.l.b16 %v2840
          %v2873 = vunpack.c.l.b16 %v2841
          %v2874 = vunpack.c.l.b16 %v2842
          %v2875 = vpack.c.b16 %v2860, %v2859
          %v2876 = vpack.c.b16 %v2862, %v2861
          %v2877 = vpack.c.b16 %v2864, %v2863
          %v2878 = vpack.c.b16 %v2866, %v2865
          %v2879 = vpack.c.b16 %v2868, %v2867
          %v2880 = vpack.c.b16 %v2870, %v2869
          %v2881 = vpack.c.b16 %v2872, %v2871
          %v2882 = vpack.c.b16 %v2874, %v2873
          %2891 = vmatpush.bf16.msra.mxu0 %v2882
          %2892 = vmatpush.bf16.msra.mxu0 %v2881
          %2893 = vmatpush.bf16.msra.mxu0 %v2880
          %2894 = vmatpush.bf16.msra.mxu0 %v2879
          %2895 = vmatpush.bf16.msra.mxu0 %v2878
          %2896 = vmatpush.bf16.msra.mxu0 %v2877
          %2897 = vmatpush.bf16.msra.mxu0 %v2876
          %2898 = vmatpush.bf16.msra.mxu0 %v2875
          %2899 = vmatmul.bf16.gmra.mxu0 %v2821
          %v2900 = vpop.f32.mrf.mxu0
          %v2901 = vadd.f32 0.0, %v2900
          %v2902 = vpop.f32.mrf.mxu0
          %2903 = vdwg.mxu0
          %v2904 = vadd.f32 %v2804, %v2901
          %s2905 = smul.u32 %s2811, 128
          %s2906 = sshra.s32 %s2905, 3
          %s2907 = sand.u32 %s2905, 7
          %s2908 = smul.addr %s2906, 4
          %s2909 = scalar_lea.vmem %s13, %s2908
          %v2910 = vld [vmem:[%s2909] sm:$0xf]
          %v2911 = vld [vmem:[%s2909 + $0x4] sm:$0xf]
          %v2912 = vld [vmem:[%s2909 + $0x8] sm:$0xf]
          %v2913 = vld [vmem:[%s2909 + $0xc] sm:$0xf]
          %v2914 = vld [vmem:[%s2909 + $0x10] sm:$0xf]
          %v2915 = vld [vmem:[%s2909 + $0x14] sm:$0xf]
          %v2916 = vld [vmem:[%s2909 + $0x18] sm:$0xf]
          %v2917 = vld [vmem:[%s2909 + $0x1c] sm:$0xf]
          %v2918 = vld [vmem:[%s2909 + $0x20] sm:$0xf]
          %v2919 = vld [vmem:[%s2909 + $0x24] sm:$0xf]
          %v2920 = vld [vmem:[%s2909 + $0x28] sm:$0xf]
          %v2921 = vld [vmem:[%s2909 + $0x2c] sm:$0xf]
          %v2922 = vld [vmem:[%s2909 + $0x30] sm:$0xf]
          %v2923 = vld [vmem:[%s2909 + $0x34] sm:$0xf]
          %v2924 = vld [vmem:[%s2909 + $0x38] sm:$0xf]
          %v2925 = vld [vmem:[%s2909 + $0x3c] sm:$0xf]
          %v2927 = vshrl.u32 %v2821, 16
          %v2946 = vunpack.c.l.b16 %v2910
          %v2947 = vunpack.c.l.b16 %v2911
          %v2948 = vunpack.c.l.b16 %v2912
          %v2949 = vunpack.c.l.b16 %v2913
          %v2950 = vunpack.c.l.b16 %v2914
          %v2951 = vunpack.c.l.b16 %v2915
          %v2952 = vunpack.c.l.b16 %v2916
          %v2953 = vunpack.c.l.b16 %v2917
          %v2954 = vunpack.c.l.b16 %v2918
          %v2955 = vunpack.c.l.b16 %v2919
          %v2956 = vunpack.c.l.b16 %v2920
          %v2957 = vunpack.c.l.b16 %v2921
          %v2958 = vunpack.c.l.b16 %v2922
          %v2959 = vunpack.c.l.b16 %v2923
          %v2960 = vunpack.c.l.b16 %v2924
          %v2961 = vunpack.c.l.b16 %v2925
          %v2962 = vpack.c.b16 %v2947, %v2946
          %v2963 = vpack.c.b16 %v2949, %v2948
          %v2964 = vpack.c.b16 %v2951, %v2950
          %v2965 = vpack.c.b16 %v2953, %v2952
          %v2966 = vpack.c.b16 %v2955, %v2954
          %v2967 = vpack.c.b16 %v2957, %v2956
          %v2968 = vpack.c.b16 %v2959, %v2958
          %v2969 = vpack.c.b16 %v2961, %v2960
          %2978 = vmatpush.bf16.msra.mxu0 %v2969
          %2979 = vmatpush.bf16.msra.mxu0 %v2968
          %2980 = vmatpush.bf16.msra.mxu0 %v2967
          %2981 = vmatpush.bf16.msra.mxu0 %v2966
          %2982 = vmatpush.bf16.msra.mxu0 %v2965
          %2983 = vmatpush.bf16.msra.mxu0 %v2964
          %2984 = vmatpush.bf16.msra.mxu0 %v2963
          %2985 = vmatpush.bf16.msra.mxu0 %v2962
          %2986 = vmatmul.bf16.gmra.mxu0 %v2927
          %v2987 = vpop.f32.mrf.mxu0
          %v2988 = vadd.f32 0.0, %v2987
          %v2989 = vpop.f32.mrf.mxu0
          %2990 = vdwg.mxu0
          %v2991 = vadd.f32 %v2904, %v2988
        $region113: #{cnn_network4_forward.1} parent=79 // loop_footer
          %s2803 = sadd.s32 1, %s2799
        $region114: #{cnn_network4_forward.1} parent=79 // loop_footer_branch
          %2798 = sbr.rel target = $region110
        $region115: #{cnn_network4_forward.1} parent=79 // loop_exit
          _
        %v2992 = vld [vmem:[%s14] sm:$0x1]
        %v2993 = vadd.f32 %v2804, %v2992
        %vm2994 = vcmask 73728
        %2995 = vst.msk [vmem:[%s486] sm:$0x1] %vm2994, %v2993
        %s2996 = sand.u32 %s357, 1
        %s2997 = scalar_lea.sflag [#allocation8], %s2996
        %s2998 = sand.u32 %s357, 1
        %s2999 = scalar_lea.vmem [#allocation7], %s2998
        // Predicated region
        $region116: #{cnn_network4_forward.1} parent=79 // pred_check
          %p3000 = pneg %p367
        $region117: #{cnn_network4_forward.1} parent=79 // pred_check_branch
          %3002 = sbr.rel (%p3000) target = $region119
        $region118: #{cnn_network4_forward.1} parent=79 // pred_region
          %3004 = vsyncadd %s2997, 0
          %s3005 = scalar_lea.hbm %s15, %s29
          %s3007 = sshll.u32 %s2999, 4
          %s3008 = int_to_ptr.vmem [resolvable:$true] %s3007
          %s3009 = sshll.u32 %s3005, 4
          %s3010 = int_to_ptr.hbm [resolvable:$true] %s3009
          %3012 = dma.vmem_to_hbm [thread:$0]  %s3008, 16, %s3010, %s2997
        $region119: #{cnn_network4_forward.1} parent=79 // pred_fallthru
          _
      $region80: #{cnn_network4_forward.1} parent=5 // pred_fallthru
        _
      %p3013 = scmp.le.s32.totalorder 2, %s24
      // Predicated region
      $region120: #{cnn_network4_forward.1} parent=5 // pred_check
        %p3014 = pneg %p3013
      $region121: #{cnn_network4_forward.1} parent=5 // pred_check_branch
        %3016 = sbr.rel (%p3014) target = $region123
      $region122: #{cnn_network4_forward.1} parent=5 // pred_region
        %s3017 = ssub.s32 %s24, 2
        // Predicated region
        $region124: #{cnn_network4_forward.1} parent=122 // pred_check
          %p3018 = pneg %p373
        $region125: #{cnn_network4_forward.1} parent=122 // pred_check_branch
          %3020 = sbr.rel (%p3018) target = $region127
        $region126: #{cnn_network4_forward.1} parent=122 // pred_region
          %s3021 = sand.u32 %s358, 1
          %s3022 = scalar_lea.sflag [#allocation8], %s3021
          %s3023 = sand.u32 %s358, 1
          %s3024 = scalar_lea.vmem [#allocation7], %s3023
          %3026 = dma.done %s3022, 16
        $region127: #{cnn_network4_forward.1} parent=122 // pred_fallthru
          _
      $region123: #{cnn_network4_forward.1} parent=5 // pred_fallthru
        _
    $region6: #{cnn_network4_forward.1} parent=1 // loop_footer
      %s28 = sadd.s32 1, %s24
    $region7: #{cnn_network4_forward.1} parent=1 // loop_footer_branch
      %23 = sbr.rel target = $region3
    $region8: #{cnn_network4_forward.1} parent=1 // loop_exit
      _
    %3027 = vsyncpa [#allocation8], 1
    %s3028 = scalar_lea.sflag [#allocation8], 1
    %3029 = vsyncpa %s3028, 1

</llo_original>
